<compile_context>
chip_gen: v7x
topology: tpu7x:2x2x1
jax: 0.10.0
libtpu: 0.0.40
codegen_flags: <defaults>
</compile_context>

<pallas_src>
import math
import jax
import jax.numpy as jnp
from jax import lax
from jax.experimental import pallas as pl
from jax.experimental.pallas import tpu as pltpu

# ---- fixed module hyper-params (from the PyTorch __init__) ----------------
D_MODEL = 300                        # embed_dim
N_HEADS = 3
HEAD_DIM = D_MODEL // N_HEADS        # 100
SCALE = 1.0 / math.sqrt(HEAD_DIM)
LANE = 128
HP = ((HEAD_DIM + LANE - 1) // LANE) * LANE     # padded head dim   = 128
DP = ((D_MODEL + LANE - 1) // LANE) * LANE      # padded model dim  = 384
H3 = 3 * N_HEADS * HP                           # fused QKV width   = 1152


def _round_up(a, b):
    return (a + b - 1) // b * b


def _nbytes(shape, dtype):
    n = 1
    for s in shape:
        n *= s
    return n * jnp.dtype(dtype).itemsize


# ---------------------------------------------------------------------------
# positional encoding (vectorized equivalent of the PyTorch gen_pe loop)
# ---------------------------------------------------------------------------
def gen_pe(max_length, d_model):
    k = jnp.arange(max_length, dtype=jnp.float32)[:, None]
    i = jnp.arange(d_model // 2, dtype=jnp.float32)[None, :]
    theta = k / (10000.0 ** (2.0 * i / d_model))
    pe = jnp.zeros((max_length, d_model), jnp.float32)
    pe = pe.at[:, 0::2].set(jnp.sin(theta))
    pe = pe.at[:, 1::2].set(jnp.cos(theta))
    return pe


# ---------------------------------------------------------------------------
# Pallas kernel factory (static shapes / dtypes closed over)
# ---------------------------------------------------------------------------
def _make_kernel(Bt, S, compute_dtype):
    def kernel(x_ref, pe_ref, wqkv_ref, bqkv_ref, wo_ref, bo_ref,
               w2_ref, b2_ref, out_ref, attn_ref):
        vi = pl.program_id(1)

        # Attention is computed once per batch tile (at vocab tile 0) and
        # cached in VMEM scratch; later vocab tiles reuse it.
        # CORRECTNESS: this relies on the vocab axis being the innermost,
        # sequentially executed ("arbitrary") grid axis — do not reorder.
        @pl.when(vi == 0)
        def _attention():
            xp = x_ref[...] + pe_ref[...][None]               # (Bt, S, DP)
            # NOTE: merging (Bt, S) into the sublane axis is a free relayout
            # only when S % 8 == 0 (true for typical seq lengths).
            x2 = xp.reshape(Bt * S, DP)                       # (Bt*S, DP)

            # fused QKV projection, SCALE already folded into wq/bq
            qkv = jnp.dot(x2, wqkv_ref[...],
                          preferred_element_type=jnp.float32) + bqkv_ref[...]

            # causal mask built in-kernel (no HBM traffic)
            row = lax.broadcasted_iota(jnp.int32, (S, S), 0)
            col = lax.broadcasted_iota(jnp.int32, (S, S), 1)
            neg = jnp.where(col <= row, 0.0, -1e30).astype(jnp.float32)

            # TODO(synk): for long S (>= ~1-2k) the per-head (Bt,S,S) score
            # buffer dominates VMEM -> switch to flash-style KV tiling.
            heads = []
            for h in range(N_HEADS):                          # static unroll (3)
                q = qkv[:, h * HP:(h + 1) * HP]
                k = qkv[:, (N_HEADS + h) * HP:(N_HEADS + h + 1) * HP]
                v = qkv[:, (2 * N_HEADS + h) * HP:(2 * N_HEADS + h + 1) * HP]
                q = q.reshape(Bt, S, HP).astype(compute_dtype)
                k = k.reshape(Bt, S, HP).astype(compute_dtype)
                v = v.reshape(Bt, S, HP).astype(compute_dtype)

                s = jnp.einsum("bqd,bkd->bqk", q, k,
                               preferred_element_type=jnp.float32) + neg[None]
                s = s - jnp.max(s, axis=-1, keepdims=True)    # softmax in f32
                p = jnp.exp(s)
                p = p * pl.reciprocal(jnp.sum(p, axis=-1, keepdims=True),
                                      approx=True)
                head = jnp.einsum("bqk,bkd->bqd", p.astype(compute_dtype), v,
                                  preferred_element_type=jnp.float32)
                heads.append(head.reshape(Bt * S, HP).astype(compute_dtype))

            # single out_proj matmul over the concatenated (padded) heads
            hcat = jnp.concatenate(heads, axis=-1)            # (Bt*S, H*HP)
            attn = jnp.dot(hcat, wo_ref[...],
                           preferred_element_type=jnp.float32) + bo_ref[...]
            attn_ref[...] = attn.astype(attn_ref.dtype)

        # hidden2 linear for this vocab tile: (Bt*S, DP) @ (DP, TV) + (1, TV)
        logits = jnp.dot(attn_ref[...], w2_ref[...],
                         preferred_element_type=jnp.float32) + b2_ref[...]
        out_ref[...] = logits.reshape(Bt, S, -1).astype(out_ref.dtype)

    return kernel


# ---------------------------------------------------------------------------
# wrapper: parameter re-layout (pad / fuse / fold) + pallas_call
# ---------------------------------------------------------------------------
def gpt_language_model_forward(x, params, pe, *,
                               compute_dtype=jnp.bfloat16,
                               logits_dtype=jnp.bfloat16):
    B, S, D = x.shape
    assert D == D_MODEL
    V = params["w2"].shape[0]

    # ---- batch tiling: target ~256 MXU rows per grid step, Bt | B -----------
    Bt = max(1, min(B, pl.cdiv(256, S)))
    while B % Bt:
        Bt -= 1                      # NOTE: prime/small B can drive Bt low (perf cliff only)
    # v7x has 2 TCs: prefer >= 2 tiles on the "parallel" axis when that still
    # leaves >= 128 MXU rows per tile.
    if B // Bt == 1 and Bt % 2 == 0 and (Bt // 2) * S >= 128:
        Bt //= 2

    # ---- VMEM-budgeted vocab tile (sized for v7x's 64 MiB / TC) -------------
    def vmem_estimate(bt, tv):
        rows = bt * S
        dbl = 2 * (
            _nbytes((bt, S, DP), compute_dtype) + _nbytes((S, DP), compute_dtype)
            + _nbytes((DP, H3), compute_dtype) + _nbytes((1, H3), jnp.float32)
            + _nbytes((N_HEADS * HP, DP), compute_dtype) + _nbytes((1, DP), jnp.float32)
            + _nbytes((DP, tv), compute_dtype) + _nbytes((1, tv), jnp.float32)
            + _nbytes((bt, S, tv), logits_dtype))
        tmp = (_nbytes((rows, DP), compute_dtype)        # attn scratch
               + _nbytes((rows, H3), jnp.float32)        # f32 qkv temporary
               + 4 * _nbytes((bt, S, S), jnp.float32)    # score/softmax temps
               + _nbytes((rows, tv), jnp.float32))       # f32 logits temporary
        return dbl + tmp

    VMEM_BUDGET = 36 << 20
    tv_candidates = [V] if V <= 2048 else [2048, 1024, 512, 256, 128]
    TV = tv_candidates[-1]
    for tv in tv_candidates:
        if vmem_estimate(Bt, tv) <= VMEM_BUDGET:
            TV = tv
            break
    while vmem_estimate(Bt, TV) > VMEM_BUDGET and Bt > 1:
        Bt -= 1
        while B % Bt:
            Bt -= 1

    n_v = pl.cdiv(V, TV)
    V_pad_w = n_v * TV               # w2/b2 padded so only the OUTPUT block overhangs

    # ---- split / pad / fuse attention weights (SCALE folded into query) -----
    in_w, in_b = params["in_proj_weight"], params["in_proj_bias"]   # (3D,D),(3D,)
    wq_full, wk_full, wv_full = in_w[:D], in_w[D:2 * D], in_w[2 * D:]
    bq_full, bk_full, bv_full = in_b[:D], in_b[D:2 * D], in_b[2 * D:]

    def pad_heads_w(w, scale=1.0):          # torch (D, D) -> (DP, H*HP)
        cols = []
        for h in range(N_HEADS):
            wh = w[h * HEAD_DIM:(h + 1) * HEAD_DIM, :].T * scale    # (D, HD)
            cols.append(jnp.pad(wh, ((0, DP - D), (0, HP - HEAD_DIM))))
        return jnp.concatenate(cols, axis=1)

    def pad_heads_b(b, scale=1.0):          # (D,) -> (H*HP,)
        cols = []
        for h in range(N_HEADS):
            bh = b[h * HEAD_DIM:(h + 1) * HEAD_DIM] * scale
            cols.append(jnp.pad(bh, (0, HP - HEAD_DIM)))
        return jnp.concatenate(cols)

    wqkv = jnp.concatenate([pad_heads_w(wq_full, SCALE),
                            pad_heads_w(wk_full),
                            pad_heads_w(wv_full)], axis=1).astype(compute_dtype)
    bqkv = jnp.concatenate([pad_heads_b(bq_full, SCALE),
                            pad_heads_b(bk_full),
                            pad_heads_b(bv_full)])[None, :].astype(jnp.float32)

    # out_proj re-laid out for the padded concat-head layout: (H*HP, DP)
    wo_t = params["out_proj_weight"].T                              # (D, D)
    wo = jnp.concatenate(
        [jnp.pad(wo_t[h * HEAD_DIM:(h + 1) * HEAD_DIM, :],
                 ((0, HP - HEAD_DIM), (0, DP - D))) for h in range(N_HEADS)],
        axis=0).astype(compute_dtype)
    bo = jnp.pad(params["out_proj_bias"], (0, DP - D))[None, :].astype(jnp.float32)

    # hidden2: transposed, model dim padded to DP (zeros), vocab padded to n_v*TV
    w2 = jnp.pad(params["w2"].T,
                 ((0, DP - D), (0, V_pad_w - V))).astype(compute_dtype)
    b2 = jnp.pad(params["b2"], (0, V_pad_w - V))[None, :].astype(jnp.float32)

    # inputs padded to the 128-multiple model dim (zero columns are inert)
    x_c = jnp.pad(x, ((0, 0), (0, 0), (0, DP - D))).astype(compute_dtype)
    pe_c = jnp.pad(pe, ((0, 0), (0, DP - D))).astype(compute_dtype)

    vmem_limit = int(min(max(vmem_estimate(Bt, TV) + (16 << 20), 32 << 20),
                         48 << 20))

    kernel = _make_kernel(Bt, S, compute_dtype)
    grid = (B // Bt, n_v)            # vocab axis innermost & "arbitrary" (see kernel note)

    out = pl.pallas_call(
        kernel,
        # exact (B, S, V) output: the last vocab tile's out-of-range columns
        # are dropped by the masked block write -> no post-kernel slice/copy.
        out_shape=jax.ShapeDtypeStruct((B, S, V), logits_dtype),
        grid=grid,
        in_specs=[
            pl.BlockSpec((Bt, S, DP), lambda b, vi: (b, 0, 0)),        # x (+pad)
            pl.BlockSpec((S, DP), lambda b, vi: (0, 0)),               # PE
            pl.BlockSpec((DP, H3), lambda b, vi: (0, 0)),              # fused QKV weight
            pl.BlockSpec((1, H3), lambda b, vi: (0, 0)),               # fused QKV bias
            pl.BlockSpec((N_HEADS * HP, DP), lambda b, vi: (0, 0)),    # out_proj weight
            pl.BlockSpec((1, DP), lambda b, vi: (0, 0)),               # out_proj bias
            pl.BlockSpec((DP, TV), lambda b, vi: (0, vi)),             # w2 vocab tile
            pl.BlockSpec((1, TV), lambda b, vi: (0, vi)),              # b2 vocab tile
        ],
        out_specs=pl.BlockSpec((Bt, S, TV), lambda b, vi: (b, 0, vi)),
        scratch_shapes=[pltpu.VMEM((Bt * S, DP), compute_dtype)],      # cached attention
        compiler_params=pltpu.CompilerParams(
            dimension_semantics=("parallel", "arbitrary"),
            vmem_limit_bytes=vmem_limit),
    )(x_c, pe_c, wqkv, bqkv, wo, bo, w2, b2)

    return out


# ---------------------------------------------------------------------------
# pure-JAX f32 reference (mirrors nn.MultiheadAttention + Linear exactly)
# ---------------------------------------------------------------------------
def reference_forward(x, params, pe):
    B, S, D = x.shape
    x = x + pe[None]
    in_w, in_b = params["in_proj_weight"], params["in_proj_bias"]
    qkv = jnp.einsum("bsd,ed->bse", x, in_w) + in_b
    q, k, v = qkv[..., :D], qkv[..., D:2 * D], qkv[..., 2 * D:]

    def heads(t):
        return t.reshape(B, S, N_HEADS, HEAD_DIM).transpose(0, 2, 1, 3)

    q, k, v = heads(q) * SCALE, heads(k), heads(v)
    i = jnp.arange(S)[:, None]
    j = jnp.arange(S)[None, :]
    mask_add = jnp.where(j <= i, 0.0, -1e30).astype(jnp.float32)
    s = jnp.einsum("bhqd,bhkd->bhqk", q, k) + mask_add[None, None]
    p = jax.nn.softmax(s, axis=-1)
    o = jnp.einsum("bhqk,bhkd->bhqd", p, v).transpose(0, 2, 1, 3).reshape(B, S, D)
    o = jnp.einsum("bsd,ed->bse", o, params["out_proj_weight"]) + params["out_proj_bias"]
    return jnp.einsum("bsd,vd->bsv", o, params["w2"]) + params["b2"]


# ---------------------------------------------------------------------------
if __name__ == "__main__":
    B, S, V = 2, 8, 64     # small test shapes; embed_dim fixed to 300 by the module

    key = jax.random.PRNGKey(0)
    ks = jax.random.split(key, 8)
    sc = 0.02
    params = {
        "in_proj_weight": sc * jax.random.normal(ks[0], (3 * D_MODEL, D_MODEL), jnp.float32),
        "in_proj_bias":   sc * jax.random.normal(ks[1], (3 * D_MODEL,), jnp.float32),
        "out_proj_weight": sc * jax.random.normal(ks[2], (D_MODEL, D_MODEL), jnp.float32),
        "out_proj_bias":   sc * jax.random.normal(ks[3], (D_MODEL,), jnp.float32),
        "w2": sc * jax.random.normal(ks[4], (V, D_MODEL), jnp.float32),
        "b2": sc * jax.random.normal(ks[5], (V,), jnp.float32),
    }
    x = jax.random.normal(ks[6], (B, S, D_MODEL), jnp.float32)
    pe = gen_pe(S, D_MODEL)

    out = gpt_language_model_forward(x, params, pe)
    out = jax.block_until_ready(out)

    ref = reference_forward(x, params, pe)
    assert out.shape == (B, S, V), f"bad shape {out.shape}"
    # bf16 matmul operands / bf16 logits + approx reciprocal -> loosened tolerance
    assert jnp.allclose(out.astype(jnp.float32), ref, rtol=2e-2, atol=2e-2), \
        "mismatch vs reference"
    print("KERNEL_OK")
</pallas_src>

<mosaic_0001>
module attributes {stable_mosaic.version = 11 : i64} {
  func.func @kernel(%arg0: i32, %arg1: i32, %arg2: memref<2x8x384xbf16, #tpu.memory_space<vmem>>, %arg3: memref<8x384xbf16, #tpu.memory_space<vmem>>, %arg4: memref<384x1152xbf16, #tpu.memory_space<vmem>>, %arg5: memref<1x1152xf32, #tpu.memory_space<vmem>>, %arg6: memref<384x384xbf16, #tpu.memory_space<vmem>>, %arg7: memref<1x384xf32, #tpu.memory_space<vmem>>, %arg8: memref<384x64xbf16, #tpu.memory_space<vmem>>, %arg9: memref<1x64xf32, #tpu.memory_space<vmem>>, %arg10: memref<2x8x64xbf16, #tpu.memory_space<vmem>>, %arg11: memref<16x384xbf16, #tpu.memory_space<vmem>>) attributes {dimension_semantics = [#tpu.dimension_semantics<parallel>, #tpu.dimension_semantics<arbitrary>], iteration_bounds = array<i64: 1, 1>, scalar_prefetch = 0 : i64, scratch_operands = 1 : i64, tpu.core_type = #tpu.core_type<tc>, window_params = [{transform_indices = @transform_0, window_bounds = array<i64: 2, 8, 384>}, {pipeline_mode = #tpu.pipeline_mode<synchronous>, transform_indices = @transform_1, window_bounds = array<i64: 8, 384>}, {pipeline_mode = #tpu.pipeline_mode<synchronous>, transform_indices = @transform_2, window_bounds = array<i64: 384, 1152>}, {pipeline_mode = #tpu.pipeline_mode<synchronous>, transform_indices = @transform_3, window_bounds = array<i64: 1, 1152>}, {pipeline_mode = #tpu.pipeline_mode<synchronous>, transform_indices = @transform_4, window_bounds = array<i64: 384, 384>}, {pipeline_mode = #tpu.pipeline_mode<synchronous>, transform_indices = @transform_5, window_bounds = array<i64: 1, 384>}, {transform_indices = @transform_6, window_bounds = array<i64: 384, 64>}, {transform_indices = @transform_7, window_bounds = array<i64: 1, 64>}, {transform_indices = @transform_8, window_bounds = array<i64: 2, 8, 64>}]} {
    %c0_i32 = arith.constant 0 : i32
    %0 = arith.cmpi eq, %arg1, %c0_i32 : i32
    %1 = arith.extui %0 : i1 to i32
    %c0_i32_0 = arith.constant 0 : i32
    %2 = arith.cmpi ne, %1, %c0_i32_0 : i32
    scf.if %2 {
      %c0_9 = arith.constant 0 : index
      %c0_10 = arith.constant 0 : index
      %c0_11 = arith.constant 0 : index
      %12 = vector.load %arg2[%c0_9, %c0_10, %c0_11] : memref<2x8x384xbf16, #tpu.memory_space<vmem>>, vector<2x8x384xbf16>
      %c0_12 = arith.constant 0 : index
      %c0_13 = arith.constant 0 : index
      %13 = vector.load %arg3[%c0_12, %c0_13] : memref<8x384xbf16, #tpu.memory_space<vmem>>, vector<8x384xbf16>
      %14 = vector.shape_cast %13 : vector<8x384xbf16> to vector<1x8x384xbf16>
      %15 = vector.broadcast %14 : vector<1x8x384xbf16> to vector<2x8x384xbf16>
      %16 = arith.addf %12, %15 : vector<2x8x384xbf16>
      %17 = vector.shape_cast %16 : vector<2x8x384xbf16> to vector<16x384xbf16>
      %c0_14 = arith.constant 0 : index
      %c0_15 = arith.constant 0 : index
      %18 = vector.load %arg4[%c0_14, %c0_15] : memref<384x1152xbf16, #tpu.memory_space<vmem>>, vector<384x1152xbf16>
      %cst_16 = arith.constant dense<0.000000e+00> : vector<16x1152xf32>
      %19 = tpu.matmul %17, %18, %cst_16 {dimension_numbers = #tpu.dot_dimension_numbers<[1], [0], [0], [1], [0, 0, 1, 1], [], []>} : vector<16x384xbf16>, vector<384x1152xbf16>, vector<16x1152xf32> -> vector<16x1152xf32>
      %c0_17 = arith.constant 0 : index
      %c0_18 = arith.constant 0 : index
      %20 = vector.load %arg5[%c0_17, %c0_18] : memref<1x1152xf32, #tpu.memory_space<vmem>>, vector<1x1152xf32>
      %21 = vector.broadcast %20 : vector<1x1152xf32> to vector<16x1152xf32>
      %22 = arith.addf %19, %21 : vector<16x1152xf32>
      %23 = tpu.iota {dimensions = array<i32: 0>} : vector<8x8xi32>
      %24 = tpu.iota {dimensions = array<i32: 1>} : vector<8x8xi32>
      %25 = arith.cmpi sle, %24, %23 : vector<8x8xi32>
      %cst_19 = arith.constant 0.000000e+00 : f32
      %cst_20 = arith.constant -1.000000e+30 : f32
      %26 = vector.broadcast %cst_19 : f32 to vector<8x8xf32>
      %27 = vector.broadcast %cst_20 : f32 to vector<8x8xf32>
      %28 = arith.select %25, %26, %27 : vector<8x8xi1>, vector<8x8xf32>
      %29 = vector.extract_strided_slice %22 {offsets = [0, 0], sizes = [16, 128], strides = [1, 1]} : vector<16x1152xf32> to vector<16x128xf32>
      %30 = vector.extract_strided_slice %22 {offsets = [0, 384], sizes = [16, 128], strides = [1, 1]} : vector<16x1152xf32> to vector<16x128xf32>
      %31 = vector.extract_strided_slice %22 {offsets = [0, 768], sizes = [16, 128], strides = [1, 1]} : vector<16x1152xf32> to vector<16x128xf32>
      %32 = vector.shape_cast %29 : vector<16x128xf32> to vector<2x8x128xf32>
      %33 = arith.truncf %32 : vector<2x8x128xf32> to vector<2x8x128xbf16>
      %34 = vector.shape_cast %30 : vector<16x128xf32> to vector<2x8x128xf32>
      %35 = arith.truncf %34 : vector<2x8x128xf32> to vector<2x8x128xbf16>
      %36 = vector.shape_cast %31 : vector<16x128xf32> to vector<2x8x128xf32>
      %37 = arith.truncf %36 : vector<2x8x128xf32> to vector<2x8x128xbf16>
      "tpu.trace_start"() <{level = 10 : i32, message = "bqd,bkd->bqk"}> : () -> ()
      %cst_21 = arith.constant dense<0.000000e+00> : vector<2x8x8xf32>
      %38 = tpu.matmul %33, %35, %cst_21 {dimension_numbers = #tpu.dot_dimension_numbers<[2], [2], [1], [1], [0, 0, 0, 1, 1, 1], [0], [0]>} : vector<2x8x128xbf16>, vector<2x8x128xbf16>, vector<2x8x8xf32> -> vector<2x8x8xf32>
      "tpu.trace_stop"() : () -> ()
      %39 = vector.shape_cast %28 : vector<8x8xf32> to vector<1x8x8xf32>
      %40 = vector.broadcast %39 : vector<1x8x8xf32> to vector<2x8x8xf32>
      %41 = arith.addf %38, %40 : vector<2x8x8xf32>
      %cst_22 = arith.constant dense<0xFF800000> : vector<2x8xf32>
      %42 = vector.multi_reduction <maximumf>, %41, %cst_22 [2] : vector<2x8x8xf32> to vector<2x8xf32>
      %43 = vector.shape_cast %42 : vector<2x8xf32> to vector<2x8x1xf32>
      %44 = vector.broadcast %43 : vector<2x8x1xf32> to vector<2x8x8xf32>
      %45 = arith.subf %41, %44 : vector<2x8x8xf32>
      %46 = math.exp %45 : vector<2x8x8xf32>
      %cst_23 = arith.constant dense<0.000000e+00> : vector<2x8xf32>
      %47 = vector.multi_reduction <add>, %46, %cst_23 [2] : vector<2x8x8xf32> to vector<2x8xf32>
      %48 = vector.shape_cast %47 : vector<2x8xf32> to vector<2x8x1xf32>
      %49 = tpu.reciprocal %48 {approx = true} : vector<2x8x1xf32> -> vector<2x8x1xf32>
      %50 = vector.broadcast %49 : vector<2x8x1xf32> to vector<2x8x8xf32>
      %51 = arith.mulf %46, %50 : vector<2x8x8xf32>
      %52 = arith.truncf %51 : vector<2x8x8xf32> to vector<2x8x8xbf16>
      "tpu.trace_start"() <{level = 10 : i32, message = "bqk,bkd->bqd"}> : () -> ()
      %cst_24 = arith.constant dense<0.000000e+00> : vector<2x8x128xf32>
      %53 = tpu.matmul %52, %37, %cst_24 {dimension_numbers = #tpu.dot_dimension_numbers<[2], [1], [1], [2], [0, 0, 0, 1, 1, 2], [0], [0]>} : vector<2x8x8xbf16>, vector<2x8x128xbf16>, vector<2x8x128xf32> -> vector<2x8x128xf32>
      "tpu.trace_stop"() : () -> ()
      %54 = vector.shape_cast %53 : vector<2x8x128xf32> to vector<16x128xf32>
      %55 = arith.truncf %54 : vector<16x128xf32> to vector<16x128xbf16>
      %56 = vector.extract_strided_slice %22 {offsets = [0, 128], sizes = [16, 128], strides = [1, 1]} : vector<16x1152xf32> to vector<16x128xf32>
      %57 = vector.extract_strided_slice %22 {offsets = [0, 512], sizes = [16, 128], strides = [1, 1]} : vector<16x1152xf32> to vector<16x128xf32>
      %58 = vector.extract_strided_slice %22 {offsets = [0, 896], sizes = [16, 128], strides = [1, 1]} : vector<16x1152xf32> to vector<16x128xf32>
      %59 = vector.shape_cast %56 : vector<16x128xf32> to vector<2x8x128xf32>
      %60 = arith.truncf %59 : vector<2x8x128xf32> to vector<2x8x128xbf16>
      %61 = vector.shape_cast %57 : vector<16x128xf32> to vector<2x8x128xf32>
      %62 = arith.truncf %61 : vector<2x8x128xf32> to vector<2x8x128xbf16>
      %63 = vector.shape_cast %58 : vector<16x128xf32> to vector<2x8x128xf32>
      %64 = arith.truncf %63 : vector<2x8x128xf32> to vector<2x8x128xbf16>
      "tpu.trace_start"() <{level = 10 : i32, message = "bqd,bkd->bqk"}> : () -> ()
      %cst_25 = arith.constant dense<0.000000e+00> : vector<2x8x8xf32>
      %65 = tpu.matmul %60, %62, %cst_25 {dimension_numbers = #tpu.dot_dimension_numbers<[2], [2], [1], [1], [0, 0, 0, 1, 1, 1], [0], [0]>} : vector<2x8x128xbf16>, vector<2x8x128xbf16>, vector<2x8x8xf32> -> vector<2x8x8xf32>
      "tpu.trace_stop"() : () -> ()
      %66 = vector.shape_cast %28 : vector<8x8xf32> to vector<1x8x8xf32>
      %67 = vector.broadcast %66 : vector<1x8x8xf32> to vector<2x8x8xf32>
      %68 = arith.addf %65, %67 : vector<2x8x8xf32>
      %cst_26 = arith.constant dense<0xFF800000> : vector<2x8xf32>
      %69 = vector.multi_reduction <maximumf>, %68, %cst_26 [2] : vector<2x8x8xf32> to vector<2x8xf32>
      %70 = vector.shape_cast %69 : vector<2x8xf32> to vector<2x8x1xf32>
      %71 = vector.broadcast %70 : vector<2x8x1xf32> to vector<2x8x8xf32>
      %72 = arith.subf %68, %71 : vector<2x8x8xf32>
      %73 = math.exp %72 : vector<2x8x8xf32>
      %cst_27 = arith.constant dense<0.000000e+00> : vector<2x8xf32>
      %74 = vector.multi_reduction <add>, %73, %cst_27 [2] : vector<2x8x8xf32> to vector<2x8xf32>
      %75 = vector.shape_cast %74 : vector<2x8xf32> to vector<2x8x1xf32>
      %76 = tpu.reciprocal %75 {approx = true} : vector<2x8x1xf32> -> vector<2x8x1xf32>
      %77 = vector.broadcast %76 : vector<2x8x1xf32> to vector<2x8x8xf32>
      %78 = arith.mulf %73, %77 : vector<2x8x8xf32>
      %79 = arith.truncf %78 : vector<2x8x8xf32> to vector<2x8x8xbf16>
      "tpu.trace_start"() <{level = 10 : i32, message = "bqk,bkd->bqd"}> : () -> ()
      %cst_28 = arith.constant dense<0.000000e+00> : vector<2x8x128xf32>
      %80 = tpu.matmul %79, %64, %cst_28 {dimension_numbers = #tpu.dot_dimension_numbers<[2], [1], [1], [2], [0, 0, 0, 1, 1, 2], [0], [0]>} : vector<2x8x8xbf16>, vector<2x8x128xbf16>, vector<2x8x128xf32> -> vector<2x8x128xf32>
      "tpu.trace_stop"() : () -> ()
      %81 = vector.shape_cast %80 : vector<2x8x128xf32> to vector<16x128xf32>
      %82 = arith.truncf %81 : vector<16x128xf32> to vector<16x128xbf16>
      %83 = vector.extract_strided_slice %22 {offsets = [0, 256], sizes = [16, 128], strides = [1, 1]} : vector<16x1152xf32> to vector<16x128xf32>
      %84 = vector.extract_strided_slice %22 {offsets = [0, 640], sizes = [16, 128], strides = [1, 1]} : vector<16x1152xf32> to vector<16x128xf32>
      %85 = vector.extract_strided_slice %22 {offsets = [0, 1024], sizes = [16, 128], strides = [1, 1]} : vector<16x1152xf32> to vector<16x128xf32>
      %86 = vector.shape_cast %83 : vector<16x128xf32> to vector<2x8x128xf32>
      %87 = arith.truncf %86 : vector<2x8x128xf32> to vector<2x8x128xbf16>
      %88 = vector.shape_cast %84 : vector<16x128xf32> to vector<2x8x128xf32>
      %89 = arith.truncf %88 : vector<2x8x128xf32> to vector<2x8x128xbf16>
      %90 = vector.shape_cast %85 : vector<16x128xf32> to vector<2x8x128xf32>
      %91 = arith.truncf %90 : vector<2x8x128xf32> to vector<2x8x128xbf16>
      "tpu.trace_start"() <{level = 10 : i32, message = "bqd,bkd->bqk"}> : () -> ()
      %cst_29 = arith.constant dense<0.000000e+00> : vector<2x8x8xf32>
      %92 = tpu.matmul %87, %89, %cst_29 {dimension_numbers = #tpu.dot_dimension_numbers<[2], [2], [1], [1], [0, 0, 0, 1, 1, 1], [0], [0]>} : vector<2x8x128xbf16>, vector<2x8x128xbf16>, vector<2x8x8xf32> -> vector<2x8x8xf32>
      "tpu.trace_stop"() : () -> ()
      %93 = vector.shape_cast %28 : vector<8x8xf32> to vector<1x8x8xf32>
      %94 = vector.broadcast %93 : vector<1x8x8xf32> to vector<2x8x8xf32>
      %95 = arith.addf %92, %94 : vector<2x8x8xf32>
      %cst_30 = arith.constant dense<0xFF800000> : vector<2x8xf32>
      %96 = vector.multi_reduction <maximumf>, %95, %cst_30 [2] : vector<2x8x8xf32> to vector<2x8xf32>
      %97 = vector.shape_cast %96 : vector<2x8xf32> to vector<2x8x1xf32>
      %98 = vector.broadcast %97 : vector<2x8x1xf32> to vector<2x8x8xf32>
      %99 = arith.subf %95, %98 : vector<2x8x8xf32>
      %100 = math.exp %99 : vector<2x8x8xf32>
      %cst_31 = arith.constant dense<0.000000e+00> : vector<2x8xf32>
      %101 = vector.multi_reduction <add>, %100, %cst_31 [2] : vector<2x8x8xf32> to vector<2x8xf32>
      %102 = vector.shape_cast %101 : vector<2x8xf32> to vector<2x8x1xf32>
      %103 = tpu.reciprocal %102 {approx = true} : vector<2x8x1xf32> -> vector<2x8x1xf32>
      %104 = vector.broadcast %103 : vector<2x8x1xf32> to vector<2x8x8xf32>
      %105 = arith.mulf %100, %104 : vector<2x8x8xf32>
      %106 = arith.truncf %105 : vector<2x8x8xf32> to vector<2x8x8xbf16>
      "tpu.trace_start"() <{level = 10 : i32, message = "bqk,bkd->bqd"}> : () -> ()
      %cst_32 = arith.constant dense<0.000000e+00> : vector<2x8x128xf32>
      %107 = tpu.matmul %106, %91, %cst_32 {dimension_numbers = #tpu.dot_dimension_numbers<[2], [1], [1], [2], [0, 0, 0, 1, 1, 2], [0], [0]>} : vector<2x8x8xbf16>, vector<2x8x128xbf16>, vector<2x8x128xf32> -> vector<2x8x128xf32>
      "tpu.trace_stop"() : () -> ()
      %108 = vector.shape_cast %107 : vector<2x8x128xf32> to vector<16x128xf32>
      %109 = arith.truncf %108 : vector<16x128xf32> to vector<16x128xbf16>
      %110 = tpu.concatenate %55, %82, %109 in 1 : vector<16x128xbf16>, vector<16x128xbf16>, vector<16x128xbf16> -> vector<16x384xbf16>
      %c0_33 = arith.constant 0 : index
      %c0_34 = arith.constant 0 : index
      %111 = vector.load %arg6[%c0_33, %c0_34] : memref<384x384xbf16, #tpu.memory_space<vmem>>, vector<384x384xbf16>
      %cst_35 = arith.constant dense<0.000000e+00> : vector<16x384xf32>
      %112 = tpu.matmul %110, %111, %cst_35 {dimension_numbers = #tpu.dot_dimension_numbers<[1], [0], [0], [1], [0, 0, 1, 1], [], []>} : vector<16x384xbf16>, vector<384x384xbf16>, vector<16x384xf32> -> vector<16x384xf32>
      %c0_36 = arith.constant 0 : index
      %c0_37 = arith.constant 0 : index
      %113 = vector.load %arg7[%c0_36, %c0_37] : memref<1x384xf32, #tpu.memory_space<vmem>>, vector<1x384xf32>
      %114 = vector.broadcast %113 : vector<1x384xf32> to vector<16x384xf32>
      %115 = arith.addf %112, %114 : vector<16x384xf32>
      %116 = arith.truncf %115 : vector<16x384xf32> to vector<16x384xbf16>
      %c0_38 = arith.constant 0 : index
      %c0_39 = arith.constant 0 : index
      %117 = vector.load %arg11[%c0_38, %c0_39] : memref<16x384xbf16, #tpu.memory_space<vmem>>, vector<16x384xbf16>
      tpu.vector_store %arg11[%c0_38, %c0_39], %116 {strides = array<i32>} : memref<16x384xbf16, #tpu.memory_space<vmem>>, vector<16x384xbf16>,
    } else {
    }
    %c0 = arith.constant 0 : index
    %c0_1 = arith.constant 0 : index
    %3 = vector.load %arg11[%c0, %c0_1] : memref<16x384xbf16, #tpu.memory_space<vmem>>, vector<16x384xbf16>
    %c0_2 = arith.constant 0 : index
    %c0_3 = arith.constant 0 : index
    %4 = vector.load %arg8[%c0_2, %c0_3] : memref<384x64xbf16, #tpu.memory_space<vmem>>, vector<384x64xbf16>
    %cst = arith.constant dense<0.000000e+00> : vector<16x64xf32>
    %5 = tpu.matmul %3, %4, %cst {dimension_numbers = #tpu.dot_dimension_numbers<[1], [0], [0], [1], [0, 0, 1, 1], [], []>} : vector<16x384xbf16>, vector<384x64xbf16>, vector<16x64xf32> -> vector<16x64xf32>
    %c0_4 = arith.constant 0 : index
    %c0_5 = arith.constant 0 : index
    %6 = vector.load %arg9[%c0_4, %c0_5] : memref<1x64xf32, #tpu.memory_space<vmem>>, vector<1x64xf32>
    %7 = vector.broadcast %6 : vector<1x64xf32> to vector<16x64xf32>
    %8 = arith.addf %5, %7 : vector<16x64xf32>
    %9 = vector.shape_cast %8 : vector<16x64xf32> to vector<2x8x64xf32>
    %10 = arith.truncf %9 : vector<2x8x64xf32> to vector<2x8x64xbf16>
    %c0_6 = arith.constant 0 : index
    %c0_7 = arith.constant 0 : index
    %c0_8 = arith.constant 0 : index
    %11 = vector.load %arg10[%c0_6, %c0_7, %c0_8] : memref<2x8x64xbf16, #tpu.memory_space<vmem>>, vector<2x8x64xbf16>
    tpu.vector_store %arg10[%c0_6, %c0_7, %c0_8], %10 {strides = array<i32>} : memref<2x8x64xbf16, #tpu.memory_space<vmem>>, vector<2x8x64xbf16>,
    return
  }
  func.func @transform_0(%arg0: i32, %arg1: i32) -> (i32, i32, i32) {
    %c0_i32 = arith.constant 0 : i32
    %c0_i32_0 = arith.constant 0 : i32
    %c0_i32_1 = arith.constant 0 : i32
    return %arg0, %c0_i32, %c0_i32_0 : i32, i32, i32
  }
  func.func @transform_1(%arg0: i32, %arg1: i32) -> (i32, i32) {
    %c0_i32 = arith.constant 0 : i32
    %c0_i32_0 = arith.constant 0 : i32
    %c0_i32_1 = arith.constant 0 : i32
    return %c0_i32, %c0_i32_0 : i32, i32
  }
  func.func @transform_2(%arg0: i32, %arg1: i32) -> (i32, i32) {
    %c0_i32 = arith.constant 0 : i32
    %c0_i32_0 = arith.constant 0 : i32
    %c0_i32_1 = arith.constant 0 : i32
    return %c0_i32, %c0_i32_0 : i32, i32
  }
  func.func @transform_3(%arg0: i32, %arg1: i32) -> (i32, i32) {
    %c0_i32 = arith.constant 0 : i32
    %c0_i32_0 = arith.constant 0 : i32
    %c0_i32_1 = arith.constant 0 : i32
    return %c0_i32, %c0_i32_0 : i32, i32
  }
  func.func @transform_4(%arg0: i32, %arg1: i32) -> (i32, i32) {
    %c0_i32 = arith.constant 0 : i32
    %c0_i32_0 = arith.constant 0 : i32
    %c0_i32_1 = arith.constant 0 : i32
    return %c0_i32, %c0_i32_0 : i32, i32
  }
  func.func @transform_5(%arg0: i32, %arg1: i32) -> (i32, i32) {
    %c0_i32 = arith.constant 0 : i32
    %c0_i32_0 = arith.constant 0 : i32
    %c0_i32_1 = arith.constant 0 : i32
    return %c0_i32, %c0_i32_0 : i32, i32
  }
  func.func @transform_6(%arg0: i32, %arg1: i32) -> (i32, i32) {
    %c0_i32 = arith.constant 0 : i32
    %c0_i32_0 = arith.constant 0 : i32
    return %c0_i32, %arg1 : i32, i32
  }
  func.func @transform_7(%arg0: i32, %arg1: i32) -> (i32, i32) {
    %c0_i32 = arith.constant 0 : i32
    %c0_i32_0 = arith.constant 0 : i32
    return %c0_i32, %arg1 : i32, i32
  }
  func.func @transform_8(%arg0: i32, %arg1: i32) -> (i32, i32, i32) {
    %c0_i32 = arith.constant 0 : i32
    %c0_i32_0 = arith.constant 0 : i32
    return %arg0, %c0_i32, %arg1 : i32, i32, i32
  }
}

</mosaic_0001>

<llo_original>
// kernel: tpu_custom_call.1
$region0: #{tpu_custom_call.1}
  #allocation0 [shape = 'u32[]', space=smem, size = 0x4, offset = 0x4, fixed_abs, tag = 'smem constant byte address 0x4 - core index']
  #allocation1 [shape = 'u32[144,128]{1,0:T(1,128)}', space=vmem, size = 0x12000, scoped, tag = 'internal scratch']
  #allocation2 [shape = 'bf16[16,384]{1,0:T(16,128)(2,1)}', space=vmem, size = 0x3000, scoped, tag = 'scratch operand']
  %s0 = inlined_call_operand.vmem [shape: bf16[2,8,384], index: 0, kind: input, shape index: {}]
  %s1 = inlined_call_operand.vmem [shape: bf16[8,384], index: 1, kind: input, shape index: {}]
  %s2 = inlined_call_operand.hbm [shape: bf16[384,1152], index: 2, kind: input, shape index: {}]
  %s3 = inlined_call_operand.vmem [shape: f32[1,1152], index: 3, kind: input, shape index: {}]
  %s4 = inlined_call_operand.hbm [shape: bf16[384,384], index: 4, kind: input, shape index: {}]
  %s5 = inlined_call_operand.vmem [shape: f32[1,384], index: 5, kind: input, shape index: {}]
  %s6 = inlined_call_operand.vmem [shape: bf16[384,64], index: 6, kind: input, shape index: {}]
  %s7 = inlined_call_operand.vmem [shape: f32[1,64], index: 7, kind: input, shape index: {}]
  %s8 = inlined_call_operand.hbm [shape: bf16[2,8,64], index: 8, kind: output, shape index: {}]
  %s9 = sld [smem:[#allocation0]]
  $region54: #{tpu_custom_call.1} parent=0
    _
  %s11 = ssub.s32 1, %s9
  %s12 = scalar_select 0, %s11, %s9
  $region1: #{tpu_custom_call.1} parent=0
    #allocation3 [shape = 'u8[884736]{0}', space=vmem, size = 0xd8000, scoped, tag = 'input window, operand 2, single buffered']
    #allocation4 [shape = 's32[1]{0}', space=sflag, size = 0x4, scoped, tag = 'scoped memory for tpu_custom_call.1']
    #allocation5 [shape = 's32[1]{0}', space=sflag, size = 0x4, scoped, tag = 'scoped memory for tpu_custom_call.1']
    #allocation6 [shape = 'u8[294912]{0}', space=vmem, size = 0x48000, scoped, tag = 'input window, operand 4, single buffered']
    #allocation7 [shape = 's32[1]{0}', space=sflag, size = 0x4, scoped, tag = 'scoped memory for tpu_custom_call.1']
    #allocation8 [shape = 'u8[4096]{0}', space=vmem, size = 0x1000, scoped, tag = 'output window, operand 0, single buffered']
    %13 = vsyncpa [#allocation4], 0
    %14 = vsyncpa [#allocation7], 0
    %15 = vsyncpa [#allocation5], 0
    // Predicated region
    $region2: #{tpu_custom_call.1} parent=1 // pred_check
      _
    $region3: #{tpu_custom_call.1} parent=1 // pred_check_branch
      %17 = sbr.rel (0) target = $region5
    $region4: #{tpu_custom_call.1} parent=1 // pred_region
      _
    $region5: #{tpu_custom_call.1} parent=1 // pred_fallthru
      _
    // Predicated region
    $region6: #{tpu_custom_call.1} parent=1 // pred_check
      _
    $region7: #{tpu_custom_call.1} parent=1 // pred_check_branch
      %19 = sbr.rel (0) target = $region9
    $region8: #{tpu_custom_call.1} parent=1 // pred_region
      _
    $region9: #{tpu_custom_call.1} parent=1 // pred_fallthru
      _
    // Predicated region
    $region10: #{tpu_custom_call.1} parent=1 // pred_check
      _
    $region11: #{tpu_custom_call.1} parent=1 // pred_check_branch
      %21 = sbr.rel (0) target = $region13
    $region12: #{tpu_custom_call.1} parent=1 // pred_region
      %s23 = ssub.s32 27648, 27648
      %24 = vsyncadd [#allocation4], %s23
      %s25 = sshll.u32 [#allocation3], 4
      %s26 = int_to_ptr.vmem [resolvable:$true] %s25
      %31 = dma.hbm_to_vmem [thread:$0]  %s2, 27648, %s26, [#allocation4], 576, 576, 36
    $region13: #{tpu_custom_call.1} parent=1 // pred_fallthru
      _
    // Predicated region
    $region14: #{tpu_custom_call.1} parent=1 // pred_check
      _
    $region15: #{tpu_custom_call.1} parent=1 // pred_check_branch
      %33 = sbr.rel (0) target = $region17
    $region16: #{tpu_custom_call.1} parent=1 // pred_region
      _
    $region17: #{tpu_custom_call.1} parent=1 // pred_fallthru
      _
    // Predicated region
    $region18: #{tpu_custom_call.1} parent=1 // pred_check
      _
    $region19: #{tpu_custom_call.1} parent=1 // pred_check_branch
      %35 = sbr.rel (0) target = $region21
    $region20: #{tpu_custom_call.1} parent=1 // pred_region
      %s37 = ssub.s32 9216, 9216
      %38 = vsyncadd [#allocation7], %s37
      %s39 = sshll.u32 [#allocation6], 4
      %s40 = int_to_ptr.vmem [resolvable:$true] %s39
      %45 = dma.hbm_to_vmem [thread:$0]  %s4, 9216, %s40, [#allocation7], 192, 192, 12
    $region21: #{tpu_custom_call.1} parent=1 // pred_fallthru
      _
    // Predicated region
    $region22: #{tpu_custom_call.1} parent=1 // pred_check
      _
    $region23: #{tpu_custom_call.1} parent=1 // pred_check_branch
      %47 = sbr.rel (0) target = $region25
    $region24: #{tpu_custom_call.1} parent=1 // pred_region
      _
    $region25: #{tpu_custom_call.1} parent=1 // pred_fallthru
      _
    // Predicated region
    $region26: #{tpu_custom_call.1} parent=1 // pred_check
      _
    $region27: #{tpu_custom_call.1} parent=1 // pred_check_branch
      %49 = sbr.rel (0) target = $region29
    $region28: #{tpu_custom_call.1} parent=1 // pred_region
      _
    $region29: #{tpu_custom_call.1} parent=1 // pred_fallthru
      _
    // Predicated region
    $region30: #{tpu_custom_call.1} parent=1 // pred_check
      _
    $region31: #{tpu_custom_call.1} parent=1 // pred_check_branch
      %51 = sbr.rel (0) target = $region33
    $region32: #{tpu_custom_call.1} parent=1 // pred_region
      _
    $region33: #{tpu_custom_call.1} parent=1 // pred_fallthru
      _
    // Predicated region
    $region34: #{tpu_custom_call.1} parent=1 // pred_check
      _
    $region35: #{tpu_custom_call.1} parent=1 // pred_check_branch
      %53 = sbr.rel (0) target = $region37
    $region36: #{tpu_custom_call.1} parent=1 // pred_region
      %54 = dma.done [#allocation4], 27648
    $region37: #{tpu_custom_call.1} parent=1 // pred_fallthru
      _
    // Predicated region
    $region38: #{tpu_custom_call.1} parent=1 // pred_check
      _
    $region39: #{tpu_custom_call.1} parent=1 // pred_check_branch
      %56 = sbr.rel (0) target = $region41
    $region40: #{tpu_custom_call.1} parent=1 // pred_region
      %57 = dma.done [#allocation7], 9216
    $region41: #{tpu_custom_call.1} parent=1 // pred_fallthru
      _
    %p59 = scmp.eq.s32.totalorder 0, 0
    // Predicated region
    $region42: #{tpu_custom_call.1} parent=1 // pred_check
      %p60 = pneg %p59
    $region43: #{tpu_custom_call.1} parent=1 // pred_check_branch
      %62 = sbr.rel (%p60) target = $region45
    $region44: #{tpu_custom_call.1} parent=1 // pred_region
      %v63 = vld [vmem:[%s0] sm:$0xff]
      %v64 = vld [vmem:[%s0 + $0x8] sm:$0xf]
      %v65 = vld [vmem:[%s0 + $0xc] sm:$0xff]
      %v66 = vld [vmem:[%s0 + $0x14] sm:$0xf]
      %v67 = vld [vmem:[%s1] sm:$0xff]
      %v68 = vld [vmem:[%s1 + $0x8] sm:$0xf]
      %v69 = vadd.bf16 %v63, %v67
      %v70 = vadd.bf16 %v64, %v68
      %v71 = vadd.bf16 %v65, %v67
      %v72 = vadd.bf16 %v66, %v68
      %v73 = vld [vmem:[#allocation3] sm:$0xff]
      %v74 = vld [vmem:[#allocation3 + $0x8] sm:$0xff]
      %v75 = vld [vmem:[#allocation3 + $0x10] sm:$0xff]
      %v76 = vld [vmem:[#allocation3 + $0x18] sm:$0xff]
      %v77 = vld [vmem:[#allocation3 + $0x20] sm:$0xf]
      %v78 = vld [vmem:[#allocation3 + $0x24] sm:$0xff]
      %v79 = vld [vmem:[#allocation3 + $0x2c] sm:$0xff]
      %v80 = vld [vmem:[#allocation3 + $0x34] sm:$0xff]
      %v81 = vld [vmem:[#allocation3 + $0x3c] sm:$0xff]
      %v82 = vld [vmem:[#allocation3 + $0x44] sm:$0xf]
      %v83 = vld [vmem:[#allocation3 + $0x48] sm:$0xff]
      %v84 = vld [vmem:[#allocation3 + $0x50] sm:$0xff]
      %v85 = vld [vmem:[#allocation3 + $0x58] sm:$0xff]
      %v86 = vld [vmem:[#allocation3 + $0x60] sm:$0xff]
      %v87 = vld [vmem:[#allocation3 + $0x68] sm:$0xf]
      %v88 = vld [vmem:[#allocation3 + $0x6c] sm:$0xff]
      %v89 = vld [vmem:[#allocation3 + $0x74] sm:$0xff]
      %v90 = vld [vmem:[#allocation3 + $0x7c] sm:$0xff]
      %v91 = vld [vmem:[#allocation3 + $0x84] sm:$0xff]
      %v92 = vld [vmem:[#allocation3 + $0x8c] sm:$0xf]
      %v93 = vld [vmem:[#allocation3 + $0x90] sm:$0xff]
      %v94 = vld [vmem:[#allocation3 + $0x98] sm:$0xff]
      %v95 = vld [vmem:[#allocation3 + $0xa0] sm:$0xff]
      %v96 = vld [vmem:[#allocation3 + $0xa8] sm:$0xff]
      %v97 = vld [vmem:[#allocation3 + $0xb0] sm:$0xf]
      %v98 = vld [vmem:[#allocation3 + $0xb4] sm:$0xff]
      %v99 = vld [vmem:[#allocation3 + $0xbc] sm:$0xff]
      %v100 = vld [vmem:[#allocation3 + $0xc4] sm:$0xff]
      %v101 = vld [vmem:[#allocation3 + $0xcc] sm:$0xff]
      %v102 = vld [vmem:[#allocation3 + $0xd4] sm:$0xf]
      %v103 = vld [vmem:[#allocation3 + $0xd8] sm:$0xff]
      %v104 = vld [vmem:[#allocation3 + $0xe0] sm:$0xff]
      %v105 = vld [vmem:[#allocation3 + $0xe8] sm:$0xff]
      %v106 = vld [vmem:[#allocation3 + $0xf0] sm:$0xff]
      %v107 = vld [vmem:[#allocation3 + $0xf8] sm:$0xf]
      %v108 = vld [vmem:[#allocation3 + $0xfc] sm:$0xff]
      %v109 = vld [vmem:[#allocation3 + $0x104] sm:$0xff]
      %v110 = vld [vmem:[#allocation3 + $0x10c] sm:$0xff]
      %v111 = vld [vmem:[#allocation3 + $0x114] sm:$0xff]
      %v112 = vld [vmem:[#allocation3 + $0x11c] sm:$0xf]
      %v113 = vld [vmem:[#allocation3 + $0x120] sm:$0xff]
      %v114 = vld [vmem:[#allocation3 + $0x128] sm:$0xff]
      %v115 = vld [vmem:[#allocation3 + $0x130] sm:$0xff]
      %v116 = vld [vmem:[#allocation3 + $0x138] sm:$0xff]
      %v117 = vld [vmem:[#allocation3 + $0x140] sm:$0xf]
      %v118 = vld [vmem:[#allocation3 + $0x144] sm:$0xff]
      %v119 = vld [vmem:[#allocation3 + $0x14c] sm:$0xff]
      %v120 = vld [vmem:[#allocation3 + $0x154] sm:$0xff]
      %v121 = vld [vmem:[#allocation3 + $0x15c] sm:$0xff]
      %v122 = vld [vmem:[#allocation3 + $0x164] sm:$0xf]
      %v123 = vld [vmem:[#allocation3 + $0x168] sm:$0xff]
      %v124 = vld [vmem:[#allocation3 + $0x170] sm:$0xff]
      %v125 = vld [vmem:[#allocation3 + $0x178] sm:$0xff]
      %v126 = vld [vmem:[#allocation3 + $0x180] sm:$0xff]
      %v127 = vld [vmem:[#allocation3 + $0x188] sm:$0xf]
      %v128 = vld [vmem:[#allocation3 + $0x18c] sm:$0xff]
      %v129 = vld [vmem:[#allocation3 + $0x194] sm:$0xff]
      %v130 = vld [vmem:[#allocation3 + $0x19c] sm:$0xff]
      %v131 = vld [vmem:[#allocation3 + $0x1a4] sm:$0xff]
      %v132 = vld [vmem:[#allocation3 + $0x1ac] sm:$0xf]
      %v133 = vld [vmem:[#allocation3 + $0x1b0] sm:$0xff]
      %v134 = vld [vmem:[#allocation3 + $0x1b8] sm:$0xff]
      %v135 = vld [vmem:[#allocation3 + $0x1c0] sm:$0xff]
      %v136 = vld [vmem:[#allocation3 + $0x1c8] sm:$0xff]
      %v137 = vld [vmem:[#allocation3 + $0x1d0] sm:$0xf]
      %v138 = vld [vmem:[#allocation3 + $0x1d4] sm:$0xff]
      %v139 = vld [vmem:[#allocation3 + $0x1dc] sm:$0xff]
      %v140 = vld [vmem:[#allocation3 + $0x1e4] sm:$0xff]
      %v141 = vld [vmem:[#allocation3 + $0x1ec] sm:$0xff]
      %v142 = vld [vmem:[#allocation3 + $0x1f4] sm:$0xf]
      %v143 = vld [vmem:[#allocation3 + $0x1f8] sm:$0xff]
      %v144 = vld [vmem:[#allocation3 + $0x200] sm:$0xff]
      %v145 = vld [vmem:[#allocation3 + $0x208] sm:$0xff]
      %v146 = vld [vmem:[#allocation3 + $0x210] sm:$0xff]
      %v147 = vld [vmem:[#allocation3 + $0x218] sm:$0xf]
      %v148 = vld [vmem:[#allocation3 + $0x21c] sm:$0xff]
      %v149 = vld [vmem:[#allocation3 + $0x224] sm:$0xff]
      %v150 = vld [vmem:[#allocation3 + $0x22c] sm:$0xff]
      %v151 = vld [vmem:[#allocation3 + $0x234] sm:$0xff]
      %v152 = vld [vmem:[#allocation3 + $0x23c] sm:$0xf]
      %v153 = vld [vmem:[#allocation3 + $0x240] sm:$0xff]
      %v154 = vld [vmem:[#allocation3 + $0x248] sm:$0xff]
      %v155 = vld [vmem:[#allocation3 + $0x250] sm:$0xff]
      %v156 = vld [vmem:[#allocation3 + $0x258] sm:$0xff]
      %v157 = vld [vmem:[#allocation3 + $0x260] sm:$0xf]
      %v158 = vld [vmem:[#allocation3 + $0x264] sm:$0xff]
      %v159 = vld [vmem:[#allocation3 + $0x26c] sm:$0xff]
      %v160 = vld [vmem:[#allocation3 + $0x274] sm:$0xff]
      %v161 = vld [vmem:[#allocation3 + $0x27c] sm:$0xff]
      %v162 = vld [vmem:[#allocation3 + $0x284] sm:$0xf]
      %v163 = vld [vmem:[#allocation3 + $0x288] sm:$0xff]
      %v164 = vld [vmem:[#allocation3 + $0x290] sm:$0xff]
      %v165 = vld [vmem:[#allocation3 + $0x298] sm:$0xff]
      %v166 = vld [vmem:[#allocation3 + $0x2a0] sm:$0xff]
      %v167 = vld [vmem:[#allocation3 + $0x2a8] sm:$0xf]
      %v168 = vld [vmem:[#allocation3 + $0x2ac] sm:$0xff]
      %v169 = vld [vmem:[#allocation3 + $0x2b4] sm:$0xff]
      %v170 = vld [vmem:[#allocation3 + $0x2bc] sm:$0xff]
      %v171 = vld [vmem:[#allocation3 + $0x2c4] sm:$0xff]
      %v172 = vld [vmem:[#allocation3 + $0x2cc] sm:$0xf]
      %v173 = vld [vmem:[#allocation3 + $0x2d0] sm:$0xff]
      %v174 = vld [vmem:[#allocation3 + $0x2d8] sm:$0xff]
      %v175 = vld [vmem:[#allocation3 + $0x2e0] sm:$0xff]
      %v176 = vld [vmem:[#allocation3 + $0x2e8] sm:$0xff]
      %v177 = vld [vmem:[#allocation3 + $0x2f0] sm:$0xf]
      %v178 = vld [vmem:[#allocation3 + $0x2f4] sm:$0xff]
      %v179 = vld [vmem:[#allocation3 + $0x2fc] sm:$0xff]
      %v180 = vld [vmem:[#allocation3 + $0x304] sm:$0xff]
      %v181 = vld [vmem:[#allocation3 + $0x30c] sm:$0xff]
      %v182 = vld [vmem:[#allocation3 + $0x314] sm:$0xf]
      %v183 = vld [vmem:[#allocation3 + $0x318] sm:$0xff]
      %v184 = vld [vmem:[#allocation3 + $0x320] sm:$0xff]
      %v185 = vld [vmem:[#allocation3 + $0x328] sm:$0xff]
      %v186 = vld [vmem:[#allocation3 + $0x330] sm:$0xff]
      %v187 = vld [vmem:[#allocation3 + $0x338] sm:$0xf]
      %v188 = vld [vmem:[#allocation3 + $0x33c] sm:$0xff]
      %v189 = vld [vmem:[#allocation3 + $0x344] sm:$0xff]
      %v190 = vld [vmem:[#allocation3 + $0x34c] sm:$0xff]
      %v191 = vld [vmem:[#allocation3 + $0x354] sm:$0xff]
      %v192 = vld [vmem:[#allocation3 + $0x35c] sm:$0xf]
      %v193 = vld [vmem:[#allocation3 + $0x360] sm:$0xff]
      %v194 = vld [vmem:[#allocation3 + $0x368] sm:$0xff]
      %v195 = vld [vmem:[#allocation3 + $0x370] sm:$0xff]
      %v196 = vld [vmem:[#allocation3 + $0x378] sm:$0xff]
      %v197 = vld [vmem:[#allocation3 + $0x380] sm:$0xf]
      %v198 = vld [vmem:[#allocation3 + $0x384] sm:$0xff]
      %v199 = vld [vmem:[#allocation3 + $0x38c] sm:$0xff]
      %v200 = vld [vmem:[#allocation3 + $0x394] sm:$0xff]
      %v201 = vld [vmem:[#allocation3 + $0x39c] sm:$0xff]
      %v202 = vld [vmem:[#allocation3 + $0x3a4] sm:$0xf]
      %v203 = vld [vmem:[#allocation3 + $0x3a8] sm:$0xff]
      %v204 = vld [vmem:[#allocation3 + $0x3b0] sm:$0xff]
      %v205 = vld [vmem:[#allocation3 + $0x3b8] sm:$0xff]
      %v206 = vld [vmem:[#allocation3 + $0x3c0] sm:$0xff]
      %v207 = vld [vmem:[#allocation3 + $0x3c8] sm:$0xf]
      %v208 = vld [vmem:[#allocation3 + $0x3cc] sm:$0xff]
      %v209 = vld [vmem:[#allocation3 + $0x3d4] sm:$0xff]
      %v210 = vld [vmem:[#allocation3 + $0x3dc] sm:$0xff]
      %v211 = vld [vmem:[#allocation3 + $0x3e4] sm:$0xff]
      %v212 = vld [vmem:[#allocation3 + $0x3ec] sm:$0xf]
      %v213 = vld [vmem:[#allocation3 + $0x3f0] sm:$0xff]
      %v214 = vld [vmem:[#allocation3 + $0x3f8] sm:$0xff]
      %v215 = vld [vmem:[#allocation3 + $0x400] sm:$0xff]
      %v216 = vld [vmem:[#allocation3 + $0x408] sm:$0xff]
      %v217 = vld [vmem:[#allocation3 + $0x410] sm:$0xf]
      %v218 = vld [vmem:[#allocation3 + $0x414] sm:$0xff]
      %v219 = vld [vmem:[#allocation3 + $0x41c] sm:$0xff]
      %v220 = vld [vmem:[#allocation3 + $0x424] sm:$0xff]
      %v221 = vld [vmem:[#allocation3 + $0x42c] sm:$0xff]
      %v222 = vld [vmem:[#allocation3 + $0x434] sm:$0xf]
      %v223 = vld [vmem:[#allocation3 + $0x438] sm:$0xff]
      %v224 = vld [vmem:[#allocation3 + $0x440] sm:$0xff]
      %v225 = vld [vmem:[#allocation3 + $0x448] sm:$0xff]
      %v226 = vld [vmem:[#allocation3 + $0x450] sm:$0xff]
      %v227 = vld [vmem:[#allocation3 + $0x458] sm:$0xf]
      %v228 = vld [vmem:[#allocation3 + $0x45c] sm:$0xff]
      %v229 = vld [vmem:[#allocation3 + $0x464] sm:$0xff]
      %v230 = vld [vmem:[#allocation3 + $0x46c] sm:$0xff]
      %v231 = vld [vmem:[#allocation3 + $0x474] sm:$0xff]
      %v232 = vld [vmem:[#allocation3 + $0x47c] sm:$0xf]
      %v233 = vld [vmem:[#allocation3 + $0x480] sm:$0xff]
      %v234 = vld [vmem:[#allocation3 + $0x488] sm:$0xff]
      %v235 = vld [vmem:[#allocation3 + $0x490] sm:$0xff]
      %v236 = vld [vmem:[#allocation3 + $0x498] sm:$0xff]
      %v237 = vld [vmem:[#allocation3 + $0x4a0] sm:$0xf]
      %v238 = vld [vmem:[#allocation3 + $0x4a4] sm:$0xff]
      %v239 = vld [vmem:[#allocation3 + $0x4ac] sm:$0xff]
      %v240 = vld [vmem:[#allocation3 + $0x4b4] sm:$0xff]
      %v241 = vld [vmem:[#allocation3 + $0x4bc] sm:$0xff]
      %v242 = vld [vmem:[#allocation3 + $0x4c4] sm:$0xf]
      %v243 = vld [vmem:[#allocation3 + $0x4c8] sm:$0xff]
      %v244 = vld [vmem:[#allocation3 + $0x4d0] sm:$0xff]
      %v245 = vld [vmem:[#allocation3 + $0x4d8] sm:$0xff]
      %v246 = vld [vmem:[#allocation3 + $0x4e0] sm:$0xff]
      %v247 = vld [vmem:[#allocation3 + $0x4e8] sm:$0xf]
      %v248 = vld [vmem:[#allocation3 + $0x4ec] sm:$0xff]
      %v249 = vld [vmem:[#allocation3 + $0x4f4] sm:$0xff]
      %v250 = vld [vmem:[#allocation3 + $0x4fc] sm:$0xff]
      %v251 = vld [vmem:[#allocation3 + $0x504] sm:$0xff]
      %v252 = vld [vmem:[#allocation3 + $0x50c] sm:$0xf]
      %v253 = vld [vmem:[#allocation3 + $0x510] sm:$0xff]
      %v254 = vld [vmem:[#allocation3 + $0x518] sm:$0xff]
      %v255 = vld [vmem:[#allocation3 + $0x520] sm:$0xff]
      %v256 = vld [vmem:[#allocation3 + $0x528] sm:$0xff]
      %v257 = vld [vmem:[#allocation3 + $0x530] sm:$0xf]
      %v258 = vld [vmem:[#allocation3 + $0x534] sm:$0xff]
      %v259 = vld [vmem:[#allocation3 + $0x53c] sm:$0xff]
      %v260 = vld [vmem:[#allocation3 + $0x544] sm:$0xff]
      %v261 = vld [vmem:[#allocation3 + $0x54c] sm:$0xff]
      %v262 = vld [vmem:[#allocation3 + $0x554] sm:$0xf]
      %v263 = vld [vmem:[#allocation3 + $0x558] sm:$0xff]
      %v264 = vld [vmem:[#allocation3 + $0x560] sm:$0xff]
      %v265 = vld [vmem:[#allocation3 + $0x568] sm:$0xff]
      %v266 = vld [vmem:[#allocation3 + $0x570] sm:$0xff]
      %v267 = vld [vmem:[#allocation3 + $0x578] sm:$0xf]
      %v268 = vld [vmem:[#allocation3 + $0x57c] sm:$0xff]
      %v269 = vld [vmem:[#allocation3 + $0x584] sm:$0xff]
      %v270 = vld [vmem:[#allocation3 + $0x58c] sm:$0xff]
      %v271 = vld [vmem:[#allocation3 + $0x594] sm:$0xff]
      %v272 = vld [vmem:[#allocation3 + $0x59c] sm:$0xf]
      %v273 = vld [vmem:[#allocation3 + $0x5a0] sm:$0xff]
      %v274 = vld [vmem:[#allocation3 + $0x5a8] sm:$0xff]
      %v275 = vld [vmem:[#allocation3 + $0x5b0] sm:$0xff]
      %v276 = vld [vmem:[#allocation3 + $0x5b8] sm:$0xff]
      %v277 = vld [vmem:[#allocation3 + $0x5c0] sm:$0xf]
      %v278 = vld [vmem:[#allocation3 + $0x5c4] sm:$0xff]
      %v279 = vld [vmem:[#allocation3 + $0x5cc] sm:$0xff]
      %v280 = vld [vmem:[#allocation3 + $0x5d4] sm:$0xff]
      %v281 = vld [vmem:[#allocation3 + $0x5dc] sm:$0xff]
      %v282 = vld [vmem:[#allocation3 + $0x5e4] sm:$0xf]
      %v283 = vld [vmem:[#allocation3 + $0x5e8] sm:$0xff]
      %v284 = vld [vmem:[#allocation3 + $0x5f0] sm:$0xff]
      %v285 = vld [vmem:[#allocation3 + $0x5f8] sm:$0xff]
      %v286 = vld [vmem:[#allocation3 + $0x600] sm:$0xff]
      %v287 = vld [vmem:[#allocation3 + $0x608] sm:$0xf]
      %v288 = vld [vmem:[#allocation3 + $0x60c] sm:$0xff]
      %v289 = vld [vmem:[#allocation3 + $0x614] sm:$0xff]
      %v290 = vld [vmem:[#allocation3 + $0x61c] sm:$0xff]
      %v291 = vld [vmem:[#allocation3 + $0x624] sm:$0xff]
      %v292 = vld [vmem:[#allocation3 + $0x62c] sm:$0xf]
      %v293 = vld [vmem:[#allocation3 + $0x630] sm:$0xff]
      %v294 = vld [vmem:[#allocation3 + $0x638] sm:$0xff]
      %v295 = vld [vmem:[#allocation3 + $0x640] sm:$0xff]
      %v296 = vld [vmem:[#allocation3 + $0x648] sm:$0xff]
      %v297 = vld [vmem:[#allocation3 + $0x650] sm:$0xf]
      %v298 = vld [vmem:[#allocation3 + $0x654] sm:$0xff]
      %v299 = vld [vmem:[#allocation3 + $0x65c] sm:$0xff]
      %v300 = vld [vmem:[#allocation3 + $0x664] sm:$0xff]
      %v301 = vld [vmem:[#allocation3 + $0x66c] sm:$0xff]
      %v302 = vld [vmem:[#allocation3 + $0x674] sm:$0xf]
      %v303 = vld [vmem:[#allocation3 + $0x678] sm:$0xff]
      %v304 = vld [vmem:[#allocation3 + $0x680] sm:$0xff]
      %v305 = vld [vmem:[#allocation3 + $0x688] sm:$0xff]
      %v306 = vld [vmem:[#allocation3 + $0x690] sm:$0xff]
      %v307 = vld [vmem:[#allocation3 + $0x698] sm:$0xf]
      %v308 = vld [vmem:[#allocation3 + $0x69c] sm:$0xff]
      %v309 = vld [vmem:[#allocation3 + $0x6a4] sm:$0xff]
      %v310 = vld [vmem:[#allocation3 + $0x6ac] sm:$0xff]
      %v311 = vld [vmem:[#allocation3 + $0x6b4] sm:$0xff]
      %v312 = vld [vmem:[#allocation3 + $0x6bc] sm:$0xf]
      %v313 = vld [vmem:[%s3] sm:$0xff]
      %v314 = vld [vmem:[%s3 + $0x8] sm:$0x1]
      %v317 = vlaneseq
      %v318 = vshrl.u32 %v317, 7
      %v319 = vsub.s32 0, %v318
      %v320 = vrot.slane %v313, %v319
      %v321 = vlaneseq
      %v322 = vshrl.u32 %v321, 7
      %v323 = vsub.s32 1, %v322
      %v324 = vrot.slane %v313, %v323
      %v325 = vlaneseq
      %v326 = vshrl.u32 %v325, 7
      %v327 = vsub.s32 2, %v326
      %v328 = vrot.slane %v313, %v327
      %v329 = vlaneseq
      %v330 = vshrl.u32 %v329, 7
      %v331 = vsub.s32 3, %v330
      %v332 = vrot.slane %v313, %v331
      %v333 = vlaneseq
      %v334 = vshrl.u32 %v333, 7
      %v335 = vsub.s32 4, %v334
      %v336 = vrot.slane %v313, %v335
      %v337 = vlaneseq
      %v338 = vshrl.u32 %v337, 7
      %v339 = vsub.s32 5, %v338
      %v340 = vrot.slane %v313, %v339
      %v341 = vlaneseq
      %v342 = vshrl.u32 %v341, 7
      %v343 = vsub.s32 6, %v342
      %v344 = vrot.slane %v313, %v343
      %v345 = vlaneseq
      %v346 = vshrl.u32 %v345, 7
      %v347 = vsub.s32 7, %v346
      %v348 = vrot.slane %v313, %v347
      %v349 = vlaneseq
      %v350 = vshrl.u32 %v349, 7
      %v351 = vsub.s32 0, %v350
      %v352 = vrot.slane %v314, %v351
      %v366 = vunpack.c.l.b16 %v69
      %v367 = vunpack.c.h.b16 %v69
      %v368 = vunpack.c.l.b16 %v70
      %v369 = vunpack.c.l.b16 %v71
      %v370 = vunpack.c.h.b16 %v71
      %v371 = vunpack.c.l.b16 %v72
      %v372 = vpack.c.b16 %v369, %v366
      %v373 = vpack.c.b16 %v370, %v367
      %v374 = vpack.c.b16 %v371, %v368
      %v618 = vunpack.c.l.b16 %v73
      %v619 = vunpack.c.h.b16 %v73
      %v620 = vunpack.c.l.b16 %v74
      %v621 = vunpack.c.h.b16 %v74
      %v622 = vunpack.c.l.b16 %v75
      %v623 = vunpack.c.h.b16 %v75
      %v624 = vunpack.c.l.b16 %v76
      %v625 = vunpack.c.h.b16 %v76
      %v626 = vunpack.c.l.b16 %v77
      %v627 = vunpack.c.l.b16 %v78
      %v628 = vunpack.c.h.b16 %v78
      %v629 = vunpack.c.l.b16 %v79
      %v630 = vunpack.c.h.b16 %v79
      %v631 = vunpack.c.l.b16 %v80
      %v632 = vunpack.c.h.b16 %v80
      %v633 = vunpack.c.l.b16 %v81
      %v634 = vunpack.c.h.b16 %v81
      %v635 = vunpack.c.l.b16 %v82
      %v636 = vunpack.c.l.b16 %v83
      %v637 = vunpack.c.h.b16 %v83
      %v638 = vunpack.c.l.b16 %v84
      %v639 = vunpack.c.h.b16 %v84
      %v640 = vunpack.c.l.b16 %v85
      %v641 = vunpack.c.h.b16 %v85
      %v642 = vunpack.c.l.b16 %v86
      %v643 = vunpack.c.h.b16 %v86
      %v644 = vunpack.c.l.b16 %v87
      %v645 = vunpack.c.l.b16 %v88
      %v646 = vunpack.c.h.b16 %v88
      %v647 = vunpack.c.l.b16 %v89
      %v648 = vunpack.c.h.b16 %v89
      %v649 = vunpack.c.l.b16 %v90
      %v650 = vunpack.c.h.b16 %v90
      %v651 = vunpack.c.l.b16 %v91
      %v652 = vunpack.c.h.b16 %v91
      %v653 = vunpack.c.l.b16 %v92
      %v654 = vunpack.c.l.b16 %v93
      %v655 = vunpack.c.h.b16 %v93
      %v656 = vunpack.c.l.b16 %v94
      %v657 = vunpack.c.h.b16 %v94
      %v658 = vunpack.c.l.b16 %v95
      %v659 = vunpack.c.h.b16 %v95
      %v660 = vunpack.c.l.b16 %v96
      %v661 = vunpack.c.h.b16 %v96
      %v662 = vunpack.c.l.b16 %v97
      %v663 = vunpack.c.l.b16 %v98
      %v664 = vunpack.c.h.b16 %v98
      %v665 = vunpack.c.l.b16 %v99
      %v666 = vunpack.c.h.b16 %v99
      %v667 = vunpack.c.l.b16 %v100
      %v668 = vunpack.c.h.b16 %v100
      %v669 = vunpack.c.l.b16 %v101
      %v670 = vunpack.c.h.b16 %v101
      %v671 = vunpack.c.l.b16 %v102
      %v672 = vunpack.c.l.b16 %v103
      %v673 = vunpack.c.h.b16 %v103
      %v674 = vunpack.c.l.b16 %v104
      %v675 = vunpack.c.h.b16 %v104
      %v676 = vunpack.c.l.b16 %v105
      %v677 = vunpack.c.h.b16 %v105
      %v678 = vunpack.c.l.b16 %v106
      %v679 = vunpack.c.h.b16 %v106
      %v680 = vunpack.c.l.b16 %v107
      %v681 = vunpack.c.l.b16 %v108
      %v682 = vunpack.c.h.b16 %v108
      %v683 = vunpack.c.l.b16 %v109
      %v684 = vunpack.c.h.b16 %v109
      %v685 = vunpack.c.l.b16 %v110
      %v686 = vunpack.c.h.b16 %v110
      %v687 = vunpack.c.l.b16 %v111
      %v688 = vunpack.c.h.b16 %v111
      %v689 = vunpack.c.l.b16 %v112
      %v690 = vunpack.c.l.b16 %v113
      %v691 = vunpack.c.h.b16 %v113
      %v692 = vunpack.c.l.b16 %v114
      %v693 = vunpack.c.h.b16 %v114
      %v694 = vunpack.c.l.b16 %v115
      %v695 = vunpack.c.h.b16 %v115
      %v696 = vunpack.c.l.b16 %v116
      %v697 = vunpack.c.h.b16 %v116
      %v698 = vunpack.c.l.b16 %v117
      %v699 = vunpack.c.l.b16 %v118
      %v700 = vunpack.c.h.b16 %v118
      %v701 = vunpack.c.l.b16 %v119
      %v702 = vunpack.c.h.b16 %v119
      %v703 = vunpack.c.l.b16 %v120
      %v704 = vunpack.c.h.b16 %v120
      %v705 = vunpack.c.l.b16 %v121
      %v706 = vunpack.c.h.b16 %v121
      %v707 = vunpack.c.l.b16 %v122
      %v708 = vunpack.c.l.b16 %v123
      %v709 = vunpack.c.h.b16 %v123
      %v710 = vunpack.c.l.b16 %v124
      %v711 = vunpack.c.h.b16 %v124
      %v712 = vunpack.c.l.b16 %v125
      %v713 = vunpack.c.h.b16 %v125
      %v714 = vunpack.c.l.b16 %v126
      %v715 = vunpack.c.h.b16 %v126
      %v716 = vunpack.c.l.b16 %v127
      %v717 = vunpack.c.l.b16 %v128
      %v718 = vunpack.c.h.b16 %v128
      %v719 = vunpack.c.l.b16 %v129
      %v720 = vunpack.c.h.b16 %v129
      %v721 = vunpack.c.l.b16 %v130
      %v722 = vunpack.c.h.b16 %v130
      %v723 = vunpack.c.l.b16 %v131
      %v724 = vunpack.c.h.b16 %v131
      %v725 = vunpack.c.l.b16 %v132
      %v726 = vunpack.c.l.b16 %v133
      %v727 = vunpack.c.h.b16 %v133
      %v728 = vunpack.c.l.b16 %v134
      %v729 = vunpack.c.h.b16 %v134
      %v730 = vunpack.c.l.b16 %v135
      %v731 = vunpack.c.h.b16 %v135
      %v732 = vunpack.c.l.b16 %v136
      %v733 = vunpack.c.h.b16 %v136
      %v734 = vunpack.c.l.b16 %v137
      %v735 = vunpack.c.l.b16 %v138
      %v736 = vunpack.c.h.b16 %v138
      %v737 = vunpack.c.l.b16 %v139
      %v738 = vunpack.c.h.b16 %v139
      %v739 = vunpack.c.l.b16 %v140
      %v740 = vunpack.c.h.b16 %v140
      %v741 = vunpack.c.l.b16 %v141
      %v742 = vunpack.c.h.b16 %v141
      %v743 = vunpack.c.l.b16 %v142
      %v744 = vunpack.c.l.b16 %v143
      %v745 = vunpack.c.h.b16 %v143
      %v746 = vunpack.c.l.b16 %v144
      %v747 = vunpack.c.h.b16 %v144
      %v748 = vunpack.c.l.b16 %v145
      %v749 = vunpack.c.h.b16 %v145
      %v750 = vunpack.c.l.b16 %v146
      %v751 = vunpack.c.h.b16 %v146
      %v752 = vunpack.c.l.b16 %v147
      %v753 = vunpack.c.l.b16 %v148
      %v754 = vunpack.c.h.b16 %v148
      %v755 = vunpack.c.l.b16 %v149
      %v756 = vunpack.c.h.b16 %v149
      %v757 = vunpack.c.l.b16 %v150
      %v758 = vunpack.c.h.b16 %v150
      %v759 = vunpack.c.l.b16 %v151
      %v760 = vunpack.c.h.b16 %v151
      %v761 = vunpack.c.l.b16 %v152
      %v762 = vunpack.c.l.b16 %v153
      %v763 = vunpack.c.h.b16 %v153
      %v764 = vunpack.c.l.b16 %v154
      %v765 = vunpack.c.h.b16 %v154
      %v766 = vunpack.c.l.b16 %v155
      %v767 = vunpack.c.h.b16 %v155
      %v768 = vunpack.c.l.b16 %v156
      %v769 = vunpack.c.h.b16 %v156
      %v770 = vunpack.c.l.b16 %v157
      %v771 = vunpack.c.l.b16 %v158
      %v772 = vunpack.c.h.b16 %v158
      %v773 = vunpack.c.l.b16 %v159
      %v774 = vunpack.c.h.b16 %v159
      %v775 = vunpack.c.l.b16 %v160
      %v776 = vunpack.c.h.b16 %v160
      %v777 = vunpack.c.l.b16 %v161
      %v778 = vunpack.c.h.b16 %v161
      %v779 = vunpack.c.l.b16 %v162
      %v780 = vunpack.c.l.b16 %v163
      %v781 = vunpack.c.h.b16 %v163
      %v782 = vunpack.c.l.b16 %v164
      %v783 = vunpack.c.h.b16 %v164
      %v784 = vunpack.c.l.b16 %v165
      %v785 = vunpack.c.h.b16 %v165
      %v786 = vunpack.c.l.b16 %v166
      %v787 = vunpack.c.h.b16 %v166
      %v788 = vunpack.c.l.b16 %v167
      %v789 = vunpack.c.l.b16 %v168
      %v790 = vunpack.c.h.b16 %v168
      %v791 = vunpack.c.l.b16 %v169
      %v792 = vunpack.c.h.b16 %v169
      %v793 = vunpack.c.l.b16 %v170
      %v794 = vunpack.c.h.b16 %v170
      %v795 = vunpack.c.l.b16 %v171
      %v796 = vunpack.c.h.b16 %v171
      %v797 = vunpack.c.l.b16 %v172
      %v798 = vunpack.c.l.b16 %v173
      %v799 = vunpack.c.h.b16 %v173
      %v800 = vunpack.c.l.b16 %v174
      %v801 = vunpack.c.h.b16 %v174
      %v802 = vunpack.c.l.b16 %v175
      %v803 = vunpack.c.h.b16 %v175
      %v804 = vunpack.c.l.b16 %v176
      %v805 = vunpack.c.h.b16 %v176
      %v806 = vunpack.c.l.b16 %v177
      %v807 = vunpack.c.l.b16 %v178
      %v808 = vunpack.c.h.b16 %v178
      %v809 = vunpack.c.l.b16 %v179
      %v810 = vunpack.c.h.b16 %v179
      %v811 = vunpack.c.l.b16 %v180
      %v812 = vunpack.c.h.b16 %v180
      %v813 = vunpack.c.l.b16 %v181
      %v814 = vunpack.c.h.b16 %v181
      %v815 = vunpack.c.l.b16 %v182
      %v816 = vunpack.c.l.b16 %v183
      %v817 = vunpack.c.h.b16 %v183
      %v818 = vunpack.c.l.b16 %v184
      %v819 = vunpack.c.h.b16 %v184
      %v820 = vunpack.c.l.b16 %v185
      %v821 = vunpack.c.h.b16 %v185
      %v822 = vunpack.c.l.b16 %v186
      %v823 = vunpack.c.h.b16 %v186
      %v824 = vunpack.c.l.b16 %v187
      %v825 = vunpack.c.l.b16 %v188
      %v826 = vunpack.c.h.b16 %v188
      %v827 = vunpack.c.l.b16 %v189
      %v828 = vunpack.c.h.b16 %v189
      %v829 = vunpack.c.l.b16 %v190
      %v830 = vunpack.c.h.b16 %v190
      %v831 = vunpack.c.l.b16 %v191
      %v832 = vunpack.c.h.b16 %v191
      %v833 = vunpack.c.l.b16 %v192
      %v834 = vunpack.c.l.b16 %v193
      %v835 = vunpack.c.h.b16 %v193
      %v836 = vunpack.c.l.b16 %v194
      %v837 = vunpack.c.h.b16 %v194
      %v838 = vunpack.c.l.b16 %v195
      %v839 = vunpack.c.h.b16 %v195
      %v840 = vunpack.c.l.b16 %v196
      %v841 = vunpack.c.h.b16 %v196
      %v842 = vunpack.c.l.b16 %v197
      %v843 = vunpack.c.l.b16 %v198
      %v844 = vunpack.c.h.b16 %v198
      %v845 = vunpack.c.l.b16 %v199
      %v846 = vunpack.c.h.b16 %v199
      %v847 = vunpack.c.l.b16 %v200
      %v848 = vunpack.c.h.b16 %v200
      %v849 = vunpack.c.l.b16 %v201
      %v850 = vunpack.c.h.b16 %v201
      %v851 = vunpack.c.l.b16 %v202
      %v852 = vunpack.c.l.b16 %v203
      %v853 = vunpack.c.h.b16 %v203
      %v854 = vunpack.c.l.b16 %v204
      %v855 = vunpack.c.h.b16 %v204
      %v856 = vunpack.c.l.b16 %v205
      %v857 = vunpack.c.h.b16 %v205
      %v858 = vunpack.c.l.b16 %v206
      %v859 = vunpack.c.h.b16 %v206
      %v860 = vunpack.c.l.b16 %v207
      %v861 = vunpack.c.l.b16 %v208
      %v862 = vunpack.c.h.b16 %v208
      %v863 = vunpack.c.l.b16 %v209
      %v864 = vunpack.c.h.b16 %v209
      %v865 = vunpack.c.l.b16 %v210
      %v866 = vunpack.c.h.b16 %v210
      %v867 = vunpack.c.l.b16 %v211
      %v868 = vunpack.c.h.b16 %v211
      %v869 = vunpack.c.l.b16 %v212
      %v870 = vunpack.c.l.b16 %v213
      %v871 = vunpack.c.h.b16 %v213
      %v872 = vunpack.c.l.b16 %v214
      %v873 = vunpack.c.h.b16 %v214
      %v874 = vunpack.c.l.b16 %v215
      %v875 = vunpack.c.h.b16 %v215
      %v876 = vunpack.c.l.b16 %v216
      %v877 = vunpack.c.h.b16 %v216
      %v878 = vunpack.c.l.b16 %v217
      %v879 = vunpack.c.l.b16 %v218
      %v880 = vunpack.c.h.b16 %v218
      %v881 = vunpack.c.l.b16 %v219
      %v882 = vunpack.c.h.b16 %v219
      %v883 = vunpack.c.l.b16 %v220
      %v884 = vunpack.c.h.b16 %v220
      %v885 = vunpack.c.l.b16 %v221
      %v886 = vunpack.c.h.b16 %v221
      %v887 = vunpack.c.l.b16 %v222
      %v888 = vunpack.c.l.b16 %v223
      %v889 = vunpack.c.h.b16 %v223
      %v890 = vunpack.c.l.b16 %v224
      %v891 = vunpack.c.h.b16 %v224
      %v892 = vunpack.c.l.b16 %v225
      %v893 = vunpack.c.h.b16 %v225
      %v894 = vunpack.c.l.b16 %v226
      %v895 = vunpack.c.h.b16 %v226
      %v896 = vunpack.c.l.b16 %v227
      %v897 = vunpack.c.l.b16 %v228
      %v898 = vunpack.c.h.b16 %v228
      %v899 = vunpack.c.l.b16 %v229
      %v900 = vunpack.c.h.b16 %v229
      %v901 = vunpack.c.l.b16 %v230
      %v902 = vunpack.c.h.b16 %v230
      %v903 = vunpack.c.l.b16 %v231
      %v904 = vunpack.c.h.b16 %v231
      %v905 = vunpack.c.l.b16 %v232
      %v906 = vunpack.c.l.b16 %v233
      %v907 = vunpack.c.h.b16 %v233
      %v908 = vunpack.c.l.b16 %v234
      %v909 = vunpack.c.h.b16 %v234
      %v910 = vunpack.c.l.b16 %v235
      %v911 = vunpack.c.h.b16 %v235
      %v912 = vunpack.c.l.b16 %v236
      %v913 = vunpack.c.h.b16 %v236
      %v914 = vunpack.c.l.b16 %v237
      %v915 = vunpack.c.l.b16 %v238
      %v916 = vunpack.c.h.b16 %v238
      %v917 = vunpack.c.l.b16 %v239
      %v918 = vunpack.c.h.b16 %v239
      %v919 = vunpack.c.l.b16 %v240
      %v920 = vunpack.c.h.b16 %v240
      %v921 = vunpack.c.l.b16 %v241
      %v922 = vunpack.c.h.b16 %v241
      %v923 = vunpack.c.l.b16 %v242
      %v924 = vunpack.c.l.b16 %v243
      %v925 = vunpack.c.h.b16 %v243
      %v926 = vunpack.c.l.b16 %v244
      %v927 = vunpack.c.h.b16 %v244
      %v928 = vunpack.c.l.b16 %v245
      %v929 = vunpack.c.h.b16 %v245
      %v930 = vunpack.c.l.b16 %v246
      %v931 = vunpack.c.h.b16 %v246
      %v932 = vunpack.c.l.b16 %v247
      %v933 = vunpack.c.l.b16 %v248
      %v934 = vunpack.c.h.b16 %v248
      %v935 = vunpack.c.l.b16 %v249
      %v936 = vunpack.c.h.b16 %v249
      %v937 = vunpack.c.l.b16 %v250
      %v938 = vunpack.c.h.b16 %v250
      %v939 = vunpack.c.l.b16 %v251
      %v940 = vunpack.c.h.b16 %v251
      %v941 = vunpack.c.l.b16 %v252
      %v942 = vunpack.c.l.b16 %v253
      %v943 = vunpack.c.h.b16 %v253
      %v944 = vunpack.c.l.b16 %v254
      %v945 = vunpack.c.h.b16 %v254
      %v946 = vunpack.c.l.b16 %v255
      %v947 = vunpack.c.h.b16 %v255
      %v948 = vunpack.c.l.b16 %v256
      %v949 = vunpack.c.h.b16 %v256
      %v950 = vunpack.c.l.b16 %v257
      %v951 = vunpack.c.l.b16 %v258
      %v952 = vunpack.c.h.b16 %v258
      %v953 = vunpack.c.l.b16 %v259
      %v954 = vunpack.c.h.b16 %v259
      %v955 = vunpack.c.l.b16 %v260
      %v956 = vunpack.c.h.b16 %v260
      %v957 = vunpack.c.l.b16 %v261
      %v958 = vunpack.c.h.b16 %v261
      %v959 = vunpack.c.l.b16 %v262
      %v960 = vunpack.c.l.b16 %v263
      %v961 = vunpack.c.h.b16 %v263
      %v962 = vunpack.c.l.b16 %v264
      %v963 = vunpack.c.h.b16 %v264
      %v964 = vunpack.c.l.b16 %v265
      %v965 = vunpack.c.h.b16 %v265
      %v966 = vunpack.c.l.b16 %v266
      %v967 = vunpack.c.h.b16 %v266
      %v968 = vunpack.c.l.b16 %v267
      %v969 = vunpack.c.l.b16 %v268
      %v970 = vunpack.c.h.b16 %v268
      %v971 = vunpack.c.l.b16 %v269
      %v972 = vunpack.c.h.b16 %v269
      %v973 = vunpack.c.l.b16 %v270
      %v974 = vunpack.c.h.b16 %v270
      %v975 = vunpack.c.l.b16 %v271
      %v976 = vunpack.c.h.b16 %v271
      %v977 = vunpack.c.l.b16 %v272
      %v978 = vunpack.c.l.b16 %v273
      %v979 = vunpack.c.h.b16 %v273
      %v980 = vunpack.c.l.b16 %v274
      %v981 = vunpack.c.h.b16 %v274
      %v982 = vunpack.c.l.b16 %v275
      %v983 = vunpack.c.h.b16 %v275
      %v984 = vunpack.c.l.b16 %v276
      %v985 = vunpack.c.h.b16 %v276
      %v986 = vunpack.c.l.b16 %v277
      %v987 = vunpack.c.l.b16 %v278
      %v988 = vunpack.c.h.b16 %v278
      %v989 = vunpack.c.l.b16 %v279
      %v990 = vunpack.c.h.b16 %v279
      %v991 = vunpack.c.l.b16 %v280
      %v992 = vunpack.c.h.b16 %v280
      %v993 = vunpack.c.l.b16 %v281
      %v994 = vunpack.c.h.b16 %v281
      %v995 = vunpack.c.l.b16 %v282
      %v996 = vunpack.c.l.b16 %v283
      %v997 = vunpack.c.h.b16 %v283
      %v998 = vunpack.c.l.b16 %v284
      %v999 = vunpack.c.h.b16 %v284
      %v1000 = vunpack.c.l.b16 %v285
      %v1001 = vunpack.c.h.b16 %v285
      %v1002 = vunpack.c.l.b16 %v286
      %v1003 = vunpack.c.h.b16 %v286
      %v1004 = vunpack.c.l.b16 %v287
      %v1005 = vunpack.c.l.b16 %v288
      %v1006 = vunpack.c.h.b16 %v288
      %v1007 = vunpack.c.l.b16 %v289
      %v1008 = vunpack.c.h.b16 %v289
      %v1009 = vunpack.c.l.b16 %v290
      %v1010 = vunpack.c.h.b16 %v290
      %v1011 = vunpack.c.l.b16 %v291
      %v1012 = vunpack.c.h.b16 %v291
      %v1013 = vunpack.c.l.b16 %v292
      %v1014 = vunpack.c.l.b16 %v293
      %v1015 = vunpack.c.h.b16 %v293
      %v1016 = vunpack.c.l.b16 %v294
      %v1017 = vunpack.c.h.b16 %v294
      %v1018 = vunpack.c.l.b16 %v295
      %v1019 = vunpack.c.h.b16 %v295
      %v1020 = vunpack.c.l.b16 %v296
      %v1021 = vunpack.c.h.b16 %v296
      %v1022 = vunpack.c.l.b16 %v297
      %v1023 = vunpack.c.l.b16 %v298
      %v1024 = vunpack.c.h.b16 %v298
      %v1025 = vunpack.c.l.b16 %v299
      %v1026 = vunpack.c.h.b16 %v299
      %v1027 = vunpack.c.l.b16 %v300
      %v1028 = vunpack.c.h.b16 %v300
      %v1029 = vunpack.c.l.b16 %v301
      %v1030 = vunpack.c.h.b16 %v301
      %v1031 = vunpack.c.l.b16 %v302
      %v1032 = vunpack.c.l.b16 %v303
      %v1033 = vunpack.c.h.b16 %v303
      %v1034 = vunpack.c.l.b16 %v304
      %v1035 = vunpack.c.h.b16 %v304
      %v1036 = vunpack.c.l.b16 %v305
      %v1037 = vunpack.c.h.b16 %v305
      %v1038 = vunpack.c.l.b16 %v306
      %v1039 = vunpack.c.h.b16 %v306
      %v1040 = vunpack.c.l.b16 %v307
      %v1041 = vunpack.c.l.b16 %v308
      %v1042 = vunpack.c.h.b16 %v308
      %v1043 = vunpack.c.l.b16 %v309
      %v1044 = vunpack.c.h.b16 %v309
      %v1045 = vunpack.c.l.b16 %v310
      %v1046 = vunpack.c.h.b16 %v310
      %v1047 = vunpack.c.l.b16 %v311
      %v1048 = vunpack.c.h.b16 %v311
      %v1049 = vunpack.c.l.b16 %v312
      %v1050 = vpack.c.b16 %v627, %v618
      %v1051 = vpack.c.b16 %v628, %v619
      %v1052 = vpack.c.b16 %v629, %v620
      %v1053 = vpack.c.b16 %v630, %v621
      %v1054 = vpack.c.b16 %v631, %v622
      %v1055 = vpack.c.b16 %v632, %v623
      %v1056 = vpack.c.b16 %v633, %v624
      %v1057 = vpack.c.b16 %v634, %v625
      %v1058 = vpack.c.b16 %v635, %v626
      %v1059 = vpack.c.b16 %v645, %v636
      %v1060 = vpack.c.b16 %v646, %v637
      %v1061 = vpack.c.b16 %v647, %v638
      %v1062 = vpack.c.b16 %v648, %v639
      %v1063 = vpack.c.b16 %v649, %v640
      %v1064 = vpack.c.b16 %v650, %v641
      %v1065 = vpack.c.b16 %v651, %v642
      %v1066 = vpack.c.b16 %v652, %v643
      %v1067 = vpack.c.b16 %v653, %v644
      %v1068 = vpack.c.b16 %v663, %v654
      %v1069 = vpack.c.b16 %v664, %v655
      %v1070 = vpack.c.b16 %v665, %v656
      %v1071 = vpack.c.b16 %v666, %v657
      %v1072 = vpack.c.b16 %v667, %v658
      %v1073 = vpack.c.b16 %v668, %v659
      %v1074 = vpack.c.b16 %v669, %v660
      %v1075 = vpack.c.b16 %v670, %v661
      %v1076 = vpack.c.b16 %v671, %v662
      %v1077 = vpack.c.b16 %v681, %v672
      %v1078 = vpack.c.b16 %v682, %v673
      %v1079 = vpack.c.b16 %v683, %v674
      %v1080 = vpack.c.b16 %v684, %v675
      %v1081 = vpack.c.b16 %v685, %v676
      %v1082 = vpack.c.b16 %v686, %v677
      %v1083 = vpack.c.b16 %v687, %v678
      %v1084 = vpack.c.b16 %v688, %v679
      %v1085 = vpack.c.b16 %v689, %v680
      %v1086 = vpack.c.b16 %v699, %v690
      %v1087 = vpack.c.b16 %v700, %v691
      %v1088 = vpack.c.b16 %v701, %v692
      %v1089 = vpack.c.b16 %v702, %v693
      %v1090 = vpack.c.b16 %v703, %v694
      %v1091 = vpack.c.b16 %v704, %v695
      %v1092 = vpack.c.b16 %v705, %v696
      %v1093 = vpack.c.b16 %v706, %v697
      %v1094 = vpack.c.b16 %v707, %v698
      %v1095 = vpack.c.b16 %v717, %v708
      %v1096 = vpack.c.b16 %v718, %v709
      %v1097 = vpack.c.b16 %v719, %v710
      %v1098 = vpack.c.b16 %v720, %v711
      %v1099 = vpack.c.b16 %v721, %v712
      %v1100 = vpack.c.b16 %v722, %v713
      %v1101 = vpack.c.b16 %v723, %v714
      %v1102 = vpack.c.b16 %v724, %v715
      %v1103 = vpack.c.b16 %v725, %v716
      %v1104 = vpack.c.b16 %v735, %v726
      %v1105 = vpack.c.b16 %v736, %v727
      %v1106 = vpack.c.b16 %v737, %v728
      %v1107 = vpack.c.b16 %v738, %v729
      %v1108 = vpack.c.b16 %v739, %v730
      %v1109 = vpack.c.b16 %v740, %v731
      %v1110 = vpack.c.b16 %v741, %v732
      %v1111 = vpack.c.b16 %v742, %v733
      %v1112 = vpack.c.b16 %v743, %v734
      %v1113 = vpack.c.b16 %v753, %v744
      %v1114 = vpack.c.b16 %v754, %v745
      %v1115 = vpack.c.b16 %v755, %v746
      %v1116 = vpack.c.b16 %v756, %v747
      %v1117 = vpack.c.b16 %v757, %v748
      %v1118 = vpack.c.b16 %v758, %v749
      %v1119 = vpack.c.b16 %v759, %v750
      %v1120 = vpack.c.b16 %v760, %v751
      %v1121 = vpack.c.b16 %v761, %v752
      %v1122 = vpack.c.b16 %v771, %v762
      %v1123 = vpack.c.b16 %v772, %v763
      %v1124 = vpack.c.b16 %v773, %v764
      %v1125 = vpack.c.b16 %v774, %v765
      %v1126 = vpack.c.b16 %v775, %v766
      %v1127 = vpack.c.b16 %v776, %v767
      %v1128 = vpack.c.b16 %v777, %v768
      %v1129 = vpack.c.b16 %v778, %v769
      %v1130 = vpack.c.b16 %v779, %v770
      %v1131 = vpack.c.b16 %v789, %v780
      %v1132 = vpack.c.b16 %v790, %v781
      %v1133 = vpack.c.b16 %v791, %v782
      %v1134 = vpack.c.b16 %v792, %v783
      %v1135 = vpack.c.b16 %v793, %v784
      %v1136 = vpack.c.b16 %v794, %v785
      %v1137 = vpack.c.b16 %v795, %v786
      %v1138 = vpack.c.b16 %v796, %v787
      %v1139 = vpack.c.b16 %v797, %v788
      %v1140 = vpack.c.b16 %v807, %v798
      %v1141 = vpack.c.b16 %v808, %v799
      %v1142 = vpack.c.b16 %v809, %v800
      %v1143 = vpack.c.b16 %v810, %v801
      %v1144 = vpack.c.b16 %v811, %v802
      %v1145 = vpack.c.b16 %v812, %v803
      %v1146 = vpack.c.b16 %v813, %v804
      %v1147 = vpack.c.b16 %v814, %v805
      %v1148 = vpack.c.b16 %v815, %v806
      %v1149 = vpack.c.b16 %v825, %v816
      %v1150 = vpack.c.b16 %v826, %v817
      %v1151 = vpack.c.b16 %v827, %v818
      %v1152 = vpack.c.b16 %v828, %v819
      %v1153 = vpack.c.b16 %v829, %v820
      %v1154 = vpack.c.b16 %v830, %v821
      %v1155 = vpack.c.b16 %v831, %v822
      %v1156 = vpack.c.b16 %v832, %v823
      %v1157 = vpack.c.b16 %v833, %v824
      %v1158 = vpack.c.b16 %v843, %v834
      %v1159 = vpack.c.b16 %v844, %v835
      %v1160 = vpack.c.b16 %v845, %v836
      %v1161 = vpack.c.b16 %v846, %v837
      %v1162 = vpack.c.b16 %v847, %v838
      %v1163 = vpack.c.b16 %v848, %v839
      %v1164 = vpack.c.b16 %v849, %v840
      %v1165 = vpack.c.b16 %v850, %v841
      %v1166 = vpack.c.b16 %v851, %v842
      %v1167 = vpack.c.b16 %v861, %v852
      %v1168 = vpack.c.b16 %v862, %v853
      %v1169 = vpack.c.b16 %v863, %v854
      %v1170 = vpack.c.b16 %v864, %v855
      %v1171 = vpack.c.b16 %v865, %v856
      %v1172 = vpack.c.b16 %v866, %v857
      %v1173 = vpack.c.b16 %v867, %v858
      %v1174 = vpack.c.b16 %v868, %v859
      %v1175 = vpack.c.b16 %v869, %v860
      %v1176 = vpack.c.b16 %v879, %v870
      %v1177 = vpack.c.b16 %v880, %v871
      %v1178 = vpack.c.b16 %v881, %v872
      %v1179 = vpack.c.b16 %v882, %v873
      %v1180 = vpack.c.b16 %v883, %v874
      %v1181 = vpack.c.b16 %v884, %v875
      %v1182 = vpack.c.b16 %v885, %v876
      %v1183 = vpack.c.b16 %v886, %v877
      %v1184 = vpack.c.b16 %v887, %v878
      %v1185 = vpack.c.b16 %v897, %v888
      %v1186 = vpack.c.b16 %v898, %v889
      %v1187 = vpack.c.b16 %v899, %v890
      %v1188 = vpack.c.b16 %v900, %v891
      %v1189 = vpack.c.b16 %v901, %v892
      %v1190 = vpack.c.b16 %v902, %v893
      %v1191 = vpack.c.b16 %v903, %v894
      %v1192 = vpack.c.b16 %v904, %v895
      %v1193 = vpack.c.b16 %v905, %v896
      %v1194 = vpack.c.b16 %v915, %v906
      %v1195 = vpack.c.b16 %v916, %v907
      %v1196 = vpack.c.b16 %v917, %v908
      %v1197 = vpack.c.b16 %v918, %v909
      %v1198 = vpack.c.b16 %v919, %v910
      %v1199 = vpack.c.b16 %v920, %v911
      %v1200 = vpack.c.b16 %v921, %v912
      %v1201 = vpack.c.b16 %v922, %v913
      %v1202 = vpack.c.b16 %v923, %v914
      %v1203 = vpack.c.b16 %v933, %v924
      %v1204 = vpack.c.b16 %v934, %v925
      %v1205 = vpack.c.b16 %v935, %v926
      %v1206 = vpack.c.b16 %v936, %v927
      %v1207 = vpack.c.b16 %v937, %v928
      %v1208 = vpack.c.b16 %v938, %v929
      %v1209 = vpack.c.b16 %v939, %v930
      %v1210 = vpack.c.b16 %v940, %v931
      %v1211 = vpack.c.b16 %v941, %v932
      %v1212 = vpack.c.b16 %v951, %v942
      %v1213 = vpack.c.b16 %v952, %v943
      %v1214 = vpack.c.b16 %v953, %v944
      %v1215 = vpack.c.b16 %v954, %v945
      %v1216 = vpack.c.b16 %v955, %v946
      %v1217 = vpack.c.b16 %v956, %v947
      %v1218 = vpack.c.b16 %v957, %v948
      %v1219 = vpack.c.b16 %v958, %v949
      %v1220 = vpack.c.b16 %v959, %v950
      %v1221 = vpack.c.b16 %v969, %v960
      %v1222 = vpack.c.b16 %v970, %v961
      %v1223 = vpack.c.b16 %v971, %v962
      %v1224 = vpack.c.b16 %v972, %v963
      %v1225 = vpack.c.b16 %v973, %v964
      %v1226 = vpack.c.b16 %v974, %v965
      %v1227 = vpack.c.b16 %v975, %v966
      %v1228 = vpack.c.b16 %v976, %v967
      %v1229 = vpack.c.b16 %v977, %v968
      %v1230 = vpack.c.b16 %v987, %v978
      %v1231 = vpack.c.b16 %v988, %v979
      %v1232 = vpack.c.b16 %v989, %v980
      %v1233 = vpack.c.b16 %v990, %v981
      %v1234 = vpack.c.b16 %v991, %v982
      %v1235 = vpack.c.b16 %v992, %v983
      %v1236 = vpack.c.b16 %v993, %v984
      %v1237 = vpack.c.b16 %v994, %v985
      %v1238 = vpack.c.b16 %v995, %v986
      %v1239 = vpack.c.b16 %v1005, %v996
      %v1240 = vpack.c.b16 %v1006, %v997
      %v1241 = vpack.c.b16 %v1007, %v998
      %v1242 = vpack.c.b16 %v1008, %v999
      %v1243 = vpack.c.b16 %v1009, %v1000
      %v1244 = vpack.c.b16 %v1010, %v1001
      %v1245 = vpack.c.b16 %v1011, %v1002
      %v1246 = vpack.c.b16 %v1012, %v1003
      %v1247 = vpack.c.b16 %v1013, %v1004
      %v1248 = vpack.c.b16 %v1023, %v1014
      %v1249 = vpack.c.b16 %v1024, %v1015
      %v1250 = vpack.c.b16 %v1025, %v1016
      %v1251 = vpack.c.b16 %v1026, %v1017
      %v1252 = vpack.c.b16 %v1027, %v1018
      %v1253 = vpack.c.b16 %v1028, %v1019
      %v1254 = vpack.c.b16 %v1029, %v1020
      %v1255 = vpack.c.b16 %v1030, %v1021
      %v1256 = vpack.c.b16 %v1031, %v1022
      %v1257 = vpack.c.b16 %v1041, %v1032
      %v1258 = vpack.c.b16 %v1042, %v1033
      %v1259 = vpack.c.b16 %v1043, %v1034
      %v1260 = vpack.c.b16 %v1044, %v1035
      %v1261 = vpack.c.b16 %v1045, %v1036
      %v1262 = vpack.c.b16 %v1046, %v1037
      %v1263 = vpack.c.b16 %v1047, %v1038
      %v1264 = vpack.c.b16 %v1048, %v1039
      %v1265 = vpack.c.b16 %v1049, %v1040
      %1482 = vmatprep.subr.bf16.mxu0 %v1051
      %1483 = vmatpush1.bf16.msra.mxu0 %v1050
      %1484 = vmatprep.subr.bf16.mxu0 %v1060
      %1485 = vmatpush1.bf16.msra.mxu0 %v1059
      %1486 = vmatprep.subr.bf16.mxu0 %v1069
      %1487 = vmatpush1.bf16.msra.mxu0 %v1068
      %1488 = vmatprep.subr.bf16.mxu0 %v1078
      %1489 = vmatpush1.bf16.msra.mxu0 %v1077
      %1490 = vmatprep.subr.bf16.mxu0 %v1087
      %1491 = vmatpush1.bf16.msra.mxu0 %v1086
      %1492 = vmatprep.subr.bf16.mxu0 %v1096
      %1493 = vmatpush1.bf16.msra.mxu0 %v1095
      %1494 = vmatprep.subr.bf16.mxu0 %v1105
      %1495 = vmatpush1.bf16.msra.mxu0 %v1104
      %1496 = vmatprep.subr.bf16.mxu0 %v1114
      %1497 = vmatpush1.bf16.msra.mxu0 %v1113
      %1498 = vmatprep.subr.bf16.mxu0 %v1123
      %1499 = vmatpush1.bf16.msra.mxu0 %v1122
      %1500 = vmatprep.subr.bf16.mxu0 %v1132
      %1501 = vmatpush1.bf16.msra.mxu0 %v1131
      %1502 = vmatprep.subr.bf16.mxu0 %v1141
      %1503 = vmatpush1.bf16.msra.mxu0 %v1140
      %1504 = vmatprep.subr.bf16.mxu0 %v1150
      %1505 = vmatpush1.bf16.msra.mxu0 %v1149
      %1506 = vmatprep.subr.bf16.mxu0 %v1159
      %1507 = vmatpush1.bf16.msra.mxu0 %v1158
      %1508 = vmatprep.subr.bf16.mxu0 %v1168
      %1509 = vmatpush1.bf16.msra.mxu0 %v1167
      %1510 = vmatprep.subr.bf16.mxu0 %v1177
      %1511 = vmatpush1.bf16.msra.mxu0 %v1176
      %1512 = vmatprep.subr.bf16.mxu0 %v1186
      %1513 = vmatpush1.bf16.msra.mxu0 %v1185
      %1514 = vmatprep.mubr.bf16.mxu0 %v373
      %1515 = vmatmul.mubr.bf16.gmra.mrb[0].mxu0 %v372
      %v1516 = vpop.f32.mrb[0].mxu0
      %v1517 = vadd.f32 %v320, %v1516
      %v1518 = vpop.f32.mrb[0].mxu0
      %v1519 = vadd.f32 %v324, %v1518
      %v1520 = vpop.f32.mrb[0].mxu0
      %v1521 = vadd.f32 %v320, %v1520
      %v1522 = vpop.f32.mrb[0].mxu0
      %v1523 = vadd.f32 %v324, %v1522
      %1524 = vdwg.mxu0
      %1525 = vmatprep.subr.bf16.mxu0 %v1195
      %1526 = vmatpush1.bf16.msra.mxu0 %v1194
      %1527 = vmatprep.subr.bf16.mxu0 %v1204
      %1528 = vmatpush1.bf16.msra.mxu0 %v1203
      %1529 = vmatprep.subr.bf16.mxu0 %v1213
      %1530 = vmatpush1.bf16.msra.mxu0 %v1212
      %1531 = vmatprep.subr.bf16.mxu0 %v1222
      %1532 = vmatpush1.bf16.msra.mxu0 %v1221
      %1533 = vmatprep.subr.bf16.mxu0 %v1231
      %1534 = vmatpush1.bf16.msra.mxu0 %v1230
      %1535 = vmatprep.subr.bf16.mxu0 %v1240
      %1536 = vmatpush1.bf16.msra.mxu0 %v1239
      %1537 = vmatprep.subr.bf16.mxu0 %v1249
      %1538 = vmatpush1.bf16.msra.mxu0 %v1248
      %1539 = vmatprep.subr.bf16.mxu0 %v1258
      %1540 = vmatpush1.bf16.msra.mxu0 %v1257
      %1541 = vmatprep.subr.bf16.mxu0 0
      %1542 = vmatpush1.bf16.msra.mxu0 0
      %1543 = vmatprep.subr.bf16.mxu0 0
      %1544 = vmatpush1.bf16.msra.mxu0 0
      %1545 = vmatprep.subr.bf16.mxu0 0
      %1546 = vmatpush1.bf16.msra.mxu0 0
      %1547 = vmatprep.subr.bf16.mxu0 0
      %1548 = vmatpush1.bf16.msra.mxu0 0
      %1549 = vmatprep.subr.bf16.mxu0 0
      %1550 = vmatpush1.bf16.msra.mxu0 0
      %1551 = vmatprep.subr.bf16.mxu0 0
      %1552 = vmatpush1.bf16.msra.mxu0 0
      %1553 = vmatprep.subr.bf16.mxu0 0
      %1554 = vmatpush1.bf16.msra.mxu0 0
      %1555 = vmatprep.subr.bf16.mxu0 0
      %1556 = vmatpush1.bf16.msra.mxu0 0
      %1557 = vmatprep.mubr.bf16.mxu0 0
      %1558 = vmatmul.mubr.bf16.gmra.mrb[0].mxu0 %v374
      %v1559 = vpop.f32.mrb[0].mxu0
      %v1560 = vadd.f32 %v1517, %v1559
      %v1561 = vpop.f32.mrb[0].mxu0
      %v1562 = vadd.f32 %v1519, %v1561
      %v1563 = vpop.f32.mrb[0].mxu0
      %v1564 = vadd.f32 %v1521, %v1563
      %v1565 = vpop.f32.mrb[0].mxu0
      %v1566 = vadd.f32 %v1523, %v1565
      %1567 = vdwg.mxu0
      %1568 = vmatprep.subr.bf16.mxu0 %v1053
      %1569 = vmatpush1.bf16.msra.mxu0 %v1052
      %1570 = vmatprep.subr.bf16.mxu0 %v1062
      %1571 = vmatpush1.bf16.msra.mxu0 %v1061
      %1572 = vmatprep.subr.bf16.mxu0 %v1071
      %1573 = vmatpush1.bf16.msra.mxu0 %v1070
      %1574 = vmatprep.subr.bf16.mxu0 %v1080
      %1575 = vmatpush1.bf16.msra.mxu0 %v1079
      %1576 = vmatprep.subr.bf16.mxu0 %v1089
      %1577 = vmatpush1.bf16.msra.mxu0 %v1088
      %1578 = vmatprep.subr.bf16.mxu0 %v1098
      %1579 = vmatpush1.bf16.msra.mxu0 %v1097
      %1580 = vmatprep.subr.bf16.mxu0 %v1107
      %1581 = vmatpush1.bf16.msra.mxu0 %v1106
      %1582 = vmatprep.subr.bf16.mxu0 %v1116
      %1583 = vmatpush1.bf16.msra.mxu0 %v1115
      %1584 = vmatprep.subr.bf16.mxu0 %v1125
      %1585 = vmatpush1.bf16.msra.mxu0 %v1124
      %1586 = vmatprep.subr.bf16.mxu0 %v1134
      %1587 = vmatpush1.bf16.msra.mxu0 %v1133
      %1588 = vmatprep.subr.bf16.mxu0 %v1143
      %1589 = vmatpush1.bf16.msra.mxu0 %v1142
      %1590 = vmatprep.subr.bf16.mxu0 %v1152
      %1591 = vmatpush1.bf16.msra.mxu0 %v1151
      %1592 = vmatprep.subr.bf16.mxu0 %v1161
      %1593 = vmatpush1.bf16.msra.mxu0 %v1160
      %1594 = vmatprep.subr.bf16.mxu0 %v1170
      %1595 = vmatpush1.bf16.msra.mxu0 %v1169
      %1596 = vmatprep.subr.bf16.mxu0 %v1179
      %1597 = vmatpush1.bf16.msra.mxu0 %v1178
      %1598 = vmatprep.subr.bf16.mxu0 %v1188
      %1599 = vmatpush1.bf16.msra.mxu0 %v1187
      %1600 = vmatprep.mubr.bf16.mxu0 %v373
      %1601 = vmatmul.mubr.bf16.gmra.mrb[0].mxu0 %v372
      %v1602 = vpop.f32.mrb[0].mxu0
      %v1603 = vadd.f32 %v328, %v1602
      %v1604 = vpop.f32.mrb[0].mxu0
      %v1605 = vadd.f32 %v332, %v1604
      %v1606 = vpop.f32.mrb[0].mxu0
      %v1607 = vadd.f32 %v328, %v1606
      %v1608 = vpop.f32.mrb[0].mxu0
      %v1609 = vadd.f32 %v332, %v1608
      %1610 = vdwg.mxu0
      %1611 = vmatprep.subr.bf16.mxu0 %v1197
      %1612 = vmatpush1.bf16.msra.mxu0 %v1196
      %1613 = vmatprep.subr.bf16.mxu0 %v1206
      %1614 = vmatpush1.bf16.msra.mxu0 %v1205
      %1615 = vmatprep.subr.bf16.mxu0 %v1215
      %1616 = vmatpush1.bf16.msra.mxu0 %v1214
      %1617 = vmatprep.subr.bf16.mxu0 %v1224
      %1618 = vmatpush1.bf16.msra.mxu0 %v1223
      %1619 = vmatprep.subr.bf16.mxu0 %v1233
      %1620 = vmatpush1.bf16.msra.mxu0 %v1232
      %1621 = vmatprep.subr.bf16.mxu0 %v1242
      %1622 = vmatpush1.bf16.msra.mxu0 %v1241
      %1623 = vmatprep.subr.bf16.mxu0 %v1251
      %1624 = vmatpush1.bf16.msra.mxu0 %v1250
      %1625 = vmatprep.subr.bf16.mxu0 %v1260
      %1626 = vmatpush1.bf16.msra.mxu0 %v1259
      %1627 = vmatprep.subr.bf16.mxu0 0
      %1628 = vmatpush1.bf16.msra.mxu0 0
      %1629 = vmatprep.subr.bf16.mxu0 0
      %1630 = vmatpush1.bf16.msra.mxu0 0
      %1631 = vmatprep.subr.bf16.mxu0 0
      %1632 = vmatpush1.bf16.msra.mxu0 0
      %1633 = vmatprep.subr.bf16.mxu0 0
      %1634 = vmatpush1.bf16.msra.mxu0 0
      %1635 = vmatprep.subr.bf16.mxu0 0
      %1636 = vmatpush1.bf16.msra.mxu0 0
      %1637 = vmatprep.subr.bf16.mxu0 0
      %1638 = vmatpush1.bf16.msra.mxu0 0
      %1639 = vmatprep.subr.bf16.mxu0 0
      %1640 = vmatpush1.bf16.msra.mxu0 0
      %1641 = vmatprep.subr.bf16.mxu0 0
      %1642 = vmatpush1.bf16.msra.mxu0 0
      %1643 = vmatprep.mubr.bf16.mxu0 0
      %1644 = vmatmul.mubr.bf16.gmra.mrb[0].mxu0 %v374
      %v1645 = vpop.f32.mrb[0].mxu0
      %v1646 = vadd.f32 %v1603, %v1645
      %v1647 = vpop.f32.mrb[0].mxu0
      %v1648 = vadd.f32 %v1605, %v1647
      %v1649 = vpop.f32.mrb[0].mxu0
      %v1650 = vadd.f32 %v1607, %v1649
      %v1651 = vpop.f32.mrb[0].mxu0
      %v1652 = vadd.f32 %v1609, %v1651
      %1653 = vdwg.mxu0
      %1654 = vmatprep.subr.bf16.mxu0 %v1055
      %1655 = vmatpush1.bf16.msra.mxu0 %v1054
      %1656 = vmatprep.subr.bf16.mxu0 %v1064
      %1657 = vmatpush1.bf16.msra.mxu0 %v1063
      %1658 = vmatprep.subr.bf16.mxu0 %v1073
      %1659 = vmatpush1.bf16.msra.mxu0 %v1072
      %1660 = vmatprep.subr.bf16.mxu0 %v1082
      %1661 = vmatpush1.bf16.msra.mxu0 %v1081
      %1662 = vmatprep.subr.bf16.mxu0 %v1091
      %1663 = vmatpush1.bf16.msra.mxu0 %v1090
      %1664 = vmatprep.subr.bf16.mxu0 %v1100
      %1665 = vmatpush1.bf16.msra.mxu0 %v1099
      %1666 = vmatprep.subr.bf16.mxu0 %v1109
      %1667 = vmatpush1.bf16.msra.mxu0 %v1108
      %1668 = vmatprep.subr.bf16.mxu0 %v1118
      %1669 = vmatpush1.bf16.msra.mxu0 %v1117
      %1670 = vmatprep.subr.bf16.mxu0 %v1127
      %1671 = vmatpush1.bf16.msra.mxu0 %v1126
      %1672 = vmatprep.subr.bf16.mxu0 %v1136
      %1673 = vmatpush1.bf16.msra.mxu0 %v1135
      %1674 = vmatprep.subr.bf16.mxu0 %v1145
      %1675 = vmatpush1.bf16.msra.mxu0 %v1144
      %1676 = vmatprep.subr.bf16.mxu0 %v1154
      %1677 = vmatpush1.bf16.msra.mxu0 %v1153
      %1678 = vmatprep.subr.bf16.mxu0 %v1163
      %1679 = vmatpush1.bf16.msra.mxu0 %v1162
      %1680 = vmatprep.subr.bf16.mxu0 %v1172
      %1681 = vmatpush1.bf16.msra.mxu0 %v1171
      %1682 = vmatprep.subr.bf16.mxu0 %v1181
      %1683 = vmatpush1.bf16.msra.mxu0 %v1180
      %1684 = vmatprep.subr.bf16.mxu0 %v1190
      %1685 = vmatpush1.bf16.msra.mxu0 %v1189
      %1686 = vmatprep.mubr.bf16.mxu0 %v373
      %1687 = vmatmul.mubr.bf16.gmra.mrb[0].mxu0 %v372
      %v1688 = vpop.f32.mrb[0].mxu0
      %v1689 = vadd.f32 %v336, %v1688
      %v1690 = vpop.f32.mrb[0].mxu0
      %v1691 = vadd.f32 %v340, %v1690
      %v1692 = vpop.f32.mrb[0].mxu0
      %v1693 = vadd.f32 %v336, %v1692
      %v1694 = vpop.f32.mrb[0].mxu0
      %v1695 = vadd.f32 %v340, %v1694
      %1696 = vdwg.mxu0
      %1697 = vmatprep.subr.bf16.mxu0 %v1199
      %1698 = vmatpush1.bf16.msra.mxu0 %v1198
      %1699 = vmatprep.subr.bf16.mxu0 %v1208
      %1700 = vmatpush1.bf16.msra.mxu0 %v1207
      %1701 = vmatprep.subr.bf16.mxu0 %v1217
      %1702 = vmatpush1.bf16.msra.mxu0 %v1216
      %1703 = vmatprep.subr.bf16.mxu0 %v1226
      %1704 = vmatpush1.bf16.msra.mxu0 %v1225
      %1705 = vmatprep.subr.bf16.mxu0 %v1235
      %1706 = vmatpush1.bf16.msra.mxu0 %v1234
      %1707 = vmatprep.subr.bf16.mxu0 %v1244
      %1708 = vmatpush1.bf16.msra.mxu0 %v1243
      %1709 = vmatprep.subr.bf16.mxu0 %v1253
      %1710 = vmatpush1.bf16.msra.mxu0 %v1252
      %1711 = vmatprep.subr.bf16.mxu0 %v1262
      %1712 = vmatpush1.bf16.msra.mxu0 %v1261
      %1713 = vmatprep.subr.bf16.mxu0 0
      %1714 = vmatpush1.bf16.msra.mxu0 0
      %1715 = vmatprep.subr.bf16.mxu0 0
      %1716 = vmatpush1.bf16.msra.mxu0 0
      %1717 = vmatprep.subr.bf16.mxu0 0
      %1718 = vmatpush1.bf16.msra.mxu0 0
      %1719 = vmatprep.subr.bf16.mxu0 0
      %1720 = vmatpush1.bf16.msra.mxu0 0
      %1721 = vmatprep.subr.bf16.mxu0 0
      %1722 = vmatpush1.bf16.msra.mxu0 0
      %1723 = vmatprep.subr.bf16.mxu0 0
      %1724 = vmatpush1.bf16.msra.mxu0 0
      %1725 = vmatprep.subr.bf16.mxu0 0
      %1726 = vmatpush1.bf16.msra.mxu0 0
      %1727 = vmatprep.subr.bf16.mxu0 0
      %1728 = vmatpush1.bf16.msra.mxu0 0
      %1729 = vmatprep.mubr.bf16.mxu0 0
      %1730 = vmatmul.mubr.bf16.gmra.mrb[0].mxu0 %v374
      %v1731 = vpop.f32.mrb[0].mxu0
      %v1732 = vadd.f32 %v1689, %v1731
      %v1733 = vpop.f32.mrb[0].mxu0
      %v1734 = vadd.f32 %v1691, %v1733
      %v1735 = vpop.f32.mrb[0].mxu0
      %v1736 = vadd.f32 %v1693, %v1735
      %v1737 = vpop.f32.mrb[0].mxu0
      %v1738 = vadd.f32 %v1695, %v1737
      %1739 = vdwg.mxu0
      %1740 = vmatprep.subr.bf16.mxu0 %v1057
      %1741 = vmatpush1.bf16.msra.mxu0 %v1056
      %1742 = vmatprep.subr.bf16.mxu0 %v1066
      %1743 = vmatpush1.bf16.msra.mxu0 %v1065
      %1744 = vmatprep.subr.bf16.mxu0 %v1075
      %1745 = vmatpush1.bf16.msra.mxu0 %v1074
      %1746 = vmatprep.subr.bf16.mxu0 %v1084
      %1747 = vmatpush1.bf16.msra.mxu0 %v1083
      %1748 = vmatprep.subr.bf16.mxu0 %v1093
      %1749 = vmatpush1.bf16.msra.mxu0 %v1092
      %1750 = vmatprep.subr.bf16.mxu0 %v1102
      %1751 = vmatpush1.bf16.msra.mxu0 %v1101
      %1752 = vmatprep.subr.bf16.mxu0 %v1111
      %1753 = vmatpush1.bf16.msra.mxu0 %v1110
      %1754 = vmatprep.subr.bf16.mxu0 %v1120
      %1755 = vmatpush1.bf16.msra.mxu0 %v1119
      %1756 = vmatprep.subr.bf16.mxu0 %v1129
      %1757 = vmatpush1.bf16.msra.mxu0 %v1128
      %1758 = vmatprep.subr.bf16.mxu0 %v1138
      %1759 = vmatpush1.bf16.msra.mxu0 %v1137
      %1760 = vmatprep.subr.bf16.mxu0 %v1147
      %1761 = vmatpush1.bf16.msra.mxu0 %v1146
      %1762 = vmatprep.subr.bf16.mxu0 %v1156
      %1763 = vmatpush1.bf16.msra.mxu0 %v1155
      %1764 = vmatprep.subr.bf16.mxu0 %v1165
      %1765 = vmatpush1.bf16.msra.mxu0 %v1164
      %1766 = vmatprep.subr.bf16.mxu0 %v1174
      %1767 = vmatpush1.bf16.msra.mxu0 %v1173
      %1768 = vmatprep.subr.bf16.mxu0 %v1183
      %1769 = vmatpush1.bf16.msra.mxu0 %v1182
      %1770 = vmatprep.subr.bf16.mxu0 %v1192
      %1771 = vmatpush1.bf16.msra.mxu0 %v1191
      %1772 = vmatprep.mubr.bf16.mxu0 %v373
      %1773 = vmatmul.mubr.bf16.gmra.mrb[0].mxu0 %v372
      %v1774 = vpop.f32.mrb[0].mxu0
      %v1775 = vadd.f32 %v344, %v1774
      %v1776 = vpop.f32.mrb[0].mxu0
      %v1777 = vadd.f32 %v348, %v1776
      %v1778 = vpop.f32.mrb[0].mxu0
      %v1779 = vadd.f32 %v344, %v1778
      %v1780 = vpop.f32.mrb[0].mxu0
      %v1781 = vadd.f32 %v348, %v1780
      %1782 = vdwg.mxu0
      %1783 = vmatprep.subr.bf16.mxu0 %v1201
      %1784 = vmatpush1.bf16.msra.mxu0 %v1200
      %1785 = vmatprep.subr.bf16.mxu0 %v1210
      %1786 = vmatpush1.bf16.msra.mxu0 %v1209
      %1787 = vmatprep.subr.bf16.mxu0 %v1219
      %1788 = vmatpush1.bf16.msra.mxu0 %v1218
      %1789 = vmatprep.subr.bf16.mxu0 %v1228
      %1790 = vmatpush1.bf16.msra.mxu0 %v1227
      %1791 = vmatprep.subr.bf16.mxu0 %v1237
      %1792 = vmatpush1.bf16.msra.mxu0 %v1236
      %1793 = vmatprep.subr.bf16.mxu0 %v1246
      %1794 = vmatpush1.bf16.msra.mxu0 %v1245
      %1795 = vmatprep.subr.bf16.mxu0 %v1255
      %1796 = vmatpush1.bf16.msra.mxu0 %v1254
      %1797 = vmatprep.subr.bf16.mxu0 %v1264
      %1798 = vmatpush1.bf16.msra.mxu0 %v1263
      %1799 = vmatprep.subr.bf16.mxu0 0
      %1800 = vmatpush1.bf16.msra.mxu0 0
      %1801 = vmatprep.subr.bf16.mxu0 0
      %1802 = vmatpush1.bf16.msra.mxu0 0
      %1803 = vmatprep.subr.bf16.mxu0 0
      %1804 = vmatpush1.bf16.msra.mxu0 0
      %1805 = vmatprep.subr.bf16.mxu0 0
      %1806 = vmatpush1.bf16.msra.mxu0 0
      %1807 = vmatprep.subr.bf16.mxu0 0
      %1808 = vmatpush1.bf16.msra.mxu0 0
      %1809 = vmatprep.subr.bf16.mxu0 0
      %1810 = vmatpush1.bf16.msra.mxu0 0
      %1811 = vmatprep.subr.bf16.mxu0 0
      %1812 = vmatpush1.bf16.msra.mxu0 0
      %1813 = vmatprep.subr.bf16.mxu0 0
      %1814 = vmatpush1.bf16.msra.mxu0 0
      %1815 = vmatprep.mubr.bf16.mxu0 0
      %1816 = vmatmul.mubr.bf16.gmra.mrb[0].mxu0 %v374
      %v1817 = vpop.f32.mrb[0].mxu0
      %v1818 = vadd.f32 %v1775, %v1817
      %v1819 = vpop.f32.mrb[0].mxu0
      %v1820 = vadd.f32 %v1777, %v1819
      %v1821 = vpop.f32.mrb[0].mxu0
      %v1822 = vadd.f32 %v1779, %v1821
      %v1823 = vpop.f32.mrb[0].mxu0
      %v1824 = vadd.f32 %v1781, %v1823
      %1825 = vdwg.mxu0
      %1826 = vmatprep.subr.bf16.mxu0 0
      %1827 = vmatpush1.bf16.msra.mxu0 %v1058
      %1828 = vmatprep.subr.bf16.mxu0 0
      %1829 = vmatpush1.bf16.msra.mxu0 %v1067
      %1830 = vmatprep.subr.bf16.mxu0 0
      %1831 = vmatpush1.bf16.msra.mxu0 %v1076
      %1832 = vmatprep.subr.bf16.mxu0 0
      %1833 = vmatpush1.bf16.msra.mxu0 %v1085
      %1834 = vmatprep.subr.bf16.mxu0 0
      %1835 = vmatpush1.bf16.msra.mxu0 %v1094
      %1836 = vmatprep.subr.bf16.mxu0 0
      %1837 = vmatpush1.bf16.msra.mxu0 %v1103
      %1838 = vmatprep.subr.bf16.mxu0 0
      %1839 = vmatpush1.bf16.msra.mxu0 %v1112
      %1840 = vmatprep.subr.bf16.mxu0 0
      %1841 = vmatpush1.bf16.msra.mxu0 %v1121
      %1842 = vmatprep.subr.bf16.mxu0 0
      %1843 = vmatpush1.bf16.msra.mxu0 %v1130
      %1844 = vmatprep.subr.bf16.mxu0 0
      %1845 = vmatpush1.bf16.msra.mxu0 %v1139
      %1846 = vmatprep.subr.bf16.mxu0 0
      %1847 = vmatpush1.bf16.msra.mxu0 %v1148
      %1848 = vmatprep.subr.bf16.mxu0 0
      %1849 = vmatpush1.bf16.msra.mxu0 %v1157
      %1850 = vmatprep.subr.bf16.mxu0 0
      %1851 = vmatpush1.bf16.msra.mxu0 %v1166
      %1852 = vmatprep.subr.bf16.mxu0 0
      %1853 = vmatpush1.bf16.msra.mxu0 %v1175
      %1854 = vmatprep.subr.bf16.mxu0 0
      %1855 = vmatpush1.bf16.msra.mxu0 %v1184
      %1856 = vmatprep.subr.bf16.mxu0 0
      %1857 = vmatpush1.bf16.msra.mxu0 %v1193
      %1858 = vmatprep.mubr.bf16.mxu0 %v373
      %1859 = vmatmul.mubr.bf16.gmra.mrb[0].mxu0 %v372
      %v1860 = vpop.f32.mrb[0].mxu0
      %v1861 = vadd.f32 %v352, %v1860
      %v1862 = vpop.f32.mrb[0].mxu0
      %v1863 = vpop.f32.mrb[0].mxu0
      %v1864 = vadd.f32 %v352, %v1863
      %v1865 = vpop.f32.mrb[0].mxu0
      %1866 = vdwg.mxu0
      %1867 = vmatprep.subr.bf16.mxu0 0
      %1868 = vmatpush1.bf16.msra.mxu0 %v1202
      %1869 = vmatprep.subr.bf16.mxu0 0
      %1870 = vmatpush1.bf16.msra.mxu0 %v1211
      %1871 = vmatprep.subr.bf16.mxu0 0
      %1872 = vmatpush1.bf16.msra.mxu0 %v1220
      %1873 = vmatprep.subr.bf16.mxu0 0
      %1874 = vmatpush1.bf16.msra.mxu0 %v1229
      %1875 = vmatprep.subr.bf16.mxu0 0
      %1876 = vmatpush1.bf16.msra.mxu0 %v1238
      %1877 = vmatprep.subr.bf16.mxu0 0
      %1878 = vmatpush1.bf16.msra.mxu0 %v1247
      %1879 = vmatprep.subr.bf16.mxu0 0
      %1880 = vmatpush1.bf16.msra.mxu0 %v1256
      %1881 = vmatprep.subr.bf16.mxu0 0
      %1882 = vmatpush1.bf16.msra.mxu0 %v1265
      %1883 = vmatprep.subr.bf16.mxu0 0
      %1884 = vmatpush1.bf16.msra.mxu0 0
      %1885 = vmatprep.subr.bf16.mxu0 0
      %1886 = vmatpush1.bf16.msra.mxu0 0
      %1887 = vmatprep.subr.bf16.mxu0 0
      %1888 = vmatpush1.bf16.msra.mxu0 0
      %1889 = vmatprep.subr.bf16.mxu0 0
      %1890 = vmatpush1.bf16.msra.mxu0 0
      %1891 = vmatprep.subr.bf16.mxu0 0
      %1892 = vmatpush1.bf16.msra.mxu0 0
      %1893 = vmatprep.subr.bf16.mxu0 0
      %1894 = vmatpush1.bf16.msra.mxu0 0
      %1895 = vmatprep.subr.bf16.mxu0 0
      %1896 = vmatpush1.bf16.msra.mxu0 0
      %1897 = vmatprep.subr.bf16.mxu0 0
      %1898 = vmatpush1.bf16.msra.mxu0 0
      %1899 = vmatprep.mubr.bf16.mxu0 0
      %1900 = vmatmul.mubr.bf16.gmra.mrb[0].mxu0 %v374
      %v1901 = vpop.f32.mrb[0].mxu0
      %v1902 = vadd.f32 %v1861, %v1901
      %v1903 = vpop.f32.mrb[0].mxu0
      %v1904 = vpop.f32.mrb[0].mxu0
      %v1905 = vadd.f32 %v1864, %v1904
      %v1906 = vpop.f32.mrb[0].mxu0
      %1907 = vdwg.mxu0
      %v1908 = vlaneseq
      %v1909 = vshrl.u32 %v1908, 7
      %v1910 = vlaneseq
      %v1911 = vand.u32 %v1910, 127
      %vm1912 = vcmp.le.s32.totalorder %v1911, %v1909
      %v1913 = vsel %vm1912, 0.0, -1e+30
      %v1914 = vpack.c.bf16 %v1560, %v1560
      %v1915 = vpack.c.bf16 %v1564, %v1564
      %v1916 = vpack.c.bf16 %v1648, %v1648
      %v1917 = vpack.c.bf16 %v1652, %v1652
      %v1918 = vpack.c.bf16 %v1818, %v1818
      %v1919 = vpack.c.bf16 %v1822, %v1822
      %1920 = vmatprep.subr.bf16.mxu0 0
      %1921 = vmatpush1.bf16.xpose.msra.mxu0 %v1916
      %1922 = vmatprep.subr.bf16.mxu0 0
      %1923 = vmatpush1.bf16.xpose.msra.mxu0 0
      %1924 = vmatprep.subr.bf16.mxu0 0
      %1925 = vmatpush1.bf16.xpose.msra.mxu0 0
      %1926 = vmatprep.subr.bf16.mxu0 0
      %1927 = vmatpush1.bf16.xpose.msra.mxu0 0
      %1928 = vmatprep.subr.bf16.mxu0 0
      %1929 = vmatpush1.bf16.xpose.msra.mxu0 0
      %1930 = vmatprep.subr.bf16.mxu0 0
      %1931 = vmatpush1.bf16.xpose.msra.mxu0 0
      %1932 = vmatprep.subr.bf16.mxu0 0
      %1933 = vmatpush1.bf16.xpose.msra.mxu0 0
      %1934 = vmatprep.subr.bf16.mxu0 0
      %1935 = vmatpush1.bf16.xpose.msra.mxu0 0
      %1936 = vmatprep.subr.bf16.mxu0 0
      %1937 = vmatpush1.bf16.xpose.msra.mxu0 0
      %1938 = vmatprep.subr.bf16.mxu0 0
      %1939 = vmatpush1.bf16.xpose.msra.mxu0 0
      %1940 = vmatprep.subr.bf16.mxu0 0
      %1941 = vmatpush1.bf16.xpose.msra.mxu0 0
      %1942 = vmatprep.subr.bf16.mxu0 0
      %1943 = vmatpush1.bf16.xpose.msra.mxu0 0
      %1944 = vmatprep.subr.bf16.mxu0 0
      %1945 = vmatpush1.bf16.xpose.msra.mxu0 0
      %1946 = vmatprep.subr.bf16.mxu0 0
      %1947 = vmatpush1.bf16.xpose.msra.mxu0 0
      %1948 = vmatprep.subr.bf16.mxu0 0
      %1949 = vmatpush1.bf16.xpose.msra.mxu0 0
      %1950 = vmatprep.subr.bf16.mxu0 0
      %1951 = vmatpush1.bf16.xpose.msra.mxu0 0
      %1952 = vmatprep.mubr.bf16.mxu0 0
      %1953 = vmatmul.mubr.bf16.gmra.mrb[0].mxu0 %v1914
      %v1954 = vpop.f32.mrb[0].mxu0
      %v1955 = vadd.f32 %v1913, %v1954
      %v1956 = vpop.f32.mrb[0].mxu0
      %v1957 = vpop.f32.mrb[0].mxu0
      %v1958 = vpop.f32.mrb[0].mxu0
      %1959 = vdwg.mxu0
      %1960 = vmatprep.subr.bf16.mxu0 0
      %1961 = vmatpush1.bf16.xpose.msra.mxu0 %v1917
      %1962 = vmatprep.subr.bf16.mxu0 0
      %1963 = vmatpush1.bf16.xpose.msra.mxu0 0
      %1964 = vmatprep.subr.bf16.mxu0 0
      %1965 = vmatpush1.bf16.xpose.msra.mxu0 0
      %1966 = vmatprep.subr.bf16.mxu0 0
      %1967 = vmatpush1.bf16.xpose.msra.mxu0 0
      %1968 = vmatprep.subr.bf16.mxu0 0
      %1969 = vmatpush1.bf16.xpose.msra.mxu0 0
      %1970 = vmatprep.subr.bf16.mxu0 0
      %1971 = vmatpush1.bf16.xpose.msra.mxu0 0
      %1972 = vmatprep.subr.bf16.mxu0 0
      %1973 = vmatpush1.bf16.xpose.msra.mxu0 0
      %1974 = vmatprep.subr.bf16.mxu0 0
      %1975 = vmatpush1.bf16.xpose.msra.mxu0 0
      %1976 = vmatprep.subr.bf16.mxu0 0
      %1977 = vmatpush1.bf16.xpose.msra.mxu0 0
      %1978 = vmatprep.subr.bf16.mxu0 0
      %1979 = vmatpush1.bf16.xpose.msra.mxu0 0
      %1980 = vmatprep.subr.bf16.mxu0 0
      %1981 = vmatpush1.bf16.xpose.msra.mxu0 0
      %1982 = vmatprep.subr.bf16.mxu0 0
      %1983 = vmatpush1.bf16.xpose.msra.mxu0 0
      %1984 = vmatprep.subr.bf16.mxu0 0
      %1985 = vmatpush1.bf16.xpose.msra.mxu0 0
      %1986 = vmatprep.subr.bf16.mxu0 0
      %1987 = vmatpush1.bf16.xpose.msra.mxu0 0
      %1988 = vmatprep.subr.bf16.mxu0 0
      %1989 = vmatpush1.bf16.xpose.msra.mxu0 0
      %1990 = vmatprep.subr.bf16.mxu0 0
      %1991 = vmatpush1.bf16.xpose.msra.mxu0 0
      %1992 = vmatprep.mubr.bf16.mxu0 0
      %1993 = vmatmul.mubr.bf16.gmra.mrb[0].mxu0 %v1915
      %v1994 = vpop.f32.mrb[0].mxu0
      %v1995 = vadd.f32 %v1913, %v1994
      %v1996 = vpop.f32.mrb[0].mxu0
      %v1997 = vpop.f32.mrb[0].mxu0
      %v1998 = vpop.f32.mrb[0].mxu0
      %1999 = vdwg.mxu0
      %vm2000 = vcmask 64512
      %v2001 = vsel %vm2000, %v1955, -inf
      %2002 = vmax.xlane.f32.xlu0 %v2001
      %v2003 = vpop.xlane.xlu0 %2002
      %v2004 = vsel %vm2000, %v1995, -inf
      %2005 = vmax.xlane.f32.xlu0 %v2004
      %v2006 = vpop.xlane.xlu0 %2005
      %v2007 = vsub.f32 %v1955, %v2003
      %v2008 = vsub.f32 %v1995, %v2006
      %v2009 = vmul.f32 %v2007, 1.442695
      %v2010 = vpow.pop %v2009
      %v2011 = vmul.f32 %v2008, 1.442695
      %v2012 = vpow.pop %v2011
      %v2013 = vsel %vm2000, %v2010, 0.0
      %2014 = vadd.xlane.f32.xlu0 %v2013
      %v2015 = vpop.xlane.xlu0 %2014
      %v2016 = vsel %vm2000, %v2012, 0.0
      %2017 = vadd.xlane.f32.xlu0 %v2016
      %v2018 = vpop.xlane.xlu0 %2017
      %v2019 = vrcp.pop %v2015
      %v2020 = vrcp.pop %v2018
      %v2021 = vmul.f32 %v2010, %v2019
      %v2022 = vmul.f32 %v2012, %v2020
      %v2023 = vpack.c.bf16 %v2021, %v2021
      %v2024 = vpack.c.bf16 %v2022, %v2022
      %v2026 = vsel %vm2000, %v2023, 0
      %vm2028 = vcmask 1043456
      %v2030 = vsel %vm2028, %v1918, 0
      %2032 = vmatprep.subr.bf16.mxu0 0
      %2033 = vmatpush1.bf16.msra.mxu0 %v2030
      %2034 = vmatprep.subr.bf16.mxu0 0
      %2035 = vmatpush1.bf16.msra.mxu0 0
      %2036 = vmatprep.subr.bf16.mxu0 0
      %2037 = vmatpush1.bf16.msra.mxu0 0
      %2038 = vmatprep.subr.bf16.mxu0 0
      %2039 = vmatpush1.bf16.msra.mxu0 0
      %2040 = vmatprep.subr.bf16.mxu0 0
      %2041 = vmatpush1.bf16.msra.mxu0 0
      %2042 = vmatprep.subr.bf16.mxu0 0
      %2043 = vmatpush1.bf16.msra.mxu0 0
      %2044 = vmatprep.subr.bf16.mxu0 0
      %2045 = vmatpush1.bf16.msra.mxu0 0
      %2046 = vmatprep.subr.bf16.mxu0 0
      %2047 = vmatpush1.bf16.msra.mxu0 0
      %2048 = vmatprep.subr.bf16.mxu0 0
      %2049 = vmatpush1.bf16.msra.mxu0 0
      %2050 = vmatprep.subr.bf16.mxu0 0
      %2051 = vmatpush1.bf16.msra.mxu0 0
      %2052 = vmatprep.subr.bf16.mxu0 0
      %2053 = vmatpush1.bf16.msra.mxu0 0
      %2054 = vmatprep.subr.bf16.mxu0 0
      %2055 = vmatpush1.bf16.msra.mxu0 0
      %2056 = vmatprep.subr.bf16.mxu0 0
      %2057 = vmatpush1.bf16.msra.mxu0 0
      %2058 = vmatprep.subr.bf16.mxu0 0
      %2059 = vmatpush1.bf16.msra.mxu0 0
      %2060 = vmatprep.subr.bf16.mxu0 0
      %2061 = vmatpush1.bf16.msra.mxu0 0
      %2062 = vmatprep.subr.bf16.mxu0 0
      %2063 = vmatpush1.bf16.msra.mxu0 0
      %2064 = vmatprep.mubr.bf16.mxu0 0
      %2065 = vmatmul.mubr.bf16.gmra.mrb[0].mxu0 %v2026
      %v2066 = vpop.f32.mrb[0].mxu0
      %v2067 = vadd.f32 0.0, %v2066
      %v2068 = vpop.f32.mrb[0].mxu0
      %v2069 = vpop.f32.mrb[0].mxu0
      %v2070 = vpop.f32.mrb[0].mxu0
      %2071 = vdwg.mxu0
      %v2073 = vsel %vm2000, %v2024, 0
      %v2076 = vsel %vm2028, %v1919, 0
      %2078 = vmatprep.subr.bf16.mxu0 0
      %2079 = vmatpush1.bf16.msra.mxu0 %v2076
      %2080 = vmatprep.subr.bf16.mxu0 0
      %2081 = vmatpush1.bf16.msra.mxu0 0
      %2082 = vmatprep.subr.bf16.mxu0 0
      %2083 = vmatpush1.bf16.msra.mxu0 0
      %2084 = vmatprep.subr.bf16.mxu0 0
      %2085 = vmatpush1.bf16.msra.mxu0 0
      %2086 = vmatprep.subr.bf16.mxu0 0
      %2087 = vmatpush1.bf16.msra.mxu0 0
      %2088 = vmatprep.subr.bf16.mxu0 0
      %2089 = vmatpush1.bf16.msra.mxu0 0
      %2090 = vmatprep.subr.bf16.mxu0 0
      %2091 = vmatpush1.bf16.msra.mxu0 0
      %2092 = vmatprep.subr.bf16.mxu0 0
      %2093 = vmatpush1.bf16.msra.mxu0 0
      %2094 = vmatprep.subr.bf16.mxu0 0
      %2095 = vmatpush1.bf16.msra.mxu0 0
      %2096 = vmatprep.subr.bf16.mxu0 0
      %2097 = vmatpush1.bf16.msra.mxu0 0
      %2098 = vmatprep.subr.bf16.mxu0 0
      %2099 = vmatpush1.bf16.msra.mxu0 0
      %2100 = vmatprep.subr.bf16.mxu0 0
      %2101 = vmatpush1.bf16.msra.mxu0 0
      %2102 = vmatprep.subr.bf16.mxu0 0
      %2103 = vmatpush1.bf16.msra.mxu0 0
      %2104 = vmatprep.subr.bf16.mxu0 0
      %2105 = vmatpush1.bf16.msra.mxu0 0
      %2106 = vmatprep.subr.bf16.mxu0 0
      %2107 = vmatpush1.bf16.msra.mxu0 0
      %2108 = vmatprep.subr.bf16.mxu0 0
      %2109 = vmatpush1.bf16.msra.mxu0 0
      %2110 = vmatprep.mubr.bf16.mxu0 0
      %2111 = vmatmul.mubr.bf16.gmra.mrb[0].mxu0 %v2073
      %v2112 = vpop.f32.mrb[0].mxu0
      %v2113 = vadd.f32 0.0, %v2112
      %v2114 = vpop.f32.mrb[0].mxu0
      %v2115 = vpop.f32.mrb[0].mxu0
      %v2116 = vpop.f32.mrb[0].mxu0
      %2117 = vdwg.mxu0
      %v2118 = vpack.c.bf16 %v2113, %v2067
      %v2119 = vpack.c.bf16 %v1562, %v1562
      %v2120 = vpack.c.bf16 %v1566, %v1566
      %v2121 = vpack.c.bf16 %v1732, %v1732
      %v2122 = vpack.c.bf16 %v1736, %v1736
      %v2123 = vpack.c.bf16 %v1820, %v1820
      %v2124 = vpack.c.bf16 %v1824, %v1824
      %2125 = vmatprep.subr.bf16.mxu0 0
      %2126 = vmatpush1.bf16.xpose.msra.mxu0 %v2121
      %2127 = vmatprep.subr.bf16.mxu0 0
      %2128 = vmatpush1.bf16.xpose.msra.mxu0 0
      %2129 = vmatprep.subr.bf16.mxu0 0
      %2130 = vmatpush1.bf16.xpose.msra.mxu0 0
      %2131 = vmatprep.subr.bf16.mxu0 0
      %2132 = vmatpush1.bf16.xpose.msra.mxu0 0
      %2133 = vmatprep.subr.bf16.mxu0 0
      %2134 = vmatpush1.bf16.xpose.msra.mxu0 0
      %2135 = vmatprep.subr.bf16.mxu0 0
      %2136 = vmatpush1.bf16.xpose.msra.mxu0 0
      %2137 = vmatprep.subr.bf16.mxu0 0
      %2138 = vmatpush1.bf16.xpose.msra.mxu0 0
      %2139 = vmatprep.subr.bf16.mxu0 0
      %2140 = vmatpush1.bf16.xpose.msra.mxu0 0
      %2141 = vmatprep.subr.bf16.mxu0 0
      %2142 = vmatpush1.bf16.xpose.msra.mxu0 0
      %2143 = vmatprep.subr.bf16.mxu0 0
      %2144 = vmatpush1.bf16.xpose.msra.mxu0 0
      %2145 = vmatprep.subr.bf16.mxu0 0
      %2146 = vmatpush1.bf16.xpose.msra.mxu0 0
      %2147 = vmatprep.subr.bf16.mxu0 0
      %2148 = vmatpush1.bf16.xpose.msra.mxu0 0
      %2149 = vmatprep.subr.bf16.mxu0 0
      %2150 = vmatpush1.bf16.xpose.msra.mxu0 0
      %2151 = vmatprep.subr.bf16.mxu0 0
      %2152 = vmatpush1.bf16.xpose.msra.mxu0 0
      %2153 = vmatprep.subr.bf16.mxu0 0
      %2154 = vmatpush1.bf16.xpose.msra.mxu0 0
      %2155 = vmatprep.subr.bf16.mxu0 0
      %2156 = vmatpush1.bf16.xpose.msra.mxu0 0
      %2157 = vmatprep.mubr.bf16.mxu0 0
      %2158 = vmatmul.mubr.bf16.gmra.mrb[0].mxu0 %v2119
      %v2159 = vpop.f32.mrb[0].mxu0
      %v2160 = vadd.f32 %v1913, %v2159
      %v2161 = vpop.f32.mrb[0].mxu0
      %v2162 = vpop.f32.mrb[0].mxu0
      %v2163 = vpop.f32.mrb[0].mxu0
      %2164 = vdwg.mxu0
      %2165 = vmatprep.subr.bf16.mxu0 0
      %2166 = vmatpush1.bf16.xpose.msra.mxu0 %v2122
      %2167 = vmatprep.subr.bf16.mxu0 0
      %2168 = vmatpush1.bf16.xpose.msra.mxu0 0
      %2169 = vmatprep.subr.bf16.mxu0 0
      %2170 = vmatpush1.bf16.xpose.msra.mxu0 0
      %2171 = vmatprep.subr.bf16.mxu0 0
      %2172 = vmatpush1.bf16.xpose.msra.mxu0 0
      %2173 = vmatprep.subr.bf16.mxu0 0
      %2174 = vmatpush1.bf16.xpose.msra.mxu0 0
      %2175 = vmatprep.subr.bf16.mxu0 0
      %2176 = vmatpush1.bf16.xpose.msra.mxu0 0
      %2177 = vmatprep.subr.bf16.mxu0 0
      %2178 = vmatpush1.bf16.xpose.msra.mxu0 0
      %2179 = vmatprep.subr.bf16.mxu0 0
      %2180 = vmatpush1.bf16.xpose.msra.mxu0 0
      %2181 = vmatprep.subr.bf16.mxu0 0
      %2182 = vmatpush1.bf16.xpose.msra.mxu0 0
      %2183 = vmatprep.subr.bf16.mxu0 0
      %2184 = vmatpush1.bf16.xpose.msra.mxu0 0
      %2185 = vmatprep.subr.bf16.mxu0 0
      %2186 = vmatpush1.bf16.xpose.msra.mxu0 0
      %2187 = vmatprep.subr.bf16.mxu0 0
      %2188 = vmatpush1.bf16.xpose.msra.mxu0 0
      %2189 = vmatprep.subr.bf16.mxu0 0
      %2190 = vmatpush1.bf16.xpose.msra.mxu0 0
      %2191 = vmatprep.subr.bf16.mxu0 0
      %2192 = vmatpush1.bf16.xpose.msra.mxu0 0
      %2193 = vmatprep.subr.bf16.mxu0 0
      %2194 = vmatpush1.bf16.xpose.msra.mxu0 0
      %2195 = vmatprep.subr.bf16.mxu0 0
      %2196 = vmatpush1.bf16.xpose.msra.mxu0 0
      %2197 = vmatprep.mubr.bf16.mxu0 0
      %2198 = vmatmul.mubr.bf16.gmra.mrb[0].mxu0 %v2120
      %v2199 = vpop.f32.mrb[0].mxu0
      %v2200 = vadd.f32 %v1913, %v2199
      %v2201 = vpop.f32.mrb[0].mxu0
      %v2202 = vpop.f32.mrb[0].mxu0
      %v2203 = vpop.f32.mrb[0].mxu0
      %2204 = vdwg.mxu0
      %v2205 = vsel %vm2000, %v2160, -inf
      %2206 = vmax.xlane.f32.xlu0 %v2205
      %v2207 = vpop.xlane.xlu0 %2206
      %v2208 = vsel %vm2000, %v2200, -inf
      %2209 = vmax.xlane.f32.xlu0 %v2208
      %v2210 = vpop.xlane.xlu0 %2209
      %v2211 = vsub.f32 %v2160, %v2207
      %v2212 = vsub.f32 %v2200, %v2210
      %v2213 = vmul.f32 %v2211, 1.442695
      %v2214 = vpow.pop %v2213
      %v2215 = vmul.f32 %v2212, 1.442695
      %v2216 = vpow.pop %v2215
      %v2217 = vsel %vm2000, %v2214, 0.0
      %2218 = vadd.xlane.f32.xlu0 %v2217
      %v2219 = vpop.xlane.xlu0 %2218
      %v2220 = vsel %vm2000, %v2216, 0.0
      %2221 = vadd.xlane.f32.xlu0 %v2220
      %v2222 = vpop.xlane.xlu0 %2221
      %v2223 = vrcp.pop %v2219
      %v2224 = vrcp.pop %v2222
      %v2225 = vmul.f32 %v2214, %v2223
      %v2226 = vmul.f32 %v2216, %v2224
      %v2227 = vpack.c.bf16 %v2225, %v2225
      %v2228 = vpack.c.bf16 %v2226, %v2226
      %v2230 = vsel %vm2000, %v2227, 0
      %v2233 = vsel %vm2028, %v2123, 0
      %2235 = vmatprep.subr.bf16.mxu0 0
      %2236 = vmatpush1.bf16.msra.mxu0 %v2233
      %2237 = vmatprep.subr.bf16.mxu0 0
      %2238 = vmatpush1.bf16.msra.mxu0 0
      %2239 = vmatprep.subr.bf16.mxu0 0
      %2240 = vmatpush1.bf16.msra.mxu0 0
      %2241 = vmatprep.subr.bf16.mxu0 0
      %2242 = vmatpush1.bf16.msra.mxu0 0
      %2243 = vmatprep.subr.bf16.mxu0 0
      %2244 = vmatpush1.bf16.msra.mxu0 0
      %2245 = vmatprep.subr.bf16.mxu0 0
      %2246 = vmatpush1.bf16.msra.mxu0 0
      %2247 = vmatprep.subr.bf16.mxu0 0
      %2248 = vmatpush1.bf16.msra.mxu0 0
      %2249 = vmatprep.subr.bf16.mxu0 0
      %2250 = vmatpush1.bf16.msra.mxu0 0
      %2251 = vmatprep.subr.bf16.mxu0 0
      %2252 = vmatpush1.bf16.msra.mxu0 0
      %2253 = vmatprep.subr.bf16.mxu0 0
      %2254 = vmatpush1.bf16.msra.mxu0 0
      %2255 = vmatprep.subr.bf16.mxu0 0
      %2256 = vmatpush1.bf16.msra.mxu0 0
      %2257 = vmatprep.subr.bf16.mxu0 0
      %2258 = vmatpush1.bf16.msra.mxu0 0
      %2259 = vmatprep.subr.bf16.mxu0 0
      %2260 = vmatpush1.bf16.msra.mxu0 0
      %2261 = vmatprep.subr.bf16.mxu0 0
      %2262 = vmatpush1.bf16.msra.mxu0 0
      %2263 = vmatprep.subr.bf16.mxu0 0
      %2264 = vmatpush1.bf16.msra.mxu0 0
      %2265 = vmatprep.subr.bf16.mxu0 0
      %2266 = vmatpush1.bf16.msra.mxu0 0
      %2267 = vmatprep.mubr.bf16.mxu0 0
      %2268 = vmatmul.mubr.bf16.gmra.mrb[0].mxu0 %v2230
      %v2269 = vpop.f32.mrb[0].mxu0
      %v2270 = vadd.f32 0.0, %v2269
      %v2271 = vpop.f32.mrb[0].mxu0
      %v2272 = vpop.f32.mrb[0].mxu0
      %v2273 = vpop.f32.mrb[0].mxu0
      %2274 = vdwg.mxu0
      %v2276 = vsel %vm2000, %v2228, 0
      %v2279 = vsel %vm2028, %v2124, 0
      %2281 = vmatprep.subr.bf16.mxu0 0
      %2282 = vmatpush1.bf16.msra.mxu0 %v2279
      %2283 = vmatprep.subr.bf16.mxu0 0
      %2284 = vmatpush1.bf16.msra.mxu0 0
      %2285 = vmatprep.subr.bf16.mxu0 0
      %2286 = vmatpush1.bf16.msra.mxu0 0
      %2287 = vmatprep.subr.bf16.mxu0 0
      %2288 = vmatpush1.bf16.msra.mxu0 0
      %2289 = vmatprep.subr.bf16.mxu0 0
      %2290 = vmatpush1.bf16.msra.mxu0 0
      %2291 = vmatprep.subr.bf16.mxu0 0
      %2292 = vmatpush1.bf16.msra.mxu0 0
      %2293 = vmatprep.subr.bf16.mxu0 0
      %2294 = vmatpush1.bf16.msra.mxu0 0
      %2295 = vmatprep.subr.bf16.mxu0 0
      %2296 = vmatpush1.bf16.msra.mxu0 0
      %2297 = vmatprep.subr.bf16.mxu0 0
      %2298 = vmatpush1.bf16.msra.mxu0 0
      %2299 = vmatprep.subr.bf16.mxu0 0
      %2300 = vmatpush1.bf16.msra.mxu0 0
      %2301 = vmatprep.subr.bf16.mxu0 0
      %2302 = vmatpush1.bf16.msra.mxu0 0
      %2303 = vmatprep.subr.bf16.mxu0 0
      %2304 = vmatpush1.bf16.msra.mxu0 0
      %2305 = vmatprep.subr.bf16.mxu0 0
      %2306 = vmatpush1.bf16.msra.mxu0 0
      %2307 = vmatprep.subr.bf16.mxu0 0
      %2308 = vmatpush1.bf16.msra.mxu0 0
      %2309 = vmatprep.subr.bf16.mxu0 0
      %2310 = vmatpush1.bf16.msra.mxu0 0
      %2311 = vmatprep.subr.bf16.mxu0 0
      %2312 = vmatpush1.bf16.msra.mxu0 0
      %2313 = vmatprep.mubr.bf16.mxu0 0
      %2314 = vmatmul.mubr.bf16.gmra.mrb[0].mxu0 %v2276
      %v2315 = vpop.f32.mrb[0].mxu0
      %v2316 = vadd.f32 0.0, %v2315
      %v2317 = vpop.f32.mrb[0].mxu0
      %v2318 = vpop.f32.mrb[0].mxu0
      %v2319 = vpop.f32.mrb[0].mxu0
      %2320 = vdwg.mxu0
      %v2321 = vpack.c.bf16 %v2316, %v2270
      %v2322 = vpack.c.bf16 %v1646, %v1646
      %v2323 = vpack.c.bf16 %v1650, %v1650
      %v2324 = vpack.c.bf16 %v1734, %v1734
      %v2325 = vpack.c.bf16 %v1738, %v1738
      %v2326 = vpack.c.bf16 %v1902, %v1902
      %v2327 = vpack.c.bf16 %v1905, %v1905
      %2328 = vmatprep.subr.bf16.mxu0 0
      %2329 = vmatpush1.bf16.xpose.msra.mxu0 %v2324
      %2330 = vmatprep.subr.bf16.mxu0 0
      %2331 = vmatpush1.bf16.xpose.msra.mxu0 0
      %2332 = vmatprep.subr.bf16.mxu0 0
      %2333 = vmatpush1.bf16.xpose.msra.mxu0 0
      %2334 = vmatprep.subr.bf16.mxu0 0
      %2335 = vmatpush1.bf16.xpose.msra.mxu0 0
      %2336 = vmatprep.subr.bf16.mxu0 0
      %2337 = vmatpush1.bf16.xpose.msra.mxu0 0
      %2338 = vmatprep.subr.bf16.mxu0 0
      %2339 = vmatpush1.bf16.xpose.msra.mxu0 0
      %2340 = vmatprep.subr.bf16.mxu0 0
      %2341 = vmatpush1.bf16.xpose.msra.mxu0 0
      %2342 = vmatprep.subr.bf16.mxu0 0
      %2343 = vmatpush1.bf16.xpose.msra.mxu0 0
      %2344 = vmatprep.subr.bf16.mxu0 0
      %2345 = vmatpush1.bf16.xpose.msra.mxu0 0
      %2346 = vmatprep.subr.bf16.mxu0 0
      %2347 = vmatpush1.bf16.xpose.msra.mxu0 0
      %2348 = vmatprep.subr.bf16.mxu0 0
      %2349 = vmatpush1.bf16.xpose.msra.mxu0 0
      %2350 = vmatprep.subr.bf16.mxu0 0
      %2351 = vmatpush1.bf16.xpose.msra.mxu0 0
      %2352 = vmatprep.subr.bf16.mxu0 0
      %2353 = vmatpush1.bf16.xpose.msra.mxu0 0
      %2354 = vmatprep.subr.bf16.mxu0 0
      %2355 = vmatpush1.bf16.xpose.msra.mxu0 0
      %2356 = vmatprep.subr.bf16.mxu0 0
      %2357 = vmatpush1.bf16.xpose.msra.mxu0 0
      %2358 = vmatprep.subr.bf16.mxu0 0
      %2359 = vmatpush1.bf16.xpose.msra.mxu0 0
      %2360 = vmatprep.mubr.bf16.mxu0 0
      %2361 = vmatmul.mubr.bf16.gmra.mrb[0].mxu0 %v2322
      %v2362 = vpop.f32.mrb[0].mxu0
      %v2363 = vadd.f32 %v1913, %v2362
      %v2364 = vpop.f32.mrb[0].mxu0
      %v2365 = vpop.f32.mrb[0].mxu0
      %v2366 = vpop.f32.mrb[0].mxu0
      %2367 = vdwg.mxu0
      %2368 = vmatprep.subr.bf16.mxu0 0
      %2369 = vmatpush1.bf16.xpose.msra.mxu0 %v2325
      %2370 = vmatprep.subr.bf16.mxu0 0
      %2371 = vmatpush1.bf16.xpose.msra.mxu0 0
      %2372 = vmatprep.subr.bf16.mxu0 0
      %2373 = vmatpush1.bf16.xpose.msra.mxu0 0
      %2374 = vmatprep.subr.bf16.mxu0 0
      %2375 = vmatpush1.bf16.xpose.msra.mxu0 0
      %2376 = vmatprep.subr.bf16.mxu0 0
      %2377 = vmatpush1.bf16.xpose.msra.mxu0 0
      %2378 = vmatprep.subr.bf16.mxu0 0
      %2379 = vmatpush1.bf16.xpose.msra.mxu0 0
      %2380 = vmatprep.subr.bf16.mxu0 0
      %2381 = vmatpush1.bf16.xpose.msra.mxu0 0
      %2382 = vmatprep.subr.bf16.mxu0 0
      %2383 = vmatpush1.bf16.xpose.msra.mxu0 0
      %2384 = vmatprep.subr.bf16.mxu0 0
      %2385 = vmatpush1.bf16.xpose.msra.mxu0 0
      %2386 = vmatprep.subr.bf16.mxu0 0
      %2387 = vmatpush1.bf16.xpose.msra.mxu0 0
      %2388 = vmatprep.subr.bf16.mxu0 0
      %2389 = vmatpush1.bf16.xpose.msra.mxu0 0
      %2390 = vmatprep.subr.bf16.mxu0 0
      %2391 = vmatpush1.bf16.xpose.msra.mxu0 0
      %2392 = vmatprep.subr.bf16.mxu0 0
      %2393 = vmatpush1.bf16.xpose.msra.mxu0 0
      %2394 = vmatprep.subr.bf16.mxu0 0
      %2395 = vmatpush1.bf16.xpose.msra.mxu0 0
      %2396 = vmatprep.subr.bf16.mxu0 0
      %2397 = vmatpush1.bf16.xpose.msra.mxu0 0
      %2398 = vmatprep.subr.bf16.mxu0 0
      %2399 = vmatpush1.bf16.xpose.msra.mxu0 0
      %2400 = vmatprep.mubr.bf16.mxu0 0
      %2401 = vmatmul.mubr.bf16.gmra.mrb[0].mxu0 %v2323
      %v2402 = vpop.f32.mrb[0].mxu0
      %v2403 = vadd.f32 %v1913, %v2402
      %v2404 = vpop.f32.mrb[0].mxu0
      %v2405 = vpop.f32.mrb[0].mxu0
      %v2406 = vpop.f32.mrb[0].mxu0
      %2407 = vdwg.mxu0
      %v2408 = vsel %vm2000, %v2363, -inf
      %2409 = vmax.xlane.f32.xlu0 %v2408
      %v2410 = vpop.xlane.xlu0 %2409
      %v2411 = vsel %vm2000, %v2403, -inf
      %2412 = vmax.xlane.f32.xlu0 %v2411
      %v2413 = vpop.xlane.xlu0 %2412
      %v2414 = vsub.f32 %v2363, %v2410
      %v2415 = vsub.f32 %v2403, %v2413
      %v2416 = vmul.f32 %v2414, 1.442695
      %v2417 = vpow.pop %v2416
      %v2418 = vmul.f32 %v2415, 1.442695
      %v2419 = vpow.pop %v2418
      %v2420 = vsel %vm2000, %v2417, 0.0
      %2421 = vadd.xlane.f32.xlu0 %v2420
      %v2422 = vpop.xlane.xlu0 %2421
      %v2423 = vsel %vm2000, %v2419, 0.0
      %2424 = vadd.xlane.f32.xlu0 %v2423
      %v2425 = vpop.xlane.xlu0 %2424
      %v2426 = vrcp.pop %v2422
      %v2427 = vrcp.pop %v2425
      %v2428 = vmul.f32 %v2417, %v2426
      %v2429 = vmul.f32 %v2419, %v2427
      %v2430 = vpack.c.bf16 %v2428, %v2428
      %v2431 = vpack.c.bf16 %v2429, %v2429
      %v2433 = vsel %vm2000, %v2430, 0
      %v2436 = vsel %vm2028, %v2326, 0
      %2438 = vmatprep.subr.bf16.mxu0 0
      %2439 = vmatpush1.bf16.msra.mxu0 %v2436
      %2440 = vmatprep.subr.bf16.mxu0 0
      %2441 = vmatpush1.bf16.msra.mxu0 0
      %2442 = vmatprep.subr.bf16.mxu0 0
      %2443 = vmatpush1.bf16.msra.mxu0 0
      %2444 = vmatprep.subr.bf16.mxu0 0
      %2445 = vmatpush1.bf16.msra.mxu0 0
      %2446 = vmatprep.subr.bf16.mxu0 0
      %2447 = vmatpush1.bf16.msra.mxu0 0
      %2448 = vmatprep.subr.bf16.mxu0 0
      %2449 = vmatpush1.bf16.msra.mxu0 0
      %2450 = vmatprep.subr.bf16.mxu0 0
      %2451 = vmatpush1.bf16.msra.mxu0 0
      %2452 = vmatprep.subr.bf16.mxu0 0
      %2453 = vmatpush1.bf16.msra.mxu0 0
      %2454 = vmatprep.subr.bf16.mxu0 0
      %2455 = vmatpush1.bf16.msra.mxu0 0
      %2456 = vmatprep.subr.bf16.mxu0 0
      %2457 = vmatpush1.bf16.msra.mxu0 0
      %2458 = vmatprep.subr.bf16.mxu0 0
      %2459 = vmatpush1.bf16.msra.mxu0 0
      %2460 = vmatprep.subr.bf16.mxu0 0
      %2461 = vmatpush1.bf16.msra.mxu0 0
      %2462 = vmatprep.subr.bf16.mxu0 0
      %2463 = vmatpush1.bf16.msra.mxu0 0
      %2464 = vmatprep.subr.bf16.mxu0 0
      %2465 = vmatpush1.bf16.msra.mxu0 0
      %2466 = vmatprep.subr.bf16.mxu0 0
      %2467 = vmatpush1.bf16.msra.mxu0 0
      %2468 = vmatprep.subr.bf16.mxu0 0
      %2469 = vmatpush1.bf16.msra.mxu0 0
      %2470 = vmatprep.mubr.bf16.mxu0 0
      %2471 = vmatmul.mubr.bf16.gmra.mrb[0].mxu0 %v2433
      %v2472 = vpop.f32.mrb[0].mxu0
      %v2473 = vadd.f32 0.0, %v2472
      %v2474 = vpop.f32.mrb[0].mxu0
      %v2475 = vpop.f32.mrb[0].mxu0
      %v2476 = vpop.f32.mrb[0].mxu0
      %2477 = vdwg.mxu0
      %v2479 = vsel %vm2000, %v2431, 0
      %v2482 = vsel %vm2028, %v2327, 0
      %2484 = vmatprep.subr.bf16.mxu0 0
      %2485 = vmatpush1.bf16.msra.mxu0 %v2482
      %2486 = vmatprep.subr.bf16.mxu0 0
      %2487 = vmatpush1.bf16.msra.mxu0 0
      %2488 = vmatprep.subr.bf16.mxu0 0
      %2489 = vmatpush1.bf16.msra.mxu0 0
      %2490 = vmatprep.subr.bf16.mxu0 0
      %2491 = vmatpush1.bf16.msra.mxu0 0
      %2492 = vmatprep.subr.bf16.mxu0 0
      %2493 = vmatpush1.bf16.msra.mxu0 0
      %2494 = vmatprep.subr.bf16.mxu0 0
      %2495 = vmatpush1.bf16.msra.mxu0 0
      %2496 = vmatprep.subr.bf16.mxu0 0
      %2497 = vmatpush1.bf16.msra.mxu0 0
      %2498 = vmatprep.subr.bf16.mxu0 0
      %2499 = vmatpush1.bf16.msra.mxu0 0
      %2500 = vmatprep.subr.bf16.mxu0 0
      %2501 = vmatpush1.bf16.msra.mxu0 0
      %2502 = vmatprep.subr.bf16.mxu0 0
      %2503 = vmatpush1.bf16.msra.mxu0 0
      %2504 = vmatprep.subr.bf16.mxu0 0
      %2505 = vmatpush1.bf16.msra.mxu0 0
      %2506 = vmatprep.subr.bf16.mxu0 0
      %2507 = vmatpush1.bf16.msra.mxu0 0
      %2508 = vmatprep.subr.bf16.mxu0 0
      %2509 = vmatpush1.bf16.msra.mxu0 0
      %2510 = vmatprep.subr.bf16.mxu0 0
      %2511 = vmatpush1.bf16.msra.mxu0 0
      %2512 = vmatprep.subr.bf16.mxu0 0
      %2513 = vmatpush1.bf16.msra.mxu0 0
      %2514 = vmatprep.subr.bf16.mxu0 0
      %2515 = vmatpush1.bf16.msra.mxu0 0
      %2516 = vmatprep.mubr.bf16.mxu0 0
      %2517 = vmatmul.mubr.bf16.gmra.mrb[0].mxu0 %v2479
      %v2518 = vpop.f32.mrb[0].mxu0
      %v2519 = vadd.f32 0.0, %v2518
      %v2520 = vpop.f32.mrb[0].mxu0
      %v2521 = vpop.f32.mrb[0].mxu0
      %v2522 = vpop.f32.mrb[0].mxu0
      %2523 = vdwg.mxu0
      %v2524 = vpack.c.bf16 %v2519, %v2473
      %v2525 = vld [vmem:[#allocation6] sm:$0xff]
      %v2526 = vld [vmem:[#allocation6 + $0x8] sm:$0xf]
      %v2527 = vld [vmem:[#allocation6 + $0xc] sm:$0xff]
      %v2528 = vld [vmem:[#allocation6 + $0x14] sm:$0xf]
      %v2529 = vld [vmem:[#allocation6 + $0x18] sm:$0xff]
      %v2530 = vld [vmem:[#allocation6 + $0x20] sm:$0xf]
      %v2531 = vld [vmem:[#allocation6 + $0x24] sm:$0xff]
      %v2532 = vld [vmem:[#allocation6 + $0x2c] sm:$0xf]
      %v2533 = vld [vmem:[#allocation6 + $0x30] sm:$0xff]
      %v2534 = vld [vmem:[#allocation6 + $0x38] sm:$0xf]
      %v2535 = vld [vmem:[#allocation6 + $0x3c] sm:$0xff]
      %v2536 = vld [vmem:[#allocation6 + $0x44] sm:$0xf]
      %v2537 = vld [vmem:[#allocation6 + $0x48] sm:$0xff]
      %v2538 = vld [vmem:[#allocation6 + $0x50] sm:$0xf]
      %v2539 = vld [vmem:[#allocation6 + $0x54] sm:$0xff]
      %v2540 = vld [vmem:[#allocation6 + $0x5c] sm:$0xf]
      %v2541 = vld [vmem:[#allocation6 + $0x60] sm:$0xff]
      %v2542 = vld [vmem:[#allocation6 + $0x68] sm:$0xf]
      %v2543 = vld [vmem:[#allocation6 + $0x6c] sm:$0xff]
      %v2544 = vld [vmem:[#allocation6 + $0x74] sm:$0xf]
      %v2545 = vld [vmem:[#allocation6 + $0x78] sm:$0xff]
      %v2546 = vld [vmem:[#allocation6 + $0x80] sm:$0xf]
      %v2547 = vld [vmem:[#allocation6 + $0x84] sm:$0xff]
      %v2548 = vld [vmem:[#allocation6 + $0x8c] sm:$0xf]
      %v2549 = vld [vmem:[#allocation6 + $0x90] sm:$0xff]
      %v2550 = vld [vmem:[#allocation6 + $0x98] sm:$0xf]
      %v2551 = vld [vmem:[#allocation6 + $0x9c] sm:$0xff]
      %v2552 = vld [vmem:[#allocation6 + $0xa4] sm:$0xf]
      %v2553 = vld [vmem:[#allocation6 + $0xa8] sm:$0xff]
      %v2554 = vld [vmem:[#allocation6 + $0xb0] sm:$0xf]
      %v2555 = vld [vmem:[#allocation6 + $0xb4] sm:$0xff]
      %v2556 = vld [vmem:[#allocation6 + $0xbc] sm:$0xf]
      %v2557 = vld [vmem:[#allocation6 + $0xc0] sm:$0xff]
      %v2558 = vld [vmem:[#allocation6 + $0xc8] sm:$0xf]
      %v2559 = vld [vmem:[#allocation6 + $0xcc] sm:$0xff]
      %v2560 = vld [vmem:[#allocation6 + $0xd4] sm:$0xf]
      %v2561 = vld [vmem:[#allocation6 + $0xd8] sm:$0xff]
      %v2562 = vld [vmem:[#allocation6 + $0xe0] sm:$0xf]
      %v2563 = vld [vmem:[#allocation6 + $0xe4] sm:$0xff]
      %v2564 = vld [vmem:[#allocation6 + $0xec] sm:$0xf]
      %v2565 = vld [vmem:[#allocation6 + $0xf0] sm:$0xff]
      %v2566 = vld [vmem:[#allocation6 + $0xf8] sm:$0xf]
      %v2567 = vld [vmem:[#allocation6 + $0xfc] sm:$0xff]
      %v2568 = vld [vmem:[#allocation6 + $0x104] sm:$0xf]
      %v2569 = vld [vmem:[#allocation6 + $0x108] sm:$0xff]
      %v2570 = vld [vmem:[#allocation6 + $0x110] sm:$0xf]
      %v2571 = vld [vmem:[#allocation6 + $0x114] sm:$0xff]
      %v2572 = vld [vmem:[#allocation6 + $0x11c] sm:$0xf]
      %v2573 = vld [vmem:[#allocation6 + $0x120] sm:$0xff]
      %v2574 = vld [vmem:[#allocation6 + $0x128] sm:$0xf]
      %v2575 = vld [vmem:[#allocation6 + $0x12c] sm:$0xff]
      %v2576 = vld [vmem:[#allocation6 + $0x134] sm:$0xf]
      %v2577 = vld [vmem:[#allocation6 + $0x138] sm:$0xff]
      %v2578 = vld [vmem:[#allocation6 + $0x140] sm:$0xf]
      %v2579 = vld [vmem:[#allocation6 + $0x144] sm:$0xff]
      %v2580 = vld [vmem:[#allocation6 + $0x14c] sm:$0xf]
      %v2581 = vld [vmem:[#allocation6 + $0x150] sm:$0xff]
      %v2582 = vld [vmem:[#allocation6 + $0x158] sm:$0xf]
      %v2583 = vld [vmem:[#allocation6 + $0x15c] sm:$0xff]
      %v2584 = vld [vmem:[#allocation6 + $0x164] sm:$0xf]
      %v2585 = vld [vmem:[#allocation6 + $0x168] sm:$0xff]
      %v2586 = vld [vmem:[#allocation6 + $0x170] sm:$0xf]
      %v2587 = vld [vmem:[#allocation6 + $0x174] sm:$0xff]
      %v2588 = vld [vmem:[#allocation6 + $0x17c] sm:$0xf]
      %v2589 = vld [vmem:[#allocation6 + $0x180] sm:$0xff]
      %v2590 = vld [vmem:[#allocation6 + $0x188] sm:$0xf]
      %v2591 = vld [vmem:[#allocation6 + $0x18c] sm:$0xff]
      %v2592 = vld [vmem:[#allocation6 + $0x194] sm:$0xf]
      %v2593 = vld [vmem:[#allocation6 + $0x198] sm:$0xff]
      %v2594 = vld [vmem:[#allocation6 + $0x1a0] sm:$0xf]
      %v2595 = vld [vmem:[#allocation6 + $0x1a4] sm:$0xff]
      %v2596 = vld [vmem:[#allocation6 + $0x1ac] sm:$0xf]
      %v2597 = vld [vmem:[#allocation6 + $0x1b0] sm:$0xff]
      %v2598 = vld [vmem:[#allocation6 + $0x1b8] sm:$0xf]
      %v2599 = vld [vmem:[#allocation6 + $0x1bc] sm:$0xff]
      %v2600 = vld [vmem:[#allocation6 + $0x1c4] sm:$0xf]
      %v2601 = vld [vmem:[#allocation6 + $0x1c8] sm:$0xff]
      %v2602 = vld [vmem:[#allocation6 + $0x1d0] sm:$0xf]
      %v2603 = vld [vmem:[#allocation6 + $0x1d4] sm:$0xff]
      %v2604 = vld [vmem:[#allocation6 + $0x1dc] sm:$0xf]
      %v2605 = vld [vmem:[#allocation6 + $0x1e0] sm:$0xff]
      %v2606 = vld [vmem:[#allocation6 + $0x1e8] sm:$0xf]
      %v2607 = vld [vmem:[#allocation6 + $0x1ec] sm:$0xff]
      %v2608 = vld [vmem:[#allocation6 + $0x1f4] sm:$0xf]
      %v2609 = vld [vmem:[#allocation6 + $0x1f8] sm:$0xff]
      %v2610 = vld [vmem:[#allocation6 + $0x200] sm:$0xf]
      %v2611 = vld [vmem:[#allocation6 + $0x204] sm:$0xff]
      %v2612 = vld [vmem:[#allocation6 + $0x20c] sm:$0xf]
      %v2613 = vld [vmem:[#allocation6 + $0x210] sm:$0xff]
      %v2614 = vld [vmem:[#allocation6 + $0x218] sm:$0xf]
      %v2615 = vld [vmem:[#allocation6 + $0x21c] sm:$0xff]
      %v2616 = vld [vmem:[#allocation6 + $0x224] sm:$0xf]
      %v2617 = vld [vmem:[#allocation6 + $0x228] sm:$0xff]
      %v2618 = vld [vmem:[#allocation6 + $0x230] sm:$0xf]
      %v2619 = vld [vmem:[#allocation6 + $0x234] sm:$0xff]
      %v2620 = vld [vmem:[#allocation6 + $0x23c] sm:$0xf]
      %v2621 = vld [vmem:[%s5] sm:$0x7]
      %v2623 = vlaneseq
      %v2624 = vshrl.u32 %v2623, 7
      %v2625 = vsub.s32 0, %v2624
      %v2626 = vrot.slane %v2621, %v2625
      %v2627 = vlaneseq
      %v2628 = vshrl.u32 %v2627, 7
      %v2629 = vsub.s32 1, %v2628
      %v2630 = vrot.slane %v2621, %v2629
      %v2631 = vlaneseq
      %v2632 = vshrl.u32 %v2631, 7
      %v2633 = vsub.s32 2, %v2632
      %v2634 = vrot.slane %v2621, %v2633
      %v2734 = vunpack.c.l.b16 %v2525
      %v2735 = vunpack.c.h.b16 %v2525
      %v2736 = vunpack.c.l.b16 %v2526
      %v2737 = vunpack.c.l.b16 %v2527
      %v2738 = vunpack.c.h.b16 %v2527
      %v2739 = vunpack.c.l.b16 %v2528
      %v2740 = vunpack.c.l.b16 %v2529
      %v2741 = vunpack.c.h.b16 %v2529
      %v2742 = vunpack.c.l.b16 %v2530
      %v2743 = vunpack.c.l.b16 %v2531
      %v2744 = vunpack.c.h.b16 %v2531
      %v2745 = vunpack.c.l.b16 %v2532
      %v2746 = vunpack.c.l.b16 %v2533
      %v2747 = vunpack.c.h.b16 %v2533
      %v2748 = vunpack.c.l.b16 %v2534
      %v2749 = vunpack.c.l.b16 %v2535
      %v2750 = vunpack.c.h.b16 %v2535
      %v2751 = vunpack.c.l.b16 %v2536
      %v2752 = vunpack.c.l.b16 %v2537
      %v2753 = vunpack.c.h.b16 %v2537
      %v2754 = vunpack.c.l.b16 %v2538
      %v2755 = vunpack.c.l.b16 %v2539
      %v2756 = vunpack.c.h.b16 %v2539
      %v2757 = vunpack.c.l.b16 %v2540
      %v2758 = vunpack.c.l.b16 %v2541
      %v2759 = vunpack.c.h.b16 %v2541
      %v2760 = vunpack.c.l.b16 %v2542
      %v2761 = vunpack.c.l.b16 %v2543
      %v2762 = vunpack.c.h.b16 %v2543
      %v2763 = vunpack.c.l.b16 %v2544
      %v2764 = vunpack.c.l.b16 %v2545
      %v2765 = vunpack.c.h.b16 %v2545
      %v2766 = vunpack.c.l.b16 %v2546
      %v2767 = vunpack.c.l.b16 %v2547
      %v2768 = vunpack.c.h.b16 %v2547
      %v2769 = vunpack.c.l.b16 %v2548
      %v2770 = vunpack.c.l.b16 %v2549
      %v2771 = vunpack.c.h.b16 %v2549
      %v2772 = vunpack.c.l.b16 %v2550
      %v2773 = vunpack.c.l.b16 %v2551
      %v2774 = vunpack.c.h.b16 %v2551
      %v2775 = vunpack.c.l.b16 %v2552
      %v2776 = vunpack.c.l.b16 %v2553
      %v2777 = vunpack.c.h.b16 %v2553
      %v2778 = vunpack.c.l.b16 %v2554
      %v2779 = vunpack.c.l.b16 %v2555
      %v2780 = vunpack.c.h.b16 %v2555
      %v2781 = vunpack.c.l.b16 %v2556
      %v2782 = vunpack.c.l.b16 %v2557
      %v2783 = vunpack.c.h.b16 %v2557
      %v2784 = vunpack.c.l.b16 %v2558
      %v2785 = vunpack.c.l.b16 %v2559
      %v2786 = vunpack.c.h.b16 %v2559
      %v2787 = vunpack.c.l.b16 %v2560
      %v2788 = vunpack.c.l.b16 %v2561
      %v2789 = vunpack.c.h.b16 %v2561
      %v2790 = vunpack.c.l.b16 %v2562
      %v2791 = vunpack.c.l.b16 %v2563
      %v2792 = vunpack.c.h.b16 %v2563
      %v2793 = vunpack.c.l.b16 %v2564
      %v2794 = vunpack.c.l.b16 %v2565
      %v2795 = vunpack.c.h.b16 %v2565
      %v2796 = vunpack.c.l.b16 %v2566
      %v2797 = vunpack.c.l.b16 %v2567
      %v2798 = vunpack.c.h.b16 %v2567
      %v2799 = vunpack.c.l.b16 %v2568
      %v2800 = vunpack.c.l.b16 %v2569
      %v2801 = vunpack.c.h.b16 %v2569
      %v2802 = vunpack.c.l.b16 %v2570
      %v2803 = vunpack.c.l.b16 %v2571
      %v2804 = vunpack.c.h.b16 %v2571
      %v2805 = vunpack.c.l.b16 %v2572
      %v2806 = vunpack.c.l.b16 %v2573
      %v2807 = vunpack.c.h.b16 %v2573
      %v2808 = vunpack.c.l.b16 %v2574
      %v2809 = vunpack.c.l.b16 %v2575
      %v2810 = vunpack.c.h.b16 %v2575
      %v2811 = vunpack.c.l.b16 %v2576
      %v2812 = vunpack.c.l.b16 %v2577
      %v2813 = vunpack.c.h.b16 %v2577
      %v2814 = vunpack.c.l.b16 %v2578
      %v2815 = vunpack.c.l.b16 %v2579
      %v2816 = vunpack.c.h.b16 %v2579
      %v2817 = vunpack.c.l.b16 %v2580
      %v2818 = vunpack.c.l.b16 %v2581
      %v2819 = vunpack.c.h.b16 %v2581
      %v2820 = vunpack.c.l.b16 %v2582
      %v2821 = vunpack.c.l.b16 %v2583
      %v2822 = vunpack.c.h.b16 %v2583
      %v2823 = vunpack.c.l.b16 %v2584
      %v2824 = vunpack.c.l.b16 %v2585
      %v2825 = vunpack.c.h.b16 %v2585
      %v2826 = vunpack.c.l.b16 %v2586
      %v2827 = vunpack.c.l.b16 %v2587
      %v2828 = vunpack.c.h.b16 %v2587
      %v2829 = vunpack.c.l.b16 %v2588
      %v2830 = vunpack.c.l.b16 %v2589
      %v2831 = vunpack.c.h.b16 %v2589
      %v2832 = vunpack.c.l.b16 %v2590
      %v2833 = vunpack.c.l.b16 %v2591
      %v2834 = vunpack.c.h.b16 %v2591
      %v2835 = vunpack.c.l.b16 %v2592
      %v2836 = vunpack.c.l.b16 %v2593
      %v2837 = vunpack.c.h.b16 %v2593
      %v2838 = vunpack.c.l.b16 %v2594
      %v2839 = vunpack.c.l.b16 %v2595
      %v2840 = vunpack.c.h.b16 %v2595
      %v2841 = vunpack.c.l.b16 %v2596
      %v2842 = vunpack.c.l.b16 %v2597
      %v2843 = vunpack.c.h.b16 %v2597
      %v2844 = vunpack.c.l.b16 %v2598
      %v2845 = vunpack.c.l.b16 %v2599
      %v2846 = vunpack.c.h.b16 %v2599
      %v2847 = vunpack.c.l.b16 %v2600
      %v2848 = vunpack.c.l.b16 %v2601
      %v2849 = vunpack.c.h.b16 %v2601
      %v2850 = vunpack.c.l.b16 %v2602
      %v2851 = vunpack.c.l.b16 %v2603
      %v2852 = vunpack.c.h.b16 %v2603
      %v2853 = vunpack.c.l.b16 %v2604
      %v2854 = vunpack.c.l.b16 %v2605
      %v2855 = vunpack.c.h.b16 %v2605
      %v2856 = vunpack.c.l.b16 %v2606
      %v2857 = vunpack.c.l.b16 %v2607
      %v2858 = vunpack.c.h.b16 %v2607
      %v2859 = vunpack.c.l.b16 %v2608
      %v2860 = vunpack.c.l.b16 %v2609
      %v2861 = vunpack.c.h.b16 %v2609
      %v2862 = vunpack.c.l.b16 %v2610
      %v2863 = vunpack.c.l.b16 %v2611
      %v2864 = vunpack.c.h.b16 %v2611
      %v2865 = vunpack.c.l.b16 %v2612
      %v2866 = vunpack.c.l.b16 %v2613
      %v2867 = vunpack.c.h.b16 %v2613
      %v2868 = vunpack.c.l.b16 %v2614
      %v2869 = vunpack.c.l.b16 %v2615
      %v2870 = vunpack.c.h.b16 %v2615
      %v2871 = vunpack.c.l.b16 %v2616
      %v2872 = vunpack.c.l.b16 %v2617
      %v2873 = vunpack.c.h.b16 %v2617
      %v2874 = vunpack.c.l.b16 %v2618
      %v2875 = vunpack.c.l.b16 %v2619
      %v2876 = vunpack.c.h.b16 %v2619
      %v2877 = vunpack.c.l.b16 %v2620
      %v2878 = vpack.c.b16 %v2737, %v2734
      %v2879 = vpack.c.b16 %v2738, %v2735
      %v2880 = vpack.c.b16 %v2739, %v2736
      %v2881 = vpack.c.b16 %v2743, %v2740
      %v2882 = vpack.c.b16 %v2744, %v2741
      %v2883 = vpack.c.b16 %v2745, %v2742
      %v2884 = vpack.c.b16 %v2749, %v2746
      %v2885 = vpack.c.b16 %v2750, %v2747
      %v2886 = vpack.c.b16 %v2751, %v2748
      %v2887 = vpack.c.b16 %v2755, %v2752
      %v2888 = vpack.c.b16 %v2756, %v2753
      %v2889 = vpack.c.b16 %v2757, %v2754
      %v2890 = vpack.c.b16 %v2761, %v2758
      %v2891 = vpack.c.b16 %v2762, %v2759
      %v2892 = vpack.c.b16 %v2763, %v2760
      %v2893 = vpack.c.b16 %v2767, %v2764
      %v2894 = vpack.c.b16 %v2768, %v2765
      %v2895 = vpack.c.b16 %v2769, %v2766
      %v2896 = vpack.c.b16 %v2773, %v2770
      %v2897 = vpack.c.b16 %v2774, %v2771
      %v2898 = vpack.c.b16 %v2775, %v2772
      %v2899 = vpack.c.b16 %v2779, %v2776
      %v2900 = vpack.c.b16 %v2780, %v2777
      %v2901 = vpack.c.b16 %v2781, %v2778
      %v2902 = vpack.c.b16 %v2785, %v2782
      %v2903 = vpack.c.b16 %v2786, %v2783
      %v2904 = vpack.c.b16 %v2787, %v2784
      %v2905 = vpack.c.b16 %v2791, %v2788
      %v2906 = vpack.c.b16 %v2792, %v2789
      %v2907 = vpack.c.b16 %v2793, %v2790
      %v2908 = vpack.c.b16 %v2797, %v2794
      %v2909 = vpack.c.b16 %v2798, %v2795
      %v2910 = vpack.c.b16 %v2799, %v2796
      %v2911 = vpack.c.b16 %v2803, %v2800
      %v2912 = vpack.c.b16 %v2804, %v2801
      %v2913 = vpack.c.b16 %v2805, %v2802
      %v2914 = vpack.c.b16 %v2809, %v2806
      %v2915 = vpack.c.b16 %v2810, %v2807
      %v2916 = vpack.c.b16 %v2811, %v2808
      %v2917 = vpack.c.b16 %v2815, %v2812
      %v2918 = vpack.c.b16 %v2816, %v2813
      %v2919 = vpack.c.b16 %v2817, %v2814
      %v2920 = vpack.c.b16 %v2821, %v2818
      %v2921 = vpack.c.b16 %v2822, %v2819
      %v2922 = vpack.c.b16 %v2823, %v2820
      %v2923 = vpack.c.b16 %v2827, %v2824
      %v2924 = vpack.c.b16 %v2828, %v2825
      %v2925 = vpack.c.b16 %v2829, %v2826
      %v2926 = vpack.c.b16 %v2833, %v2830
      %v2927 = vpack.c.b16 %v2834, %v2831
      %v2928 = vpack.c.b16 %v2835, %v2832
      %v2929 = vpack.c.b16 %v2839, %v2836
      %v2930 = vpack.c.b16 %v2840, %v2837
      %v2931 = vpack.c.b16 %v2841, %v2838
      %v2932 = vpack.c.b16 %v2845, %v2842
      %v2933 = vpack.c.b16 %v2846, %v2843
      %v2934 = vpack.c.b16 %v2847, %v2844
      %v2935 = vpack.c.b16 %v2851, %v2848
      %v2936 = vpack.c.b16 %v2852, %v2849
      %v2937 = vpack.c.b16 %v2853, %v2850
      %v2938 = vpack.c.b16 %v2857, %v2854
      %v2939 = vpack.c.b16 %v2858, %v2855
      %v2940 = vpack.c.b16 %v2859, %v2856
      %v2941 = vpack.c.b16 %v2863, %v2860
      %v2942 = vpack.c.b16 %v2864, %v2861
      %v2943 = vpack.c.b16 %v2865, %v2862
      %v2944 = vpack.c.b16 %v2869, %v2866
      %v2945 = vpack.c.b16 %v2870, %v2867
      %v2946 = vpack.c.b16 %v2871, %v2868
      %v2947 = vpack.c.b16 %v2875, %v2872
      %v2948 = vpack.c.b16 %v2876, %v2873
      %v2949 = vpack.c.b16 %v2877, %v2874
      %3022 = vmatprep.subr.bf16.mxu0 %v2879
      %3023 = vmatpush1.bf16.msra.mxu0 %v2878
      %3024 = vmatprep.subr.bf16.mxu0 %v2882
      %3025 = vmatpush1.bf16.msra.mxu0 %v2881
      %3026 = vmatprep.subr.bf16.mxu0 %v2885
      %3027 = vmatpush1.bf16.msra.mxu0 %v2884
      %3028 = vmatprep.subr.bf16.mxu0 %v2888
      %3029 = vmatpush1.bf16.msra.mxu0 %v2887
      %3030 = vmatprep.subr.bf16.mxu0 %v2891
      %3031 = vmatpush1.bf16.msra.mxu0 %v2890
      %3032 = vmatprep.subr.bf16.mxu0 %v2894
      %3033 = vmatpush1.bf16.msra.mxu0 %v2893
      %3034 = vmatprep.subr.bf16.mxu0 %v2897
      %3035 = vmatpush1.bf16.msra.mxu0 %v2896
      %3036 = vmatprep.subr.bf16.mxu0 %v2900
      %3037 = vmatpush1.bf16.msra.mxu0 %v2899
      %3038 = vmatprep.subr.bf16.mxu0 %v2903
      %3039 = vmatpush1.bf16.msra.mxu0 %v2902
      %3040 = vmatprep.subr.bf16.mxu0 %v2906
      %3041 = vmatpush1.bf16.msra.mxu0 %v2905
      %3042 = vmatprep.subr.bf16.mxu0 %v2909
      %3043 = vmatpush1.bf16.msra.mxu0 %v2908
      %3044 = vmatprep.subr.bf16.mxu0 %v2912
      %3045 = vmatpush1.bf16.msra.mxu0 %v2911
      %3046 = vmatprep.subr.bf16.mxu0 %v2915
      %3047 = vmatpush1.bf16.msra.mxu0 %v2914
      %3048 = vmatprep.subr.bf16.mxu0 %v2918
      %3049 = vmatpush1.bf16.msra.mxu0 %v2917
      %3050 = vmatprep.subr.bf16.mxu0 %v2921
      %3051 = vmatpush1.bf16.msra.mxu0 %v2920
      %3052 = vmatprep.subr.bf16.mxu0 %v2924
      %3053 = vmatpush1.bf16.msra.mxu0 %v2923
      %3054 = vmatprep.mubr.bf16.mxu0 %v2321
      %3055 = vmatmul.mubr.bf16.gmra.mrb[0].mxu0 %v2118
      %v3056 = vpop.f32.mrb[0].mxu0
      %v3057 = vadd.f32 %v2626, %v3056
      %v3058 = vpop.f32.mrb[0].mxu0
      %v3059 = vadd.f32 %v2630, %v3058
      %v3060 = vpop.f32.mrb[0].mxu0
      %v3061 = vadd.f32 %v2626, %v3060
      %v3062 = vpop.f32.mrb[0].mxu0
      %v3063 = vadd.f32 %v2630, %v3062
      %3064 = vdwg.mxu0
      %3065 = vmatprep.subr.bf16.mxu0 %v2927
      %3066 = vmatpush1.bf16.msra.mxu0 %v2926
      %3067 = vmatprep.subr.bf16.mxu0 %v2930
      %3068 = vmatpush1.bf16.msra.mxu0 %v2929
      %3069 = vmatprep.subr.bf16.mxu0 %v2933
      %3070 = vmatpush1.bf16.msra.mxu0 %v2932
      %3071 = vmatprep.subr.bf16.mxu0 %v2936
      %3072 = vmatpush1.bf16.msra.mxu0 %v2935
      %3073 = vmatprep.subr.bf16.mxu0 %v2939
      %3074 = vmatpush1.bf16.msra.mxu0 %v2938
      %3075 = vmatprep.subr.bf16.mxu0 %v2942
      %3076 = vmatpush1.bf16.msra.mxu0 %v2941
      %3077 = vmatprep.subr.bf16.mxu0 %v2945
      %3078 = vmatpush1.bf16.msra.mxu0 %v2944
      %3079 = vmatprep.subr.bf16.mxu0 %v2948
      %3080 = vmatpush1.bf16.msra.mxu0 %v2947
      %3081 = vmatprep.subr.bf16.mxu0 0
      %3082 = vmatpush1.bf16.msra.mxu0 0
      %3083 = vmatprep.subr.bf16.mxu0 0
      %3084 = vmatpush1.bf16.msra.mxu0 0
      %3085 = vmatprep.subr.bf16.mxu0 0
      %3086 = vmatpush1.bf16.msra.mxu0 0
      %3087 = vmatprep.subr.bf16.mxu0 0
      %3088 = vmatpush1.bf16.msra.mxu0 0
      %3089 = vmatprep.subr.bf16.mxu0 0
      %3090 = vmatpush1.bf16.msra.mxu0 0
      %3091 = vmatprep.subr.bf16.mxu0 0
      %3092 = vmatpush1.bf16.msra.mxu0 0
      %3093 = vmatprep.subr.bf16.mxu0 0
      %3094 = vmatpush1.bf16.msra.mxu0 0
      %3095 = vmatprep.subr.bf16.mxu0 0
      %3096 = vmatpush1.bf16.msra.mxu0 0
      %3097 = vmatprep.mubr.bf16.mxu0 0
      %3098 = vmatmul.mubr.bf16.gmra.mrb[0].mxu0 %v2524
      %v3099 = vpop.f32.mrb[0].mxu0
      %v3100 = vadd.f32 %v3057, %v3099
      %v3101 = vpop.f32.mrb[0].mxu0
      %v3102 = vadd.f32 %v3059, %v3101
      %v3103 = vpop.f32.mrb[0].mxu0
      %v3104 = vadd.f32 %v3061, %v3103
      %v3105 = vpop.f32.mrb[0].mxu0
      %v3106 = vadd.f32 %v3063, %v3105
      %3107 = vdwg.mxu0
      %3108 = vmatprep.subr.bf16.mxu0 0
      %3109 = vmatpush1.bf16.msra.mxu0 %v2880
      %3110 = vmatprep.subr.bf16.mxu0 0
      %3111 = vmatpush1.bf16.msra.mxu0 %v2883
      %3112 = vmatprep.subr.bf16.mxu0 0
      %3113 = vmatpush1.bf16.msra.mxu0 %v2886
      %3114 = vmatprep.subr.bf16.mxu0 0
      %3115 = vmatpush1.bf16.msra.mxu0 %v2889
      %3116 = vmatprep.subr.bf16.mxu0 0
      %3117 = vmatpush1.bf16.msra.mxu0 %v2892
      %3118 = vmatprep.subr.bf16.mxu0 0
      %3119 = vmatpush1.bf16.msra.mxu0 %v2895
      %3120 = vmatprep.subr.bf16.mxu0 0
      %3121 = vmatpush1.bf16.msra.mxu0 %v2898
      %3122 = vmatprep.subr.bf16.mxu0 0
      %3123 = vmatpush1.bf16.msra.mxu0 %v2901
      %3124 = vmatprep.subr.bf16.mxu0 0
      %3125 = vmatpush1.bf16.msra.mxu0 %v2904
      %3126 = vmatprep.subr.bf16.mxu0 0
      %3127 = vmatpush1.bf16.msra.mxu0 %v2907
      %3128 = vmatprep.subr.bf16.mxu0 0
      %3129 = vmatpush1.bf16.msra.mxu0 %v2910
      %3130 = vmatprep.subr.bf16.mxu0 0
      %3131 = vmatpush1.bf16.msra.mxu0 %v2913
      %3132 = vmatprep.subr.bf16.mxu0 0
      %3133 = vmatpush1.bf16.msra.mxu0 %v2916
      %3134 = vmatprep.subr.bf16.mxu0 0
      %3135 = vmatpush1.bf16.msra.mxu0 %v2919
      %3136 = vmatprep.subr.bf16.mxu0 0
      %3137 = vmatpush1.bf16.msra.mxu0 %v2922
      %3138 = vmatprep.subr.bf16.mxu0 0
      %3139 = vmatpush1.bf16.msra.mxu0 %v2925
      %3140 = vmatprep.mubr.bf16.mxu0 %v2321
      %3141 = vmatmul.mubr.bf16.gmra.mrb[0].mxu0 %v2118
      %v3142 = vpop.f32.mrb[0].mxu0
      %v3143 = vadd.f32 %v2634, %v3142
      %v3144 = vpop.f32.mrb[0].mxu0
      %v3145 = vpop.f32.mrb[0].mxu0
      %v3146 = vadd.f32 %v2634, %v3145
      %v3147 = vpop.f32.mrb[0].mxu0
      %3148 = vdwg.mxu0
      %3149 = vmatprep.subr.bf16.mxu0 0
      %3150 = vmatpush1.bf16.msra.mxu0 %v2928
      %3151 = vmatprep.subr.bf16.mxu0 0
      %3152 = vmatpush1.bf16.msra.mxu0 %v2931
      %3153 = vmatprep.subr.bf16.mxu0 0
      %3154 = vmatpush1.bf16.msra.mxu0 %v2934
      %3155 = vmatprep.subr.bf16.mxu0 0
      %3156 = vmatpush1.bf16.msra.mxu0 %v2937
      %3157 = vmatprep.subr.bf16.mxu0 0
      %3158 = vmatpush1.bf16.msra.mxu0 %v2940
      %3159 = vmatprep.subr.bf16.mxu0 0
      %3160 = vmatpush1.bf16.msra.mxu0 %v2943
      %3161 = vmatprep.subr.bf16.mxu0 0
      %3162 = vmatpush1.bf16.msra.mxu0 %v2946
      %3163 = vmatprep.subr.bf16.mxu0 0
      %3164 = vmatpush1.bf16.msra.mxu0 %v2949
      %3165 = vmatprep.subr.bf16.mxu0 0
      %3166 = vmatpush1.bf16.msra.mxu0 0
      %3167 = vmatprep.subr.bf16.mxu0 0
      %3168 = vmatpush1.bf16.msra.mxu0 0
      %3169 = vmatprep.subr.bf16.mxu0 0
      %3170 = vmatpush1.bf16.msra.mxu0 0
      %3171 = vmatprep.subr.bf16.mxu0 0
      %3172 = vmatpush1.bf16.msra.mxu0 0
      %3173 = vmatprep.subr.bf16.mxu0 0
      %3174 = vmatpush1.bf16.msra.mxu0 0
      %3175 = vmatprep.subr.bf16.mxu0 0
      %3176 = vmatpush1.bf16.msra.mxu0 0
      %3177 = vmatprep.subr.bf16.mxu0 0
      %3178 = vmatpush1.bf16.msra.mxu0 0
      %3179 = vmatprep.subr.bf16.mxu0 0
      %3180 = vmatpush1.bf16.msra.mxu0 0
      %3181 = vmatprep.mubr.bf16.mxu0 0
      %3182 = vmatmul.mubr.bf16.gmra.mrb[0].mxu0 %v2524
      %v3183 = vpop.f32.mrb[0].mxu0
      %v3184 = vadd.f32 %v3143, %v3183
      %v3185 = vpop.f32.mrb[0].mxu0
      %v3186 = vpop.f32.mrb[0].mxu0
      %v3187 = vadd.f32 %v3146, %v3186
      %v3188 = vpop.f32.mrb[0].mxu0
      %3189 = vdwg.mxu0
      %v3190 = vpack.c.bf16 %v3104, %v3100
      %v3191 = vpack.c.bf16 %v3106, %v3102
      %v3192 = vpack.c.bf16 %v3187, %v3184
      %3193 = vst [vmem:[#allocation2] sm:$0xff] %v3190
      %3194 = vst [vmem:[#allocation2 + $0x8] sm:$0xff] %v3191
      %3195 = vst [vmem:[#allocation2 + $0x10] sm:$0xff] %v3192
    $region45: #{tpu_custom_call.1} parent=1 // pred_fallthru
      _
    %v3196 = vld [vmem:[#allocation2] sm:$0xff]
    %v3197 = vld [vmem:[#allocation2 + $0x8] sm:$0xff]
    %v3198 = vld [vmem:[#allocation2 + $0x10] sm:$0xff]
    %v3199 = vld [vmem:[%s6] sm:$0xf]
    %v3200 = vld [vmem:[%s6 + $0x4] sm:$0xf]
    %v3201 = vld [vmem:[%s6 + $0x8] sm:$0xf]
    %v3202 = vld [vmem:[%s6 + $0xc] sm:$0xf]
    %v3203 = vld [vmem:[%s6 + $0x10] sm:$0xf]
    %v3204 = vld [vmem:[%s6 + $0x14] sm:$0xf]
    %v3205 = vld [vmem:[%s6 + $0x18] sm:$0xf]
    %v3206 = vld [vmem:[%s6 + $0x1c] sm:$0xf]
    %v3207 = vld [vmem:[%s6 + $0x20] sm:$0xf]
    %v3208 = vld [vmem:[%s6 + $0x24] sm:$0xf]
    %v3209 = vld [vmem:[%s6 + $0x28] sm:$0xf]
    %v3210 = vld [vmem:[%s6 + $0x2c] sm:$0xf]
    %v3211 = vld [vmem:[%s6 + $0x30] sm:$0xf]
    %v3212 = vld [vmem:[%s6 + $0x34] sm:$0xf]
    %v3213 = vld [vmem:[%s6 + $0x38] sm:$0xf]
    %v3214 = vld [vmem:[%s6 + $0x3c] sm:$0xf]
    %v3215 = vld [vmem:[%s6 + $0x40] sm:$0xf]
    %v3216 = vld [vmem:[%s6 + $0x44] sm:$0xf]
    %v3217 = vld [vmem:[%s6 + $0x48] sm:$0xf]
    %v3218 = vld [vmem:[%s6 + $0x4c] sm:$0xf]
    %v3219 = vld [vmem:[%s6 + $0x50] sm:$0xf]
    %v3220 = vld [vmem:[%s6 + $0x54] sm:$0xf]
    %v3221 = vld [vmem:[%s6 + $0x58] sm:$0xf]
    %v3222 = vld [vmem:[%s6 + $0x5c] sm:$0xf]
    %v3223 = vld [vmem:[%s6 + $0x60] sm:$0xf]
    %v3224 = vld [vmem:[%s6 + $0x64] sm:$0xf]
    %v3225 = vld [vmem:[%s6 + $0x68] sm:$0xf]
    %v3226 = vld [vmem:[%s6 + $0x6c] sm:$0xf]
    %v3227 = vld [vmem:[%s6 + $0x70] sm:$0xf]
    %v3228 = vld [vmem:[%s6 + $0x74] sm:$0xf]
    %v3229 = vld [vmem:[%s6 + $0x78] sm:$0xf]
    %v3230 = vld [vmem:[%s6 + $0x7c] sm:$0xf]
    %v3231 = vld [vmem:[%s6 + $0x80] sm:$0xf]
    %v3232 = vld [vmem:[%s6 + $0x84] sm:$0xf]
    %v3233 = vld [vmem:[%s6 + $0x88] sm:$0xf]
    %v3234 = vld [vmem:[%s6 + $0x8c] sm:$0xf]
    %v3235 = vld [vmem:[%s6 + $0x90] sm:$0xf]
    %v3236 = vld [vmem:[%s6 + $0x94] sm:$0xf]
    %v3237 = vld [vmem:[%s6 + $0x98] sm:$0xf]
    %v3238 = vld [vmem:[%s6 + $0x9c] sm:$0xf]
    %v3239 = vld [vmem:[%s6 + $0xa0] sm:$0xf]
    %v3240 = vld [vmem:[%s6 + $0xa4] sm:$0xf]
    %v3241 = vld [vmem:[%s6 + $0xa8] sm:$0xf]
    %v3242 = vld [vmem:[%s6 + $0xac] sm:$0xf]
    %v3243 = vld [vmem:[%s6 + $0xb0] sm:$0xf]
    %v3244 = vld [vmem:[%s6 + $0xb4] sm:$0xf]
    %v3245 = vld [vmem:[%s6 + $0xb8] sm:$0xf]
    %v3246 = vld [vmem:[%s6 + $0xbc] sm:$0xf]
    %v3247 = vld [vmem:[%s7] sm:$0x1]
    %v3249 = vlaneseq
    %v3250 = vshrl.u32 %v3249, 7
    %v3251 = vsub.s32 0, %v3250
    %v3252 = vrot.slane %v3247, %v3251
    %v3302 = vunpack.c.l.b16 %v3199
    %v3303 = vunpack.c.l.b16 %v3200
    %v3304 = vunpack.c.l.b16 %v3201
    %v3305 = vunpack.c.l.b16 %v3202
    %v3306 = vunpack.c.l.b16 %v3203
    %v3307 = vunpack.c.l.b16 %v3204
    %v3308 = vunpack.c.l.b16 %v3205
    %v3309 = vunpack.c.l.b16 %v3206
    %v3310 = vunpack.c.l.b16 %v3207
    %v3311 = vunpack.c.l.b16 %v3208
    %v3312 = vunpack.c.l.b16 %v3209
    %v3313 = vunpack.c.l.b16 %v3210
    %v3314 = vunpack.c.l.b16 %v3211
    %v3315 = vunpack.c.l.b16 %v3212
    %v3316 = vunpack.c.l.b16 %v3213
    %v3317 = vunpack.c.l.b16 %v3214
    %v3318 = vunpack.c.l.b16 %v3215
    %v3319 = vunpack.c.l.b16 %v3216
    %v3320 = vunpack.c.l.b16 %v3217
    %v3321 = vunpack.c.l.b16 %v3218
    %v3322 = vunpack.c.l.b16 %v3219
    %v3323 = vunpack.c.l.b16 %v3220
    %v3324 = vunpack.c.l.b16 %v3221
    %v3325 = vunpack.c.l.b16 %v3222
    %v3326 = vunpack.c.l.b16 %v3223
    %v3327 = vunpack.c.l.b16 %v3224
    %v3328 = vunpack.c.l.b16 %v3225
    %v3329 = vunpack.c.l.b16 %v3226
    %v3330 = vunpack.c.l.b16 %v3227
    %v3331 = vunpack.c.l.b16 %v3228
    %v3332 = vunpack.c.l.b16 %v3229
    %v3333 = vunpack.c.l.b16 %v3230
    %v3334 = vunpack.c.l.b16 %v3231
    %v3335 = vunpack.c.l.b16 %v3232
    %v3336 = vunpack.c.l.b16 %v3233
    %v3337 = vunpack.c.l.b16 %v3234
    %v3338 = vunpack.c.l.b16 %v3235
    %v3339 = vunpack.c.l.b16 %v3236
    %v3340 = vunpack.c.l.b16 %v3237
    %v3341 = vunpack.c.l.b16 %v3238
    %v3342 = vunpack.c.l.b16 %v3239
    %v3343 = vunpack.c.l.b16 %v3240
    %v3344 = vunpack.c.l.b16 %v3241
    %v3345 = vunpack.c.l.b16 %v3242
    %v3346 = vunpack.c.l.b16 %v3243
    %v3347 = vunpack.c.l.b16 %v3244
    %v3348 = vunpack.c.l.b16 %v3245
    %v3349 = vunpack.c.l.b16 %v3246
    %v3350 = vpack.c.b16 %v3303, %v3302
    %v3351 = vpack.c.b16 %v3305, %v3304
    %v3352 = vpack.c.b16 %v3307, %v3306
    %v3353 = vpack.c.b16 %v3309, %v3308
    %v3354 = vpack.c.b16 %v3311, %v3310
    %v3355 = vpack.c.b16 %v3313, %v3312
    %v3356 = vpack.c.b16 %v3315, %v3314
    %v3357 = vpack.c.b16 %v3317, %v3316
    %v3358 = vpack.c.b16 %v3319, %v3318
    %v3359 = vpack.c.b16 %v3321, %v3320
    %v3360 = vpack.c.b16 %v3323, %v3322
    %v3361 = vpack.c.b16 %v3325, %v3324
    %v3362 = vpack.c.b16 %v3327, %v3326
    %v3363 = vpack.c.b16 %v3329, %v3328
    %v3364 = vpack.c.b16 %v3331, %v3330
    %v3365 = vpack.c.b16 %v3333, %v3332
    %v3366 = vpack.c.b16 %v3335, %v3334
    %v3367 = vpack.c.b16 %v3337, %v3336
    %v3368 = vpack.c.b16 %v3339, %v3338
    %v3369 = vpack.c.b16 %v3341, %v3340
    %v3370 = vpack.c.b16 %v3343, %v3342
    %v3371 = vpack.c.b16 %v3345, %v3344
    %v3372 = vpack.c.b16 %v3347, %v3346
    %v3373 = vpack.c.b16 %v3349, %v3348
    %3398 = vmatprep.subr.bf16.mxu0 0
    %3399 = vmatpush1.bf16.msra.mxu0 %v3350
    %3400 = vmatprep.subr.bf16.mxu0 0
    %3401 = vmatpush1.bf16.msra.mxu0 %v3351
    %3402 = vmatprep.subr.bf16.mxu0 0
    %3403 = vmatpush1.bf16.msra.mxu0 %v3352
    %3404 = vmatprep.subr.bf16.mxu0 0
    %3405 = vmatpush1.bf16.msra.mxu0 %v3353
    %3406 = vmatprep.subr.bf16.mxu0 0
    %3407 = vmatpush1.bf16.msra.mxu0 %v3354
    %3408 = vmatprep.subr.bf16.mxu0 0
    %3409 = vmatpush1.bf16.msra.mxu0 %v3355
    %3410 = vmatprep.subr.bf16.mxu0 0
    %3411 = vmatpush1.bf16.msra.mxu0 %v3356
    %3412 = vmatprep.subr.bf16.mxu0 0
    %3413 = vmatpush1.bf16.msra.mxu0 %v3357
    %3414 = vmatprep.subr.bf16.mxu0 0
    %3415 = vmatpush1.bf16.msra.mxu0 %v3358
    %3416 = vmatprep.subr.bf16.mxu0 0
    %3417 = vmatpush1.bf16.msra.mxu0 %v3359
    %3418 = vmatprep.subr.bf16.mxu0 0
    %3419 = vmatpush1.bf16.msra.mxu0 %v3360
    %3420 = vmatprep.subr.bf16.mxu0 0
    %3421 = vmatpush1.bf16.msra.mxu0 %v3361
    %3422 = vmatprep.subr.bf16.mxu0 0
    %3423 = vmatpush1.bf16.msra.mxu0 %v3362
    %3424 = vmatprep.subr.bf16.mxu0 0
    %3425 = vmatpush1.bf16.msra.mxu0 %v3363
    %3426 = vmatprep.subr.bf16.mxu0 0
    %3427 = vmatpush1.bf16.msra.mxu0 %v3364
    %3428 = vmatprep.subr.bf16.mxu0 0
    %3429 = vmatpush1.bf16.msra.mxu0 %v3365
    %3430 = vmatprep.mubr.bf16.mxu0 %v3197
    %3431 = vmatmul.mubr.bf16.gmra.mrb[0].mxu0 %v3196
    %v3432 = vpop.f32.mrb[0].mxu0
    %v3433 = vadd.f32 %v3252, %v3432
    %v3434 = vpop.f32.mrb[0].mxu0
    %v3435 = vpop.f32.mrb[0].mxu0
    %v3436 = vadd.f32 %v3252, %v3435
    %v3437 = vpop.f32.mrb[0].mxu0
    %3438 = vdwg.mxu0
    %3439 = vmatprep.subr.bf16.mxu0 0
    %3440 = vmatpush1.bf16.msra.mxu0 %v3366
    %3441 = vmatprep.subr.bf16.mxu0 0
    %3442 = vmatpush1.bf16.msra.mxu0 %v3367
    %3443 = vmatprep.subr.bf16.mxu0 0
    %3444 = vmatpush1.bf16.msra.mxu0 %v3368
    %3445 = vmatprep.subr.bf16.mxu0 0
    %3446 = vmatpush1.bf16.msra.mxu0 %v3369
    %3447 = vmatprep.subr.bf16.mxu0 0
    %3448 = vmatpush1.bf16.msra.mxu0 %v3370
    %3449 = vmatprep.subr.bf16.mxu0 0
    %3450 = vmatpush1.bf16.msra.mxu0 %v3371
    %3451 = vmatprep.subr.bf16.mxu0 0
    %3452 = vmatpush1.bf16.msra.mxu0 %v3372
    %3453 = vmatprep.subr.bf16.mxu0 0
    %3454 = vmatpush1.bf16.msra.mxu0 %v3373
    %3455 = vmatprep.subr.bf16.mxu0 0
    %3456 = vmatpush1.bf16.msra.mxu0 0
    %3457 = vmatprep.subr.bf16.mxu0 0
    %3458 = vmatpush1.bf16.msra.mxu0 0
    %3459 = vmatprep.subr.bf16.mxu0 0
    %3460 = vmatpush1.bf16.msra.mxu0 0
    %3461 = vmatprep.subr.bf16.mxu0 0
    %3462 = vmatpush1.bf16.msra.mxu0 0
    %3463 = vmatprep.subr.bf16.mxu0 0
    %3464 = vmatpush1.bf16.msra.mxu0 0
    %3465 = vmatprep.subr.bf16.mxu0 0
    %3466 = vmatpush1.bf16.msra.mxu0 0
    %3467 = vmatprep.subr.bf16.mxu0 0
    %3468 = vmatpush1.bf16.msra.mxu0 0
    %3469 = vmatprep.subr.bf16.mxu0 0
    %3470 = vmatpush1.bf16.msra.mxu0 0
    %3471 = vmatprep.mubr.bf16.mxu0 0
    %3472 = vmatmul.mubr.bf16.gmra.mrb[0].mxu0 %v3198
    %v3473 = vpop.f32.mrb[0].mxu0
    %v3474 = vadd.f32 %v3433, %v3473
    %v3475 = vpop.f32.mrb[0].mxu0
    %v3476 = vpop.f32.mrb[0].mxu0
    %v3477 = vadd.f32 %v3436, %v3476
    %v3478 = vpop.f32.mrb[0].mxu0
    %3479 = vdwg.mxu0
    %v3480 = vpack.c.bf16 %v3474, %v3474
    %v3481 = vpack.c.bf16 %v3477, %v3477
    %vm3482 = vcmask 519168
    %3483 = vst.msk [vmem:[#allocation8] sm:$0xf] %vm3482, %v3480
    %3484 = vst.msk [vmem:[#allocation8 + $0x4] sm:$0xf] %vm3482, %v3481
    // Predicated region
    $region46: #{tpu_custom_call.1} parent=1 // pred_check
      _
    $region47: #{tpu_custom_call.1} parent=1 // pred_check_branch
      %3486 = sbr.rel (0) target = $region49
    $region48: #{tpu_custom_call.1} parent=1 // pred_region
      %s3488 = ssub.s32 128, 128
      %3489 = vsyncadd [#allocation5], %s3488
      %s3490 = sshll.u32 [#allocation8], 4
      %s3491 = int_to_ptr.vmem [resolvable:$true] %s3490
      %3496 = dma.vmem_to_hbm [thread:$0]  %s3491, 128, %s8, [#allocation5], 64, 64, 4
    $region49: #{tpu_custom_call.1} parent=1 // pred_fallthru
      _
    // Predicated region
    $region50: #{tpu_custom_call.1} parent=1 // pred_check
      _
    $region51: #{tpu_custom_call.1} parent=1 // pred_check_branch
      %3498 = sbr.rel (0) target = $region53
    $region52: #{tpu_custom_call.1} parent=1 // pred_region
      %3499 = dma.done [#allocation5], 128
    $region53: #{tpu_custom_call.1} parent=1 // pred_fallthru
      _
    %3500 = vsyncpa [#allocation4], 1
    %3501 = vsyncpa [#allocation7], 1
    %3502 = vsyncpa [#allocation5], 1

</llo_original>
